<compile_context>
chip_gen: v7x
topology: tpu7x:2x2x1
jax: 0.10.0
libtpu: 0.0.40
codegen_flags: <defaults>
</compile_context>

<pallas_src>
import numpy as np
import jax
import jax.numpy as jnp
from jax import lax
from jax.experimental import pallas as pl

# -------------------- small, module-consistent configuration ----------------
IMAGE_SIZE = 16        # H = W
PATCH_SIZE = 8         # p1 = p2
FRAMES = 4
FRAME_PATCH = 2        # pf
CHANNELS = 3
DIM = 32
DEPTH = 2
HEADS = 4
DIM_HEAD = 8
MLP_DIM = 64
NUM_CLASSES = 5
BATCH = 2
POOL = "cls"

N_PATCHES = (IMAGE_SIZE // PATCH_SIZE) ** 2 * (FRAMES // FRAME_PATCH)   # 8
PATCH_DIM = CHANNELS * PATCH_SIZE * PATCH_SIZE * FRAME_PATCH            # 384
SEQ = N_PATCHES + 1                                                     # 9 (cls + patches)
ROWS = BATCH * SEQ                                                      # 18 (batch folded into M)
INNER = HEADS * DIM_HEAD                                                # 32
SCALE = DIM_HEAD ** -0.5
LN_EPS = 1e-5
MM_DTYPE = jnp.bfloat16             # MXU operand dtype (accumulation stays f32)

# ---- slab layouts (all offsets are static Python ints) ----------------------
# wA: bf16, 32 lanes — RHS weights whose output width is DIM (or padded to it).
WA_WE = 0                                   # (PATCH_DIM, DIM)
WA_WO = PATCH_DIM                           # per layer l: rows WA_WO + INNER*l
WA_W2 = WA_WO + INNER * DEPTH               # per layer l: rows WA_W2 + MLP_DIM*l
WA_HEADW = WA_W2 + MLP_DIM * DEPTH          # (DIM, DIM)  head weight padded to 32 lanes
WA_ROWS = WA_HEADW + DIM                    # 608 rows (multiple of 16 => aligned bf16 slices)

# wB: bf16, 96 lanes — W_qkv (scale folded into Q) and W_1 (lane-padded to 96).
WB_LANES = 3 * INNER                        # 96
WB_QKV = 0                                  # per layer l: rows WB_QKV + DIM*l
WB_W1 = DIM * DEPTH                         # per layer l: rows WB_W1 + DIM*l
WB_ROWS = WB_W1 + DIM * DEPTH               # 128

# vecs: f32, 64 lanes — every small vector / table.
V_LANES = max(MLP_DIM, DIM)                 # 64
V_TOK = 0                                   # (ROWS, DIM)   cls+pos additive table
V_BIAS = V_TOK + ROWS                       # (ROWS, ROWS)  cross-batch attn mask (0 / -1e30)
V_B_E = V_BIAS + ROWS                       # 36
V_LN_E_G = V_B_E + 1                        # 37
V_LN_E_B = V_LN_E_G + 1                     # 38
V_HEAD_G = V_LN_E_B + 1                     # 39
V_HEAD_B = V_HEAD_G + 1                     # 40
V_LAYER = V_HEAD_B + 1                      # 41; per layer: ln1_g, ln1_b, b_o, ln2_g, ln2_b, b2
V_B1 = V_LAYER + 6 * DEPTH                  # 53; per layer b1 (64 lanes)
V_HB = V_B1 + DEPTH                         # 55; head bias (lane-padded)
V_ROWS = V_HB + 1                           # 56


# ----------------------------- in-kernel helpers -----------------------------
def _mm(a, b):
    # MXU matmul, bf16 operands, f32 accumulation.  Weights are pre-cast to
    # bf16 at pack time, so the RHS astype is a trace-time no-op for them.
    return jnp.dot(a.astype(MM_DTYPE), b.astype(MM_DTYPE),
                   preferred_element_type=jnp.float32)


def _mm_t(a, b):
    # a (m, d) x b (n, d) -> (m, n): contract the LAST axis of both operands,
    # so no explicit transpose (XLU relayout) is materialized.
    return lax.dot_general(a.astype(MM_DTYPE), b.astype(MM_DTYPE),
                           (((1,), (1,)), ((), ())),
                           preferred_element_type=jnp.float32)


def _layernorm(x, g, b):
    mu = jnp.mean(x, axis=-1, keepdims=True)
    var = jnp.mean(jnp.square(x - mu), axis=-1, keepdims=True)
    return (x - mu) * lax.rsqrt(var + LN_EPS) * g + b


def _erf_approx(z):
    # Abramowitz & Stegun 7.1.26, |error| <= 1.5e-7; exp + approx reciprocal (EUP).
    a1, a2, a3, a4, a5 = 0.254829592, -0.284496736, 1.421413741, -1.453152027, 1.061405429
    p = 0.3275911
    s = jnp.where(z >= 0.0, 1.0, -1.0)
    az = jnp.abs(z)
    t = pl.reciprocal(1.0 + p * az, approx=True)
    poly = ((((a5 * t + a4) * t + a3) * t + a2) * t + a1) * t
    return s * (1.0 - poly * jnp.exp(-az * az))


def _gelu_exact(x):
    # TODO(synk): nn.GELU() is erf-based; erf is evaluated with an exp-only
    # polynomial (max abs err ~1.5e-7) instead of a native erf op.
    return 0.5 * x * (1.0 + _erf_approx(x * 0.7071067811865476))


# --------------------------------- fused kernel -------------------------------
def vit3d_kernel(pp_ref,    # (ROWS+2, PATCH_DIM) f32: patches (cls rows zero) + [ln_p_g, ln_p_b]
                 vec_ref,   # (V_ROWS, V_LANES)  f32: tok, attn bias, LN params, biases
                 wa_ref,    # (WA_ROWS, DIM)     bf16: w_e | w_o (per layer) | w_2 (per layer) | head_w
                 wb_ref,    # (WB_ROWS, WB_LANES) bf16: w_qkv (scaled Q) | w_1 (lane-padded)
                 out_ref):  # (BATCH, DIM)       f32 (sliced to NUM_CLASSES outside)
    # ---- patch embedding: LayerNorm -> Linear -> LayerNorm (batch folded in M) ----
    p = _layernorm(pp_ref[0:ROWS, :], pp_ref[ROWS:ROWS + 1, :], pp_ref[ROWS + 1:ROWS + 2, :])
    emb = _mm(p, wa_ref[WA_WE:WA_WE + PATCH_DIM, :]) + vec_ref[V_B_E:V_B_E + 1, 0:DIM]
    emb = _layernorm(emb, vec_ref[V_LN_E_G:V_LN_E_G + 1, 0:DIM],
                     vec_ref[V_LN_E_B:V_LN_E_B + 1, 0:DIM])

    # ---- token assembly (rows [0, BATCH) are the per-batch cls tokens) ----
    rid = lax.broadcasted_iota(jnp.int32, (ROWS, 1), 0)
    x = vec_ref[V_TOK:V_TOK + ROWS, 0:DIM] + jnp.where(rid >= BATCH, emb, 0.0)

    attn_bias = vec_ref[V_BIAS:V_BIAS + ROWS, 0:ROWS]            # (ROWS, ROWS) 0 / -1e30

    # per-head lane placement masks, hoisted (pure VPU selects, no lane concat)
    lane = lax.broadcasted_iota(jnp.int32, (ROWS, INNER), 1)
    head_masks = [(lane >= h * DIM_HEAD) & (lane < (h + 1) * DIM_HEAD) for h in range(HEADS)]

    # ---- transformer blocks (statically unrolled) ----
    for l in range(DEPTH):
        base = V_LAYER + 6 * l
        ln1_g = vec_ref[base + 0:base + 1, 0:DIM]
        ln1_b = vec_ref[base + 1:base + 2, 0:DIM]
        b_o = vec_ref[base + 2:base + 3, 0:DIM]
        ln2_g = vec_ref[base + 3:base + 4, 0:DIM]
        ln2_b = vec_ref[base + 4:base + 5, 0:DIM]
        b2 = vec_ref[base + 5:base + 6, 0:DIM]
        b1 = vec_ref[V_B1 + l:V_B1 + l + 1, 0:MLP_DIM]

        # --- PreNorm + Attention ---
        # TODO(synk): Attention.forward references `self.norm`, which is never
        # defined in its __init__ (PreNorm already normalizes); treated as identity.
        y = _layernorm(x, ln1_g, ln1_b)
        qkv = _mm(y, wb_ref[WB_QKV + DIM * l:WB_QKV + DIM * (l + 1), :])   # (ROWS, 3*INNER)
        v_all = qkv[:, 2 * INNER:3 * INNER]                                # (ROWS, INNER)

        out_full = None
        for h in range(HEADS):                                   # static unrolled head loop
            q = qkv[:, h * DIM_HEAD:(h + 1) * DIM_HEAD]
            k = qkv[:, INNER + h * DIM_HEAD:INNER + (h + 1) * DIM_HEAD]
            dots = _mm_t(q, k) + attn_bias                       # SCALE folded into W_q
            m = jnp.max(dots, axis=-1, keepdims=True)
            e = jnp.exp(dots - m)
            attn = e * pl.reciprocal(jnp.sum(e, axis=-1, keepdims=True), approx=True)
            vh = jnp.where(head_masks[h], v_all, 0.0)            # lane-place head h's V
            term = _mm(attn, vh)                                 # (ROWS, INNER), only h's lanes nonzero
            out_full = term if out_full is None else out_full + term
        wo = wa_ref[WA_WO + INNER * l:WA_WO + INNER * (l + 1), :]
        # Attention returns to_out(out) + its (pre-normed) input y; Transformer adds x.
        x = _mm(out_full, wo) + b_o + y + x                      # one fused K=32 W_o matmul

        # --- PreNorm + FeedForward (dropouts = identity) ---
        y2 = _layernorm(x, ln2_g, ln2_b)
        w1 = wb_ref[WB_W1 + DIM * l:WB_W1 + DIM * (l + 1), 0:MLP_DIM]
        hdn = _gelu_exact(_mm(y2, w1) + b1)
        w2 = wa_ref[WA_W2 + MLP_DIM * l:WA_W2 + MLP_DIM * (l + 1), :]
        x = _mm(hdn, w2) + b2 + x

    # ---- pooling: 'cls' is a free static row slice (rows [0, BATCH) are cls) ----
    if POOL == "cls":
        pooled = x[0:BATCH, :]
    else:
        # mean pooling fallback (not traced when POOL == "cls")
        bsel = lax.broadcasted_iota(jnp.int32, (BATCH, ROWS), 0)
        rsel = lax.broadcasted_iota(jnp.int32, (BATCH, ROWS), 1)
        rb = jnp.where(rsel < BATCH, rsel, (rsel - BATCH) // N_PATCHES)
        pool_w = jnp.where(rb == bsel, 1.0 / SEQ, 0.0)
        pooled = jnp.dot(pool_w, x, preferred_element_type=jnp.float32)

    # ---- MLP head: LayerNorm + Linear ----
    yh = _layernorm(pooled, vec_ref[V_HEAD_G:V_HEAD_G + 1, 0:DIM],
                    vec_ref[V_HEAD_B:V_HEAD_B + 1, 0:DIM])
    out_ref[...] = _mm(yh, wa_ref[WA_HEADW:WA_HEADW + DIM, :]) + vec_ref[V_HB:V_HB + 1, 0:DIM]


# ------------------------------ plain-JAX glue --------------------------------
def extract_patches(video):
    # 'b c (f pf) (h p1) (w p2) -> b (f h w) (p1 p2 pf c)'
    b, c, F, H, W = video.shape
    f, h, w = F // FRAME_PATCH, H // PATCH_SIZE, W // PATCH_SIZE
    x = video.reshape(b, c, f, FRAME_PATCH, h, PATCH_SIZE, w, PATCH_SIZE)
    x = x.transpose(0, 2, 4, 6, 5, 7, 3, 1)           # b f h w p1 p2 pf c
    return x.reshape(b, f * h * w, PATCH_SIZE * PATCH_SIZE * FRAME_PATCH * c)


@jax.jit
def vit3d_forward(video, packed):
    lnp_rows, vecs, wa, wb = packed
    patches = extract_patches(video).reshape(BATCH * N_PATCHES, PATCH_DIM)
    # rows [0, BATCH) are zero placeholders for the cls tokens; patch-LN params appended.
    patches_plus = jnp.concatenate(
        [jnp.zeros((BATCH, PATCH_DIM), jnp.float32), patches, lnp_rows], axis=0)
    out = pl.pallas_call(
        vit3d_kernel,
        out_shape=jax.ShapeDtypeStruct((BATCH, DIM), jnp.float32),
        cost_estimate=pl.CostEstimate(flops=1_250_000, transcendentals=8_000,
                                      bytes_accessed=109_000),
    )(patches_plus, vecs, wa, wb)
    return out[:, :NUM_CLASSES]


# ------------------------------ parameter packing -----------------------------
def pack_params(params):
    e, layers, head = params["embed"], params["layers"], params["head"]

    # patch-LN rows appended to the per-call patch slab
    lnp_rows = jnp.stack([e["ln_p_g"], e["ln_p_b"]], axis=0).astype(jnp.float32)   # (2, PATCH_DIM)

    # ---- f32 small-vector slab ----
    def padlane(a, lanes=V_LANES):
        a = jnp.atleast_2d(a)
        return jnp.pad(a, ((0, 0), (0, lanes - a.shape[-1])))

    pos = params["pos_embedding"][0, :SEQ]                                 # (SEQ, DIM)
    cls_row = params["cls_token"][0, 0] + pos[0]
    tok = jnp.concatenate([jnp.tile(cls_row[None, :], (BATCH, 1)),          # rows [0, BATCH): cls
                           jnp.tile(pos[1:], (BATCH, 1))], axis=0)          # then patches per batch

    ridx = np.arange(ROWS)
    rb = np.where(ridx < BATCH, ridx, (ridx - BATCH) // N_PATCHES)          # batch id per row
    bias_np = np.where(rb[:, None] == rb[None, :], 0.0, -1e30).astype(np.float32)

    vrows = [padlane(tok), padlane(jnp.asarray(bias_np)),
             padlane(e["b_e"]), padlane(e["ln_e_g"]), padlane(e["ln_e_b"]),
             padlane(head["ln_g"]), padlane(head["ln_b"])]
    for lp in layers:
        vrows += [padlane(lp["ln1_g"]), padlane(lp["ln1_b"]), padlane(lp["b_o"]),
                  padlane(lp["ln2_g"]), padlane(lp["ln2_b"]), padlane(lp["b2"])]
    vrows += [padlane(lp["b1"]) for lp in layers]
    vrows += [padlane(head["b"])]
    vecs = jnp.concatenate(vrows, axis=0).astype(jnp.float32)
    assert vecs.shape == (V_ROWS, V_LANES), vecs.shape

    # ---- bf16 weight slab A (32 lanes): w_e | w_o per layer | w_2 per layer | head_w ----
    wa = jnp.concatenate(
        [e["w_e"]]
        + [lp["w_o"] for lp in layers]
        + [lp["w2"] for lp in layers]
        + [jnp.pad(head["w"], ((0, 0), (0, DIM - NUM_CLASSES)))],
        axis=0).astype(jnp.bfloat16)
    assert wa.shape == (WA_ROWS, DIM), wa.shape

    # ---- bf16 weight slab B (96 lanes): w_qkv (SCALE folded into Q, scale-then-round) | w_1 ----
    wqkv_scaled = [lp["w_qkv"].at[:, :INNER].multiply(SCALE) for lp in layers]
    w1_pad = [jnp.pad(lp["w1"], ((0, 0), (0, WB_LANES - MLP_DIM))) for lp in layers]
    wb = jnp.concatenate(wqkv_scaled + w1_pad, axis=0).astype(jnp.bfloat16)
    assert wb.shape == (WB_ROWS, WB_LANES), wb.shape

    return (lnp_rows, vecs, wa, wb)


# ------------------------------ parameter init --------------------------------
def init_params(key):
    ks = iter(jax.random.split(key, 64))

    def nrm(shape, s=0.02):
        return s * jax.random.normal(next(ks), shape, jnp.float32)

    def ln(n):
        return (1.0 + 0.05 * jax.random.normal(next(ks), (n,), jnp.float32),
                0.05 * jax.random.normal(next(ks), (n,), jnp.float32))

    embed = {}
    embed["ln_p_g"], embed["ln_p_b"] = ln(PATCH_DIM)
    embed["w_e"] = nrm((PATCH_DIM, DIM))
    embed["b_e"] = nrm((DIM,))
    embed["ln_e_g"], embed["ln_e_b"] = ln(DIM)

    layers = []
    for _ in range(DEPTH):
        lp = {}
        lp["ln1_g"], lp["ln1_b"] = ln(DIM)
        lp["w_qkv"] = nrm((DIM, 3 * INNER))            # to_qkv, no bias
        lp["w_o"] = nrm((INNER, DIM))
        lp["b_o"] = nrm((DIM,))
        lp["ln2_g"], lp["ln2_b"] = ln(DIM)
        lp["w1"] = nrm((DIM, MLP_DIM))
        lp["b1"] = nrm((MLP_DIM,))
        lp["w2"] = nrm((MLP_DIM, DIM))
        lp["b2"] = nrm((DIM,))
        layers.append(lp)

    head = {}
    head["ln_g"], head["ln_b"] = ln(DIM)
    head["w"] = nrm((DIM, NUM_CLASSES))
    head["b"] = nrm((NUM_CLASSES,))

    return {
        "embed": embed, "layers": layers, "head": head,
        "cls_token": jax.random.normal(next(ks), (1, 1, DIM), jnp.float32),
        "pos_embedding": jax.random.normal(next(ks), (1, SEQ, DIM), jnp.float32),
    }


# ------------------------------ pure-JAX reference -----------------------------
def _layernorm_ref(x, g, b):
    mu = jnp.mean(x, axis=-1, keepdims=True)
    var = jnp.mean(jnp.square(x - mu), axis=-1, keepdims=True)
    return (x - mu) * lax.rsqrt(var + LN_EPS) * g + b


def reference_forward(video, params):
    from jax.scipy.special import erf
    patches = extract_patches(video)
    e = params["embed"]
    x = _layernorm_ref(patches, e["ln_p_g"], e["ln_p_b"])
    x = x @ e["w_e"] + e["b_e"]
    x = _layernorm_ref(x, e["ln_e_g"], e["ln_e_b"])
    b = x.shape[0]
    cls = jnp.broadcast_to(params["cls_token"], (b, 1, DIM))
    x = jnp.concatenate([cls, x], axis=1) + params["pos_embedding"][:, :SEQ]
    for lp in params["layers"]:
        y = _layernorm_ref(x, lp["ln1_g"], lp["ln1_b"])
        qkv = y @ lp["w_qkv"]
        q, k, v = jnp.split(qkv, 3, axis=-1)
        split_heads = lambda t: t.reshape(b, SEQ, HEADS, DIM_HEAD).transpose(0, 2, 1, 3)
        q, k, v = split_heads(q), split_heads(k), split_heads(v)
        dots = jnp.einsum("bhqd,bhkd->bhqk", q, k) * SCALE
        attn = jax.nn.softmax(dots, axis=-1)
        out = jnp.einsum("bhqk,bhkd->bhqd", attn, v)
        out = out.transpose(0, 2, 1, 3).reshape(b, SEQ, INNER)
        proj = out @ lp["w_o"] + lp["b_o"]
        x = proj + y + x
        y2 = _layernorm_ref(x, lp["ln2_g"], lp["ln2_b"])
        h = y2 @ lp["w1"] + lp["b1"]
        h = 0.5 * h * (1.0 + erf(h * 0.7071067811865476))
        x = h @ lp["w2"] + lp["b2"] + x
    x = jnp.mean(x, axis=1) if POOL == "mean" else x[:, 0]
    hd = params["head"]
    x = _layernorm_ref(x, hd["ln_g"], hd["ln_b"])
    return x @ hd["w"] + hd["b"]


# ------------------------------------ main -------------------------------------
if __name__ == "__main__":
    key = jax.random.PRNGKey(0)
    k_vid, k_par = jax.random.split(key)
    video = jax.random.normal(
        k_vid, (BATCH, CHANNELS, FRAMES, IMAGE_SIZE, IMAGE_SIZE), jnp.float32)
    params = init_params(k_par)
    packed = pack_params(params)

    out = jax.block_until_ready(vit3d_forward(video, packed))
    ref = jax.block_until_ready(reference_forward(video, params))

    assert out.shape == (BATCH, NUM_CLASSES), out.shape
    assert bool(jnp.all(jnp.isfinite(out)))
    max_err = float(jnp.max(jnp.abs(out - ref)))
    assert max_err < 1e-2, f"mismatch vs reference: {max_err}"
    print("KERNEL_OK")
</pallas_src>

<mosaic_0001>
module attributes {stable_mosaic.version = 11 : i64} {
  func.func @vit3d_kernel(%arg0: memref<20x384xf32, #tpu.memory_space<vmem>>, %arg1: memref<56x64xf32, #tpu.memory_space<vmem>>, %arg2: memref<608x32xbf16, #tpu.memory_space<vmem>>, %arg3: memref<128x96xbf16, #tpu.memory_space<vmem>>, %arg4: memref<2x32xf32, #tpu.memory_space<vmem>>) attributes {dimension_semantics = [], scalar_prefetch = 0 : i64, scratch_operands = 0 : i64, tpu.core_type = #tpu.core_type<tc>} {
    %c0 = arith.constant 0 : index
    %c0_0 = arith.constant 0 : index
    %0 = vector.load %arg0[%c0, %c0_0] : memref<20x384xf32, #tpu.memory_space<vmem>>, vector<18x384xf32>
    %c18 = arith.constant 18 : index
    %c0_1 = arith.constant 0 : index
    %1 = vector.load %arg0[%c18, %c0_1] : memref<20x384xf32, #tpu.memory_space<vmem>>, vector<1x384xf32>
    %c19 = arith.constant 19 : index
    %c0_2 = arith.constant 0 : index
    %2 = vector.load %arg0[%c19, %c0_2] : memref<20x384xf32, #tpu.memory_space<vmem>>, vector<1x384xf32>
    %cst = arith.constant dense<0.000000e+00> : vector<18xf32>
    %3 = vector.multi_reduction <add>, %0, %cst [1] : vector<18x384xf32> to vector<18xf32>
    %4 = vector.shape_cast %3 : vector<18xf32> to vector<18x1xf32>
    %cst_3 = arith.constant 3.840000e+02 : f32
    %5 = vector.broadcast %cst_3 : f32 to vector<18x1xf32>
    %6 = arith.divf %4, %5 : vector<18x1xf32>
    %7 = vector.broadcast %6 : vector<18x1xf32> to vector<18x384xf32>
    %8 = arith.subf %0, %7 : vector<18x384xf32>
    %9 = arith.mulf %8, %8 : vector<18x384xf32>
    %cst_4 = arith.constant dense<0.000000e+00> : vector<18xf32>
    %10 = vector.multi_reduction <add>, %9, %cst_4 [1] : vector<18x384xf32> to vector<18xf32>
    %11 = vector.shape_cast %10 : vector<18xf32> to vector<18x1xf32>
    %cst_5 = arith.constant 3.840000e+02 : f32
    %12 = vector.broadcast %cst_5 : f32 to vector<18x1xf32>
    %13 = arith.divf %11, %12 : vector<18x1xf32>
    %14 = vector.broadcast %6 : vector<18x1xf32> to vector<18x384xf32>
    %15 = arith.subf %0, %14 : vector<18x384xf32>
    %cst_6 = arith.constant 9.99999974E-6 : f32
    %16 = vector.broadcast %cst_6 : f32 to vector<18x1xf32>
    %17 = arith.addf %13, %16 : vector<18x1xf32>
    %18 = math.rsqrt %17 : vector<18x1xf32>
    %19 = vector.broadcast %18 : vector<18x1xf32> to vector<18x384xf32>
    %20 = arith.mulf %15, %19 : vector<18x384xf32>
    %21 = vector.broadcast %1 : vector<1x384xf32> to vector<18x384xf32>
    %22 = arith.mulf %20, %21 : vector<18x384xf32>
    %23 = vector.broadcast %2 : vector<1x384xf32> to vector<18x384xf32>
    %24 = arith.addf %22, %23 : vector<18x384xf32>
    %c0_7 = arith.constant 0 : index
    %c0_8 = arith.constant 0 : index
    %25 = vector.load %arg2[%c0_7, %c0_8] : memref<608x32xbf16, #tpu.memory_space<vmem>>, vector<384x32xbf16>
    %26 = arith.truncf %24 : vector<18x384xf32> to vector<18x384xbf16>
    %cst_9 = arith.constant dense<0.000000e+00> : vector<18x32xf32>
    %27 = tpu.matmul %26, %25, %cst_9 {dimension_numbers = #tpu.dot_dimension_numbers<[1], [0], [0], [1], [0, 0, 1, 1], [], []>} : vector<18x384xbf16>, vector<384x32xbf16>, vector<18x32xf32> -> vector<18x32xf32>
    %c36 = arith.constant 36 : index
    %c0_10 = arith.constant 0 : index
    %28 = vector.load %arg1[%c36, %c0_10] : memref<56x64xf32, #tpu.memory_space<vmem>>, vector<1x32xf32>
    %29 = vector.broadcast %28 : vector<1x32xf32> to vector<18x32xf32>
    %30 = arith.addf %27, %29 : vector<18x32xf32>
    %c37 = arith.constant 37 : index
    %c0_11 = arith.constant 0 : index
    %31 = vector.load %arg1[%c37, %c0_11] : memref<56x64xf32, #tpu.memory_space<vmem>>, vector<1x32xf32>
    %c38 = arith.constant 38 : index
    %c0_12 = arith.constant 0 : index
    %32 = vector.load %arg1[%c38, %c0_12] : memref<56x64xf32, #tpu.memory_space<vmem>>, vector<1x32xf32>
    %cst_13 = arith.constant dense<0.000000e+00> : vector<18xf32>
    %33 = vector.multi_reduction <add>, %30, %cst_13 [1] : vector<18x32xf32> to vector<18xf32>
    %34 = vector.shape_cast %33 : vector<18xf32> to vector<18x1xf32>
    %cst_14 = arith.constant 3.200000e+01 : f32
    %35 = vector.broadcast %cst_14 : f32 to vector<18x1xf32>
    %36 = arith.divf %34, %35 : vector<18x1xf32>
    %37 = vector.broadcast %36 : vector<18x1xf32> to vector<18x32xf32>
    %38 = arith.subf %30, %37 : vector<18x32xf32>
    %39 = arith.mulf %38, %38 : vector<18x32xf32>
    %cst_15 = arith.constant dense<0.000000e+00> : vector<18xf32>
    %40 = vector.multi_reduction <add>, %39, %cst_15 [1] : vector<18x32xf32> to vector<18xf32>
    %41 = vector.shape_cast %40 : vector<18xf32> to vector<18x1xf32>
    %cst_16 = arith.constant 3.200000e+01 : f32
    %42 = vector.broadcast %cst_16 : f32 to vector<18x1xf32>
    %43 = arith.divf %41, %42 : vector<18x1xf32>
    %44 = vector.broadcast %36 : vector<18x1xf32> to vector<18x32xf32>
    %45 = arith.subf %30, %44 : vector<18x32xf32>
    %cst_17 = arith.constant 9.99999974E-6 : f32
    %46 = vector.broadcast %cst_17 : f32 to vector<18x1xf32>
    %47 = arith.addf %43, %46 : vector<18x1xf32>
    %48 = math.rsqrt %47 : vector<18x1xf32>
    %49 = vector.broadcast %48 : vector<18x1xf32> to vector<18x32xf32>
    %50 = arith.mulf %45, %49 : vector<18x32xf32>
    %51 = vector.broadcast %31 : vector<1x32xf32> to vector<18x32xf32>
    %52 = arith.mulf %50, %51 : vector<18x32xf32>
    %53 = vector.broadcast %32 : vector<1x32xf32> to vector<18x32xf32>
    %54 = arith.addf %52, %53 : vector<18x32xf32>
    %55 = tpu.iota {dimensions = array<i32: 0>} : vector<18x1xi32>
    %c0_18 = arith.constant 0 : index
    %c0_19 = arith.constant 0 : index
    %56 = vector.load %arg1[%c0_18, %c0_19] : memref<56x64xf32, #tpu.memory_space<vmem>>, vector<18x32xf32>
    %c2_i32 = arith.constant 2 : i32
    %57 = vector.broadcast %c2_i32 : i32 to vector<18x1xi32>
    %58 = arith.cmpi sge, %55, %57 : vector<18x1xi32>
    %cst_20 = arith.constant 0.000000e+00 : f32
    %59 = vector.shape_cast %58 : vector<18x1xi1> to vector<18x1xi1>
    %60 = vector.broadcast %59 : vector<18x1xi1> to vector<18x32xi1>
    %61 = vector.broadcast %cst_20 : f32 to vector<18x32xf32>
    %62 = arith.select %60, %54, %61 : vector<18x32xi1>, vector<18x32xf32>
    %63 = arith.addf %56, %62 : vector<18x32xf32>
    %c18_21 = arith.constant 18 : index
    %c0_22 = arith.constant 0 : index
    %64 = vector.load %arg1[%c18_21, %c0_22] : memref<56x64xf32, #tpu.memory_space<vmem>>, vector<18x18xf32>
    %65 = tpu.iota {dimensions = array<i32: 1>} : vector<18x32xi32>
    %c0_i32 = arith.constant 0 : i32
    %66 = vector.broadcast %c0_i32 : i32 to vector<18x32xi32>
    %67 = arith.cmpi sge, %65, %66 : vector<18x32xi32>
    %c8_i32 = arith.constant 8 : i32
    %68 = vector.broadcast %c8_i32 : i32 to vector<18x32xi32>
    %69 = arith.cmpi slt, %65, %68 : vector<18x32xi32>
    %70 = arith.andi %67, %69 : vector<18x32xi1>
    %c8_i32_23 = arith.constant 8 : i32
    %71 = vector.broadcast %c8_i32_23 : i32 to vector<18x32xi32>
    %72 = arith.cmpi sge, %65, %71 : vector<18x32xi32>
    %c16_i32 = arith.constant 16 : i32
    %73 = vector.broadcast %c16_i32 : i32 to vector<18x32xi32>
    %74 = arith.cmpi slt, %65, %73 : vector<18x32xi32>
    %75 = arith.andi %72, %74 : vector<18x32xi1>
    %c16_i32_24 = arith.constant 16 : i32
    %76 = vector.broadcast %c16_i32_24 : i32 to vector<18x32xi32>
    %77 = arith.cmpi sge, %65, %76 : vector<18x32xi32>
    %c24_i32 = arith.constant 24 : i32
    %78 = vector.broadcast %c24_i32 : i32 to vector<18x32xi32>
    %79 = arith.cmpi slt, %65, %78 : vector<18x32xi32>
    %80 = arith.andi %77, %79 : vector<18x32xi1>
    %c24_i32_25 = arith.constant 24 : i32
    %81 = vector.broadcast %c24_i32_25 : i32 to vector<18x32xi32>
    %82 = arith.cmpi sge, %65, %81 : vector<18x32xi32>
    %c32_i32 = arith.constant 32 : i32
    %83 = vector.broadcast %c32_i32 : i32 to vector<18x32xi32>
    %84 = arith.cmpi slt, %65, %83 : vector<18x32xi32>
    %85 = arith.andi %82, %84 : vector<18x32xi1>
    %c41 = arith.constant 41 : index
    %c0_26 = arith.constant 0 : index
    %86 = vector.load %arg1[%c41, %c0_26] : memref<56x64xf32, #tpu.memory_space<vmem>>, vector<1x32xf32>
    %c42 = arith.constant 42 : index
    %c0_27 = arith.constant 0 : index
    %87 = vector.load %arg1[%c42, %c0_27] : memref<56x64xf32, #tpu.memory_space<vmem>>, vector<1x32xf32>
    %c43 = arith.constant 43 : index
    %c0_28 = arith.constant 0 : index
    %88 = vector.load %arg1[%c43, %c0_28] : memref<56x64xf32, #tpu.memory_space<vmem>>, vector<1x32xf32>
    %c44 = arith.constant 44 : index
    %c0_29 = arith.constant 0 : index
    %89 = vector.load %arg1[%c44, %c0_29] : memref<56x64xf32, #tpu.memory_space<vmem>>, vector<1x32xf32>
    %c45 = arith.constant 45 : index
    %c0_30 = arith.constant 0 : index
    %90 = vector.load %arg1[%c45, %c0_30] : memref<56x64xf32, #tpu.memory_space<vmem>>, vector<1x32xf32>
    %c46 = arith.constant 46 : index
    %c0_31 = arith.constant 0 : index
    %91 = vector.load %arg1[%c46, %c0_31] : memref<56x64xf32, #tpu.memory_space<vmem>>, vector<1x32xf32>
    %c53 = arith.constant 53 : index
    %c0_32 = arith.constant 0 : index
    %92 = vector.load %arg1[%c53, %c0_32] : memref<56x64xf32, #tpu.memory_space<vmem>>, vector<1x64xf32>
    %cst_33 = arith.constant dense<0.000000e+00> : vector<18xf32>
    %93 = vector.multi_reduction <add>, %63, %cst_33 [1] : vector<18x32xf32> to vector<18xf32>
    %94 = vector.shape_cast %93 : vector<18xf32> to vector<18x1xf32>
    %cst_34 = arith.constant 3.200000e+01 : f32
    %95 = vector.broadcast %cst_34 : f32 to vector<18x1xf32>
    %96 = arith.divf %94, %95 : vector<18x1xf32>
    %97 = vector.broadcast %96 : vector<18x1xf32> to vector<18x32xf32>
    %98 = arith.subf %63, %97 : vector<18x32xf32>
    %99 = arith.mulf %98, %98 : vector<18x32xf32>
    %cst_35 = arith.constant dense<0.000000e+00> : vector<18xf32>
    %100 = vector.multi_reduction <add>, %99, %cst_35 [1] : vector<18x32xf32> to vector<18xf32>
    %101 = vector.shape_cast %100 : vector<18xf32> to vector<18x1xf32>
    %cst_36 = arith.constant 3.200000e+01 : f32
    %102 = vector.broadcast %cst_36 : f32 to vector<18x1xf32>
    %103 = arith.divf %101, %102 : vector<18x1xf32>
    %104 = vector.broadcast %96 : vector<18x1xf32> to vector<18x32xf32>
    %105 = arith.subf %63, %104 : vector<18x32xf32>
    %cst_37 = arith.constant 9.99999974E-6 : f32
    %106 = vector.broadcast %cst_37 : f32 to vector<18x1xf32>
    %107 = arith.addf %103, %106 : vector<18x1xf32>
    %108 = math.rsqrt %107 : vector<18x1xf32>
    %109 = vector.broadcast %108 : vector<18x1xf32> to vector<18x32xf32>
    %110 = arith.mulf %105, %109 : vector<18x32xf32>
    %111 = vector.broadcast %86 : vector<1x32xf32> to vector<18x32xf32>
    %112 = arith.mulf %110, %111 : vector<18x32xf32>
    %113 = vector.broadcast %87 : vector<1x32xf32> to vector<18x32xf32>
    %114 = arith.addf %112, %113 : vector<18x32xf32>
    %c0_38 = arith.constant 0 : index
    %c0_39 = arith.constant 0 : index
    %115 = vector.load %arg3[%c0_38, %c0_39] : memref<128x96xbf16, #tpu.memory_space<vmem>>, vector<32x96xbf16>
    %116 = arith.truncf %114 : vector<18x32xf32> to vector<18x32xbf16>
    %cst_40 = arith.constant dense<0.000000e+00> : vector<18x96xf32>
    %117 = tpu.matmul %116, %115, %cst_40 {dimension_numbers = #tpu.dot_dimension_numbers<[1], [0], [0], [1], [0, 0, 1, 1], [], []>} : vector<18x32xbf16>, vector<32x96xbf16>, vector<18x96xf32> -> vector<18x96xf32>
    %118 = vector.extract_strided_slice %117 {offsets = [0, 64], sizes = [18, 32], strides = [1, 1]} : vector<18x96xf32> to vector<18x32xf32>
    %119 = vector.extract_strided_slice %117 {offsets = [0, 0], sizes = [18, 8], strides = [1, 1]} : vector<18x96xf32> to vector<18x8xf32>
    %120 = vector.extract_strided_slice %117 {offsets = [0, 32], sizes = [18, 8], strides = [1, 1]} : vector<18x96xf32> to vector<18x8xf32>
    %121 = arith.truncf %119 : vector<18x8xf32> to vector<18x8xbf16>
    %122 = arith.truncf %120 : vector<18x8xf32> to vector<18x8xbf16>
    %cst_41 = arith.constant dense<0.000000e+00> : vector<18x18xf32>
    %123 = tpu.matmul %121, %122, %cst_41 {dimension_numbers = #tpu.dot_dimension_numbers<[1], [1], [0], [0], [0, 0, 1, 0], [], []>} : vector<18x8xbf16>, vector<18x8xbf16>, vector<18x18xf32> -> vector<18x18xf32>
    %124 = arith.addf %123, %64 : vector<18x18xf32>
    %cst_42 = arith.constant dense<0xFF800000> : vector<18xf32>
    %125 = vector.multi_reduction <maximumf>, %124, %cst_42 [1] : vector<18x18xf32> to vector<18xf32>
    %126 = vector.shape_cast %125 : vector<18xf32> to vector<18x1xf32>
    %127 = vector.broadcast %126 : vector<18x1xf32> to vector<18x18xf32>
    %128 = arith.subf %124, %127 : vector<18x18xf32>
    %129 = math.exp %128 : vector<18x18xf32>
    %cst_43 = arith.constant dense<0.000000e+00> : vector<18xf32>
    %130 = vector.multi_reduction <add>, %129, %cst_43 [1] : vector<18x18xf32> to vector<18xf32>
    %131 = vector.shape_cast %130 : vector<18xf32> to vector<18x1xf32>
    %132 = tpu.reciprocal %131 {approx = true} : vector<18x1xf32> -> vector<18x1xf32>
    %133 = vector.broadcast %132 : vector<18x1xf32> to vector<18x18xf32>
    %134 = arith.mulf %129, %133 : vector<18x18xf32>
    %cst_44 = arith.constant 0.000000e+00 : f32
    %135 = vector.broadcast %cst_44 : f32 to vector<18x32xf32>
    %136 = arith.select %70, %118, %135 : vector<18x32xi1>, vector<18x32xf32>
    %137 = arith.truncf %134 : vector<18x18xf32> to vector<18x18xbf16>
    %138 = arith.truncf %136 : vector<18x32xf32> to vector<18x32xbf16>
    %cst_45 = arith.constant dense<0.000000e+00> : vector<18x32xf32>
    %139 = tpu.matmul %137, %138, %cst_45 {dimension_numbers = #tpu.dot_dimension_numbers<[1], [0], [0], [1], [0, 0, 1, 1], [], []>} : vector<18x18xbf16>, vector<18x32xbf16>, vector<18x32xf32> -> vector<18x32xf32>
    %140 = vector.extract_strided_slice %117 {offsets = [0, 8], sizes = [18, 8], strides = [1, 1]} : vector<18x96xf32> to vector<18x8xf32>
    %141 = vector.extract_strided_slice %117 {offsets = [0, 40], sizes = [18, 8], strides = [1, 1]} : vector<18x96xf32> to vector<18x8xf32>
    %142 = arith.truncf %140 : vector<18x8xf32> to vector<18x8xbf16>
    %143 = arith.truncf %141 : vector<18x8xf32> to vector<18x8xbf16>
    %cst_46 = arith.constant dense<0.000000e+00> : vector<18x18xf32>
    %144 = tpu.matmul %142, %143, %cst_46 {dimension_numbers = #tpu.dot_dimension_numbers<[1], [1], [0], [0], [0, 0, 1, 0], [], []>} : vector<18x8xbf16>, vector<18x8xbf16>, vector<18x18xf32> -> vector<18x18xf32>
    %145 = arith.addf %144, %64 : vector<18x18xf32>
    %cst_47 = arith.constant dense<0xFF800000> : vector<18xf32>
    %146 = vector.multi_reduction <maximumf>, %145, %cst_47 [1] : vector<18x18xf32> to vector<18xf32>
    %147 = vector.shape_cast %146 : vector<18xf32> to vector<18x1xf32>
    %148 = vector.broadcast %147 : vector<18x1xf32> to vector<18x18xf32>
    %149 = arith.subf %145, %148 : vector<18x18xf32>
    %150 = math.exp %149 : vector<18x18xf32>
    %cst_48 = arith.constant dense<0.000000e+00> : vector<18xf32>
    %151 = vector.multi_reduction <add>, %150, %cst_48 [1] : vector<18x18xf32> to vector<18xf32>
    %152 = vector.shape_cast %151 : vector<18xf32> to vector<18x1xf32>
    %153 = tpu.reciprocal %152 {approx = true} : vector<18x1xf32> -> vector<18x1xf32>
    %154 = vector.broadcast %153 : vector<18x1xf32> to vector<18x18xf32>
    %155 = arith.mulf %150, %154 : vector<18x18xf32>
    %cst_49 = arith.constant 0.000000e+00 : f32
    %156 = vector.broadcast %cst_49 : f32 to vector<18x32xf32>
    %157 = arith.select %75, %118, %156 : vector<18x32xi1>, vector<18x32xf32>
    %158 = arith.truncf %155 : vector<18x18xf32> to vector<18x18xbf16>
    %159 = arith.truncf %157 : vector<18x32xf32> to vector<18x32xbf16>
    %cst_50 = arith.constant dense<0.000000e+00> : vector<18x32xf32>
    %160 = tpu.matmul %158, %159, %cst_50 {dimension_numbers = #tpu.dot_dimension_numbers<[1], [0], [0], [1], [0, 0, 1, 1], [], []>} : vector<18x18xbf16>, vector<18x32xbf16>, vector<18x32xf32> -> vector<18x32xf32>
    %161 = arith.addf %139, %160 : vector<18x32xf32>
    %162 = vector.extract_strided_slice %117 {offsets = [0, 16], sizes = [18, 8], strides = [1, 1]} : vector<18x96xf32> to vector<18x8xf32>
    %163 = vector.extract_strided_slice %117 {offsets = [0, 48], sizes = [18, 8], strides = [1, 1]} : vector<18x96xf32> to vector<18x8xf32>
    %164 = arith.truncf %162 : vector<18x8xf32> to vector<18x8xbf16>
    %165 = arith.truncf %163 : vector<18x8xf32> to vector<18x8xbf16>
    %cst_51 = arith.constant dense<0.000000e+00> : vector<18x18xf32>
    %166 = tpu.matmul %164, %165, %cst_51 {dimension_numbers = #tpu.dot_dimension_numbers<[1], [1], [0], [0], [0, 0, 1, 0], [], []>} : vector<18x8xbf16>, vector<18x8xbf16>, vector<18x18xf32> -> vector<18x18xf32>
    %167 = arith.addf %166, %64 : vector<18x18xf32>
    %cst_52 = arith.constant dense<0xFF800000> : vector<18xf32>
    %168 = vector.multi_reduction <maximumf>, %167, %cst_52 [1] : vector<18x18xf32> to vector<18xf32>
    %169 = vector.shape_cast %168 : vector<18xf32> to vector<18x1xf32>
    %170 = vector.broadcast %169 : vector<18x1xf32> to vector<18x18xf32>
    %171 = arith.subf %167, %170 : vector<18x18xf32>
    %172 = math.exp %171 : vector<18x18xf32>
    %cst_53 = arith.constant dense<0.000000e+00> : vector<18xf32>
    %173 = vector.multi_reduction <add>, %172, %cst_53 [1] : vector<18x18xf32> to vector<18xf32>
    %174 = vector.shape_cast %173 : vector<18xf32> to vector<18x1xf32>
    %175 = tpu.reciprocal %174 {approx = true} : vector<18x1xf32> -> vector<18x1xf32>
    %176 = vector.broadcast %175 : vector<18x1xf32> to vector<18x18xf32>
    %177 = arith.mulf %172, %176 : vector<18x18xf32>
    %cst_54 = arith.constant 0.000000e+00 : f32
    %178 = vector.broadcast %cst_54 : f32 to vector<18x32xf32>
    %179 = arith.select %80, %118, %178 : vector<18x32xi1>, vector<18x32xf32>
    %180 = arith.truncf %177 : vector<18x18xf32> to vector<18x18xbf16>
    %181 = arith.truncf %179 : vector<18x32xf32> to vector<18x32xbf16>
    %cst_55 = arith.constant dense<0.000000e+00> : vector<18x32xf32>
    %182 = tpu.matmul %180, %181, %cst_55 {dimension_numbers = #tpu.dot_dimension_numbers<[1], [0], [0], [1], [0, 0, 1, 1], [], []>} : vector<18x18xbf16>, vector<18x32xbf16>, vector<18x32xf32> -> vector<18x32xf32>
    %183 = arith.addf %161, %182 : vector<18x32xf32>
    %184 = vector.extract_strided_slice %117 {offsets = [0, 24], sizes = [18, 8], strides = [1, 1]} : vector<18x96xf32> to vector<18x8xf32>
    %185 = vector.extract_strided_slice %117 {offsets = [0, 56], sizes = [18, 8], strides = [1, 1]} : vector<18x96xf32> to vector<18x8xf32>
    %186 = arith.truncf %184 : vector<18x8xf32> to vector<18x8xbf16>
    %187 = arith.truncf %185 : vector<18x8xf32> to vector<18x8xbf16>
    %cst_56 = arith.constant dense<0.000000e+00> : vector<18x18xf32>
    %188 = tpu.matmul %186, %187, %cst_56 {dimension_numbers = #tpu.dot_dimension_numbers<[1], [1], [0], [0], [0, 0, 1, 0], [], []>} : vector<18x8xbf16>, vector<18x8xbf16>, vector<18x18xf32> -> vector<18x18xf32>
    %189 = arith.addf %188, %64 : vector<18x18xf32>
    %cst_57 = arith.constant dense<0xFF800000> : vector<18xf32>
    %190 = vector.multi_reduction <maximumf>, %189, %cst_57 [1] : vector<18x18xf32> to vector<18xf32>
    %191 = vector.shape_cast %190 : vector<18xf32> to vector<18x1xf32>
    %192 = vector.broadcast %191 : vector<18x1xf32> to vector<18x18xf32>
    %193 = arith.subf %189, %192 : vector<18x18xf32>
    %194 = math.exp %193 : vector<18x18xf32>
    %cst_58 = arith.constant dense<0.000000e+00> : vector<18xf32>
    %195 = vector.multi_reduction <add>, %194, %cst_58 [1] : vector<18x18xf32> to vector<18xf32>
    %196 = vector.shape_cast %195 : vector<18xf32> to vector<18x1xf32>
    %197 = tpu.reciprocal %196 {approx = true} : vector<18x1xf32> -> vector<18x1xf32>
    %198 = vector.broadcast %197 : vector<18x1xf32> to vector<18x18xf32>
    %199 = arith.mulf %194, %198 : vector<18x18xf32>
    %cst_59 = arith.constant 0.000000e+00 : f32
    %200 = vector.broadcast %cst_59 : f32 to vector<18x32xf32>
    %201 = arith.select %85, %118, %200 : vector<18x32xi1>, vector<18x32xf32>
    %202 = arith.truncf %199 : vector<18x18xf32> to vector<18x18xbf16>
    %203 = arith.truncf %201 : vector<18x32xf32> to vector<18x32xbf16>
    %cst_60 = arith.constant dense<0.000000e+00> : vector<18x32xf32>
    %204 = tpu.matmul %202, %203, %cst_60 {dimension_numbers = #tpu.dot_dimension_numbers<[1], [0], [0], [1], [0, 0, 1, 1], [], []>} : vector<18x18xbf16>, vector<18x32xbf16>, vector<18x32xf32> -> vector<18x32xf32>
    %205 = arith.addf %183, %204 : vector<18x32xf32>
    %c384 = arith.constant 384 : index
    %c0_61 = arith.constant 0 : index
    %206 = vector.load %arg2[%c384, %c0_61] : memref<608x32xbf16, #tpu.memory_space<vmem>>, vector<32x32xbf16>
    %207 = arith.truncf %205 : vector<18x32xf32> to vector<18x32xbf16>
    %cst_62 = arith.constant dense<0.000000e+00> : vector<18x32xf32>
    %208 = tpu.matmul %207, %206, %cst_62 {dimension_numbers = #tpu.dot_dimension_numbers<[1], [0], [0], [1], [0, 0, 1, 1], [], []>} : vector<18x32xbf16>, vector<32x32xbf16>, vector<18x32xf32> -> vector<18x32xf32>
    %209 = vector.broadcast %88 : vector<1x32xf32> to vector<18x32xf32>
    %210 = arith.addf %208, %209 : vector<18x32xf32>
    %211 = arith.addf %210, %114 : vector<18x32xf32>
    %212 = arith.addf %211, %63 : vector<18x32xf32>
    %cst_63 = arith.constant dense<0.000000e+00> : vector<18xf32>
    %213 = vector.multi_reduction <add>, %212, %cst_63 [1] : vector<18x32xf32> to vector<18xf32>
    %214 = vector.shape_cast %213 : vector<18xf32> to vector<18x1xf32>
    %cst_64 = arith.constant 3.200000e+01 : f32
    %215 = vector.broadcast %cst_64 : f32 to vector<18x1xf32>
    %216 = arith.divf %214, %215 : vector<18x1xf32>
    %217 = vector.broadcast %216 : vector<18x1xf32> to vector<18x32xf32>
    %218 = arith.subf %212, %217 : vector<18x32xf32>
    %219 = arith.mulf %218, %218 : vector<18x32xf32>
    %cst_65 = arith.constant dense<0.000000e+00> : vector<18xf32>
    %220 = vector.multi_reduction <add>, %219, %cst_65 [1] : vector<18x32xf32> to vector<18xf32>
    %221 = vector.shape_cast %220 : vector<18xf32> to vector<18x1xf32>
    %cst_66 = arith.constant 3.200000e+01 : f32
    %222 = vector.broadcast %cst_66 : f32 to vector<18x1xf32>
    %223 = arith.divf %221, %222 : vector<18x1xf32>
    %224 = vector.broadcast %216 : vector<18x1xf32> to vector<18x32xf32>
    %225 = arith.subf %212, %224 : vector<18x32xf32>
    %cst_67 = arith.constant 9.99999974E-6 : f32
    %226 = vector.broadcast %cst_67 : f32 to vector<18x1xf32>
    %227 = arith.addf %223, %226 : vector<18x1xf32>
    %228 = math.rsqrt %227 : vector<18x1xf32>
    %229 = vector.broadcast %228 : vector<18x1xf32> to vector<18x32xf32>
    %230 = arith.mulf %225, %229 : vector<18x32xf32>
    %231 = vector.broadcast %89 : vector<1x32xf32> to vector<18x32xf32>
    %232 = arith.mulf %230, %231 : vector<18x32xf32>
    %233 = vector.broadcast %90 : vector<1x32xf32> to vector<18x32xf32>
    %234 = arith.addf %232, %233 : vector<18x32xf32>
    %c64 = arith.constant 64 : index
    %c0_68 = arith.constant 0 : index
    %235 = vector.load %arg3[%c64, %c0_68] : memref<128x96xbf16, #tpu.memory_space<vmem>>, vector<32x64xbf16>
    %236 = arith.truncf %234 : vector<18x32xf32> to vector<18x32xbf16>
    %cst_69 = arith.constant dense<0.000000e+00> : vector<18x64xf32>
    %237 = tpu.matmul %236, %235, %cst_69 {dimension_numbers = #tpu.dot_dimension_numbers<[1], [0], [0], [1], [0, 0, 1, 1], [], []>} : vector<18x32xbf16>, vector<32x64xbf16>, vector<18x64xf32> -> vector<18x64xf32>
    %238 = vector.broadcast %92 : vector<1x64xf32> to vector<18x64xf32>
    %239 = arith.addf %237, %238 : vector<18x64xf32>
    %cst_70 = arith.constant 5.000000e-01 : f32
    %240 = vector.broadcast %cst_70 : f32 to vector<18x64xf32>
    %241 = arith.mulf %240, %239 : vector<18x64xf32>
    %cst_71 = arith.constant 0.707106769 : f32
    %242 = vector.broadcast %cst_71 : f32 to vector<18x64xf32>
    %243 = arith.mulf %239, %242 : vector<18x64xf32>
    %cst_72 = arith.constant 0.000000e+00 : f32
    %244 = vector.broadcast %cst_72 : f32 to vector<18x64xf32>
    %245 = arith.cmpf oge, %243, %244 : vector<18x64xf32>
    %cst_73 = arith.constant 1.000000e+00 : f32
    %cst_74 = arith.constant -1.000000e+00 : f32
    %246 = vector.broadcast %cst_73 : f32 to vector<18x64xf32>
    %247 = vector.broadcast %cst_74 : f32 to vector<18x64xf32>
    %248 = arith.select %245, %246, %247 : vector<18x64xi1>, vector<18x64xf32>
    %249 = math.absf %243 : vector<18x64xf32>
    %cst_75 = arith.constant 0.327591091 : f32
    %250 = vector.broadcast %cst_75 : f32 to vector<18x64xf32>
    %251 = arith.mulf %250, %249 : vector<18x64xf32>
    %cst_76 = arith.constant 1.000000e+00 : f32
    %252 = vector.broadcast %cst_76 : f32 to vector<18x64xf32>
    %253 = arith.addf %252, %251 : vector<18x64xf32>
    %254 = tpu.reciprocal %253 {approx = true} : vector<18x64xf32> -> vector<18x64xf32>
    %cst_77 = arith.constant 1.06140542 : f32
    %255 = vector.broadcast %cst_77 : f32 to vector<18x64xf32>
    %256 = arith.mulf %255, %254 : vector<18x64xf32>
    %cst_78 = arith.constant -1.45315206 : f32
    %257 = vector.broadcast %cst_78 : f32 to vector<18x64xf32>
    %258 = arith.addf %256, %257 : vector<18x64xf32>
    %259 = arith.mulf %258, %254 : vector<18x64xf32>
    %cst_79 = arith.constant 1.42141378 : f32
    %260 = vector.broadcast %cst_79 : f32 to vector<18x64xf32>
    %261 = arith.addf %259, %260 : vector<18x64xf32>
    %262 = arith.mulf %261, %254 : vector<18x64xf32>
    %cst_80 = arith.constant -0.284496725 : f32
    %263 = vector.broadcast %cst_80 : f32 to vector<18x64xf32>
    %264 = arith.addf %262, %263 : vector<18x64xf32>
    %265 = arith.mulf %264, %254 : vector<18x64xf32>
    %cst_81 = arith.constant 0.254829586 : f32
    %266 = vector.broadcast %cst_81 : f32 to vector<18x64xf32>
    %267 = arith.addf %265, %266 : vector<18x64xf32>
    %268 = arith.mulf %267, %254 : vector<18x64xf32>
    %cst_82 = arith.constant 0.000000e+00 : f32
    %269 = vector.broadcast %cst_82 : f32 to vector<18x64xf32>
    %270 = arith.subf %269, %249 : vector<18x64xf32>
    %271 = arith.mulf %270, %249 : vector<18x64xf32>
    %272 = math.exp %271 : vector<18x64xf32>
    %273 = arith.mulf %268, %272 : vector<18x64xf32>
    %cst_83 = arith.constant 1.000000e+00 : f32
    %274 = vector.broadcast %cst_83 : f32 to vector<18x64xf32>
    %275 = arith.subf %274, %273 : vector<18x64xf32>
    %276 = arith.mulf %248, %275 : vector<18x64xf32>
    %cst_84 = arith.constant 1.000000e+00 : f32
    %277 = vector.broadcast %cst_84 : f32 to vector<18x64xf32>
    %278 = arith.addf %277, %276 : vector<18x64xf32>
    %279 = arith.mulf %241, %278 : vector<18x64xf32>
    %c448 = arith.constant 448 : index
    %c0_85 = arith.constant 0 : index
    %280 = vector.load %arg2[%c448, %c0_85] : memref<608x32xbf16, #tpu.memory_space<vmem>>, vector<64x32xbf16>
    %281 = arith.truncf %279 : vector<18x64xf32> to vector<18x64xbf16>
    %cst_86 = arith.constant dense<0.000000e+00> : vector<18x32xf32>
    %282 = tpu.matmul %281, %280, %cst_86 {dimension_numbers = #tpu.dot_dimension_numbers<[1], [0], [0], [1], [0, 0, 1, 1], [], []>} : vector<18x64xbf16>, vector<64x32xbf16>, vector<18x32xf32> -> vector<18x32xf32>
    %283 = vector.broadcast %91 : vector<1x32xf32> to vector<18x32xf32>
    %284 = arith.addf %282, %283 : vector<18x32xf32>
    %285 = arith.addf %284, %212 : vector<18x32xf32>
    %c47 = arith.constant 47 : index
    %c0_87 = arith.constant 0 : index
    %286 = vector.load %arg1[%c47, %c0_87] : memref<56x64xf32, #tpu.memory_space<vmem>>, vector<1x32xf32>
    %c48 = arith.constant 48 : index
    %c0_88 = arith.constant 0 : index
    %287 = vector.load %arg1[%c48, %c0_88] : memref<56x64xf32, #tpu.memory_space<vmem>>, vector<1x32xf32>
    %c49 = arith.constant 49 : index
    %c0_89 = arith.constant 0 : index
    %288 = vector.load %arg1[%c49, %c0_89] : memref<56x64xf32, #tpu.memory_space<vmem>>, vector<1x32xf32>
    %c50 = arith.constant 50 : index
    %c0_90 = arith.constant 0 : index
    %289 = vector.load %arg1[%c50, %c0_90] : memref<56x64xf32, #tpu.memory_space<vmem>>, vector<1x32xf32>
    %c51 = arith.constant 51 : index
    %c0_91 = arith.constant 0 : index
    %290 = vector.load %arg1[%c51, %c0_91] : memref<56x64xf32, #tpu.memory_space<vmem>>, vector<1x32xf32>
    %c52 = arith.constant 52 : index
    %c0_92 = arith.constant 0 : index
    %291 = vector.load %arg1[%c52, %c0_92] : memref<56x64xf32, #tpu.memory_space<vmem>>, vector<1x32xf32>
    %c54 = arith.constant 54 : index
    %c0_93 = arith.constant 0 : index
    %292 = vector.load %arg1[%c54, %c0_93] : memref<56x64xf32, #tpu.memory_space<vmem>>, vector<1x64xf32>
    %cst_94 = arith.constant dense<0.000000e+00> : vector<18xf32>
    %293 = vector.multi_reduction <add>, %285, %cst_94 [1] : vector<18x32xf32> to vector<18xf32>
    %294 = vector.shape_cast %293 : vector<18xf32> to vector<18x1xf32>
    %cst_95 = arith.constant 3.200000e+01 : f32
    %295 = vector.broadcast %cst_95 : f32 to vector<18x1xf32>
    %296 = arith.divf %294, %295 : vector<18x1xf32>
    %297 = vector.broadcast %296 : vector<18x1xf32> to vector<18x32xf32>
    %298 = arith.subf %285, %297 : vector<18x32xf32>
    %299 = arith.mulf %298, %298 : vector<18x32xf32>
    %cst_96 = arith.constant dense<0.000000e+00> : vector<18xf32>
    %300 = vector.multi_reduction <add>, %299, %cst_96 [1] : vector<18x32xf32> to vector<18xf32>
    %301 = vector.shape_cast %300 : vector<18xf32> to vector<18x1xf32>
    %cst_97 = arith.constant 3.200000e+01 : f32
    %302 = vector.broadcast %cst_97 : f32 to vector<18x1xf32>
    %303 = arith.divf %301, %302 : vector<18x1xf32>
    %304 = vector.broadcast %296 : vector<18x1xf32> to vector<18x32xf32>
    %305 = arith.subf %285, %304 : vector<18x32xf32>
    %cst_98 = arith.constant 9.99999974E-6 : f32
    %306 = vector.broadcast %cst_98 : f32 to vector<18x1xf32>
    %307 = arith.addf %303, %306 : vector<18x1xf32>
    %308 = math.rsqrt %307 : vector<18x1xf32>
    %309 = vector.broadcast %308 : vector<18x1xf32> to vector<18x32xf32>
    %310 = arith.mulf %305, %309 : vector<18x32xf32>
    %311 = vector.broadcast %286 : vector<1x32xf32> to vector<18x32xf32>
    %312 = arith.mulf %310, %311 : vector<18x32xf32>
    %313 = vector.broadcast %287 : vector<1x32xf32> to vector<18x32xf32>
    %314 = arith.addf %312, %313 : vector<18x32xf32>
    %c32 = arith.constant 32 : index
    %c0_99 = arith.constant 0 : index
    %315 = vector.load %arg3[%c32, %c0_99] : memref<128x96xbf16, #tpu.memory_space<vmem>>, vector<32x96xbf16>
    %316 = arith.truncf %314 : vector<18x32xf32> to vector<18x32xbf16>
    %cst_100 = arith.constant dense<0.000000e+00> : vector<18x96xf32>
    %317 = tpu.matmul %316, %315, %cst_100 {dimension_numbers = #tpu.dot_dimension_numbers<[1], [0], [0], [1], [0, 0, 1, 1], [], []>} : vector<18x32xbf16>, vector<32x96xbf16>, vector<18x96xf32> -> vector<18x96xf32>
    %318 = vector.extract_strided_slice %317 {offsets = [0, 64], sizes = [18, 32], strides = [1, 1]} : vector<18x96xf32> to vector<18x32xf32>
    %319 = vector.extract_strided_slice %317 {offsets = [0, 0], sizes = [18, 8], strides = [1, 1]} : vector<18x96xf32> to vector<18x8xf32>
    %320 = vector.extract_strided_slice %317 {offsets = [0, 32], sizes = [18, 8], strides = [1, 1]} : vector<18x96xf32> to vector<18x8xf32>
    %321 = arith.truncf %319 : vector<18x8xf32> to vector<18x8xbf16>
    %322 = arith.truncf %320 : vector<18x8xf32> to vector<18x8xbf16>
    %cst_101 = arith.constant dense<0.000000e+00> : vector<18x18xf32>
    %323 = tpu.matmul %321, %322, %cst_101 {dimension_numbers = #tpu.dot_dimension_numbers<[1], [1], [0], [0], [0, 0, 1, 0], [], []>} : vector<18x8xbf16>, vector<18x8xbf16>, vector<18x18xf32> -> vector<18x18xf32>
    %324 = arith.addf %323, %64 : vector<18x18xf32>
    %cst_102 = arith.constant dense<0xFF800000> : vector<18xf32>
    %325 = vector.multi_reduction <maximumf>, %324, %cst_102 [1] : vector<18x18xf32> to vector<18xf32>
    %326 = vector.shape_cast %325 : vector<18xf32> to vector<18x1xf32>
    %327 = vector.broadcast %326 : vector<18x1xf32> to vector<18x18xf32>
    %328 = arith.subf %324, %327 : vector<18x18xf32>
    %329 = math.exp %328 : vector<18x18xf32>
    %cst_103 = arith.constant dense<0.000000e+00> : vector<18xf32>
    %330 = vector.multi_reduction <add>, %329, %cst_103 [1] : vector<18x18xf32> to vector<18xf32>
    %331 = vector.shape_cast %330 : vector<18xf32> to vector<18x1xf32>
    %332 = tpu.reciprocal %331 {approx = true} : vector<18x1xf32> -> vector<18x1xf32>
    %333 = vector.broadcast %332 : vector<18x1xf32> to vector<18x18xf32>
    %334 = arith.mulf %329, %333 : vector<18x18xf32>
    %cst_104 = arith.constant 0.000000e+00 : f32
    %335 = vector.broadcast %cst_104 : f32 to vector<18x32xf32>
    %336 = arith.select %70, %318, %335 : vector<18x32xi1>, vector<18x32xf32>
    %337 = arith.truncf %334 : vector<18x18xf32> to vector<18x18xbf16>
    %338 = arith.truncf %336 : vector<18x32xf32> to vector<18x32xbf16>
    %cst_105 = arith.constant dense<0.000000e+00> : vector<18x32xf32>
    %339 = tpu.matmul %337, %338, %cst_105 {dimension_numbers = #tpu.dot_dimension_numbers<[1], [0], [0], [1], [0, 0, 1, 1], [], []>} : vector<18x18xbf16>, vector<18x32xbf16>, vector<18x32xf32> -> vector<18x32xf32>
    %340 = vector.extract_strided_slice %317 {offsets = [0, 8], sizes = [18, 8], strides = [1, 1]} : vector<18x96xf32> to vector<18x8xf32>
    %341 = vector.extract_strided_slice %317 {offsets = [0, 40], sizes = [18, 8], strides = [1, 1]} : vector<18x96xf32> to vector<18x8xf32>
    %342 = arith.truncf %340 : vector<18x8xf32> to vector<18x8xbf16>
    %343 = arith.truncf %341 : vector<18x8xf32> to vector<18x8xbf16>
    %cst_106 = arith.constant dense<0.000000e+00> : vector<18x18xf32>
    %344 = tpu.matmul %342, %343, %cst_106 {dimension_numbers = #tpu.dot_dimension_numbers<[1], [1], [0], [0], [0, 0, 1, 0], [], []>} : vector<18x8xbf16>, vector<18x8xbf16>, vector<18x18xf32> -> vector<18x18xf32>
    %345 = arith.addf %344, %64 : vector<18x18xf32>
    %cst_107 = arith.constant dense<0xFF800000> : vector<18xf32>
    %346 = vector.multi_reduction <maximumf>, %345, %cst_107 [1] : vector<18x18xf32> to vector<18xf32>
    %347 = vector.shape_cast %346 : vector<18xf32> to vector<18x1xf32>
    %348 = vector.broadcast %347 : vector<18x1xf32> to vector<18x18xf32>
    %349 = arith.subf %345, %348 : vector<18x18xf32>
    %350 = math.exp %349 : vector<18x18xf32>
    %cst_108 = arith.constant dense<0.000000e+00> : vector<18xf32>
    %351 = vector.multi_reduction <add>, %350, %cst_108 [1] : vector<18x18xf32> to vector<18xf32>
    %352 = vector.shape_cast %351 : vector<18xf32> to vector<18x1xf32>
    %353 = tpu.reciprocal %352 {approx = true} : vector<18x1xf32> -> vector<18x1xf32>
    %354 = vector.broadcast %353 : vector<18x1xf32> to vector<18x18xf32>
    %355 = arith.mulf %350, %354 : vector<18x18xf32>
    %cst_109 = arith.constant 0.000000e+00 : f32
    %356 = vector.broadcast %cst_109 : f32 to vector<18x32xf32>
    %357 = arith.select %75, %318, %356 : vector<18x32xi1>, vector<18x32xf32>
    %358 = arith.truncf %355 : vector<18x18xf32> to vector<18x18xbf16>
    %359 = arith.truncf %357 : vector<18x32xf32> to vector<18x32xbf16>
    %cst_110 = arith.constant dense<0.000000e+00> : vector<18x32xf32>
    %360 = tpu.matmul %358, %359, %cst_110 {dimension_numbers = #tpu.dot_dimension_numbers<[1], [0], [0], [1], [0, 0, 1, 1], [], []>} : vector<18x18xbf16>, vector<18x32xbf16>, vector<18x32xf32> -> vector<18x32xf32>
    %361 = arith.addf %339, %360 : vector<18x32xf32>
    %362 = vector.extract_strided_slice %317 {offsets = [0, 16], sizes = [18, 8], strides = [1, 1]} : vector<18x96xf32> to vector<18x8xf32>
    %363 = vector.extract_strided_slice %317 {offsets = [0, 48], sizes = [18, 8], strides = [1, 1]} : vector<18x96xf32> to vector<18x8xf32>
    %364 = arith.truncf %362 : vector<18x8xf32> to vector<18x8xbf16>
    %365 = arith.truncf %363 : vector<18x8xf32> to vector<18x8xbf16>
    %cst_111 = arith.constant dense<0.000000e+00> : vector<18x18xf32>
    %366 = tpu.matmul %364, %365, %cst_111 {dimension_numbers = #tpu.dot_dimension_numbers<[1], [1], [0], [0], [0, 0, 1, 0], [], []>} : vector<18x8xbf16>, vector<18x8xbf16>, vector<18x18xf32> -> vector<18x18xf32>
    %367 = arith.addf %366, %64 : vector<18x18xf32>
    %cst_112 = arith.constant dense<0xFF800000> : vector<18xf32>
    %368 = vector.multi_reduction <maximumf>, %367, %cst_112 [1] : vector<18x18xf32> to vector<18xf32>
    %369 = vector.shape_cast %368 : vector<18xf32> to vector<18x1xf32>
    %370 = vector.broadcast %369 : vector<18x1xf32> to vector<18x18xf32>
    %371 = arith.subf %367, %370 : vector<18x18xf32>
    %372 = math.exp %371 : vector<18x18xf32>
    %cst_113 = arith.constant dense<0.000000e+00> : vector<18xf32>
    %373 = vector.multi_reduction <add>, %372, %cst_113 [1] : vector<18x18xf32> to vector<18xf32>
    %374 = vector.shape_cast %373 : vector<18xf32> to vector<18x1xf32>
    %375 = tpu.reciprocal %374 {approx = true} : vector<18x1xf32> -> vector<18x1xf32>
    %376 = vector.broadcast %375 : vector<18x1xf32> to vector<18x18xf32>
    %377 = arith.mulf %372, %376 : vector<18x18xf32>
    %cst_114 = arith.constant 0.000000e+00 : f32
    %378 = vector.broadcast %cst_114 : f32 to vector<18x32xf32>
    %379 = arith.select %80, %318, %378 : vector<18x32xi1>, vector<18x32xf32>
    %380 = arith.truncf %377 : vector<18x18xf32> to vector<18x18xbf16>
    %381 = arith.truncf %379 : vector<18x32xf32> to vector<18x32xbf16>
    %cst_115 = arith.constant dense<0.000000e+00> : vector<18x32xf32>
    %382 = tpu.matmul %380, %381, %cst_115 {dimension_numbers = #tpu.dot_dimension_numbers<[1], [0], [0], [1], [0, 0, 1, 1], [], []>} : vector<18x18xbf16>, vector<18x32xbf16>, vector<18x32xf32> -> vector<18x32xf32>
    %383 = arith.addf %361, %382 : vector<18x32xf32>
    %384 = vector.extract_strided_slice %317 {offsets = [0, 24], sizes = [18, 8], strides = [1, 1]} : vector<18x96xf32> to vector<18x8xf32>
    %385 = vector.extract_strided_slice %317 {offsets = [0, 56], sizes = [18, 8], strides = [1, 1]} : vector<18x96xf32> to vector<18x8xf32>
    %386 = arith.truncf %384 : vector<18x8xf32> to vector<18x8xbf16>
    %387 = arith.truncf %385 : vector<18x8xf32> to vector<18x8xbf16>
    %cst_116 = arith.constant dense<0.000000e+00> : vector<18x18xf32>
    %388 = tpu.matmul %386, %387, %cst_116 {dimension_numbers = #tpu.dot_dimension_numbers<[1], [1], [0], [0], [0, 0, 1, 0], [], []>} : vector<18x8xbf16>, vector<18x8xbf16>, vector<18x18xf32> -> vector<18x18xf32>
    %389 = arith.addf %388, %64 : vector<18x18xf32>
    %cst_117 = arith.constant dense<0xFF800000> : vector<18xf32>
    %390 = vector.multi_reduction <maximumf>, %389, %cst_117 [1] : vector<18x18xf32> to vector<18xf32>
    %391 = vector.shape_cast %390 : vector<18xf32> to vector<18x1xf32>
    %392 = vector.broadcast %391 : vector<18x1xf32> to vector<18x18xf32>
    %393 = arith.subf %389, %392 : vector<18x18xf32>
    %394 = math.exp %393 : vector<18x18xf32>
    %cst_118 = arith.constant dense<0.000000e+00> : vector<18xf32>
    %395 = vector.multi_reduction <add>, %394, %cst_118 [1] : vector<18x18xf32> to vector<18xf32>
    %396 = vector.shape_cast %395 : vector<18xf32> to vector<18x1xf32>
    %397 = tpu.reciprocal %396 {approx = true} : vector<18x1xf32> -> vector<18x1xf32>
    %398 = vector.broadcast %397 : vector<18x1xf32> to vector<18x18xf32>
    %399 = arith.mulf %394, %398 : vector<18x18xf32>
    %cst_119 = arith.constant 0.000000e+00 : f32
    %400 = vector.broadcast %cst_119 : f32 to vector<18x32xf32>
    %401 = arith.select %85, %318, %400 : vector<18x32xi1>, vector<18x32xf32>
    %402 = arith.truncf %399 : vector<18x18xf32> to vector<18x18xbf16>
    %403 = arith.truncf %401 : vector<18x32xf32> to vector<18x32xbf16>
    %cst_120 = arith.constant dense<0.000000e+00> : vector<18x32xf32>
    %404 = tpu.matmul %402, %403, %cst_120 {dimension_numbers = #tpu.dot_dimension_numbers<[1], [0], [0], [1], [0, 0, 1, 1], [], []>} : vector<18x18xbf16>, vector<18x32xbf16>, vector<18x32xf32> -> vector<18x32xf32>
    %405 = arith.addf %383, %404 : vector<18x32xf32>
    %c416 = arith.constant 416 : index
    %c0_121 = arith.constant 0 : index
    %406 = vector.load %arg2[%c416, %c0_121] : memref<608x32xbf16, #tpu.memory_space<vmem>>, vector<32x32xbf16>
    %407 = arith.truncf %405 : vector<18x32xf32> to vector<18x32xbf16>
    %cst_122 = arith.constant dense<0.000000e+00> : vector<18x32xf32>
    %408 = tpu.matmul %407, %406, %cst_122 {dimension_numbers = #tpu.dot_dimension_numbers<[1], [0], [0], [1], [0, 0, 1, 1], [], []>} : vector<18x32xbf16>, vector<32x32xbf16>, vector<18x32xf32> -> vector<18x32xf32>
    %409 = vector.broadcast %288 : vector<1x32xf32> to vector<18x32xf32>
    %410 = arith.addf %408, %409 : vector<18x32xf32>
    %411 = arith.addf %410, %314 : vector<18x32xf32>
    %412 = arith.addf %411, %285 : vector<18x32xf32>
    %cst_123 = arith.constant dense<0.000000e+00> : vector<18xf32>
    %413 = vector.multi_reduction <add>, %412, %cst_123 [1] : vector<18x32xf32> to vector<18xf32>
    %414 = vector.shape_cast %413 : vector<18xf32> to vector<18x1xf32>
    %cst_124 = arith.constant 3.200000e+01 : f32
    %415 = vector.broadcast %cst_124 : f32 to vector<18x1xf32>
    %416 = arith.divf %414, %415 : vector<18x1xf32>
    %417 = vector.broadcast %416 : vector<18x1xf32> to vector<18x32xf32>
    %418 = arith.subf %412, %417 : vector<18x32xf32>
    %419 = arith.mulf %418, %418 : vector<18x32xf32>
    %cst_125 = arith.constant dense<0.000000e+00> : vector<18xf32>
    %420 = vector.multi_reduction <add>, %419, %cst_125 [1] : vector<18x32xf32> to vector<18xf32>
    %421 = vector.shape_cast %420 : vector<18xf32> to vector<18x1xf32>
    %cst_126 = arith.constant 3.200000e+01 : f32
    %422 = vector.broadcast %cst_126 : f32 to vector<18x1xf32>
    %423 = arith.divf %421, %422 : vector<18x1xf32>
    %424 = vector.broadcast %416 : vector<18x1xf32> to vector<18x32xf32>
    %425 = arith.subf %412, %424 : vector<18x32xf32>
    %cst_127 = arith.constant 9.99999974E-6 : f32
    %426 = vector.broadcast %cst_127 : f32 to vector<18x1xf32>
    %427 = arith.addf %423, %426 : vector<18x1xf32>
    %428 = math.rsqrt %427 : vector<18x1xf32>
    %429 = vector.broadcast %428 : vector<18x1xf32> to vector<18x32xf32>
    %430 = arith.mulf %425, %429 : vector<18x32xf32>
    %431 = vector.broadcast %289 : vector<1x32xf32> to vector<18x32xf32>
    %432 = arith.mulf %430, %431 : vector<18x32xf32>
    %433 = vector.broadcast %290 : vector<1x32xf32> to vector<18x32xf32>
    %434 = arith.addf %432, %433 : vector<18x32xf32>
    %c96 = arith.constant 96 : index
    %c0_128 = arith.constant 0 : index
    %435 = vector.load %arg3[%c96, %c0_128] : memref<128x96xbf16, #tpu.memory_space<vmem>>, vector<32x64xbf16>
    %436 = arith.truncf %434 : vector<18x32xf32> to vector<18x32xbf16>
    %cst_129 = arith.constant dense<0.000000e+00> : vector<18x64xf32>
    %437 = tpu.matmul %436, %435, %cst_129 {dimension_numbers = #tpu.dot_dimension_numbers<[1], [0], [0], [1], [0, 0, 1, 1], [], []>} : vector<18x32xbf16>, vector<32x64xbf16>, vector<18x64xf32> -> vector<18x64xf32>
    %438 = vector.broadcast %292 : vector<1x64xf32> to vector<18x64xf32>
    %439 = arith.addf %437, %438 : vector<18x64xf32>
    %cst_130 = arith.constant 5.000000e-01 : f32
    %440 = vector.broadcast %cst_130 : f32 to vector<18x64xf32>
    %441 = arith.mulf %440, %439 : vector<18x64xf32>
    %cst_131 = arith.constant 0.707106769 : f32
    %442 = vector.broadcast %cst_131 : f32 to vector<18x64xf32>
    %443 = arith.mulf %439, %442 : vector<18x64xf32>
    %cst_132 = arith.constant 0.000000e+00 : f32
    %444 = vector.broadcast %cst_132 : f32 to vector<18x64xf32>
    %445 = arith.cmpf oge, %443, %444 : vector<18x64xf32>
    %cst_133 = arith.constant 1.000000e+00 : f32
    %cst_134 = arith.constant -1.000000e+00 : f32
    %446 = vector.broadcast %cst_133 : f32 to vector<18x64xf32>
    %447 = vector.broadcast %cst_134 : f32 to vector<18x64xf32>
    %448 = arith.select %445, %446, %447 : vector<18x64xi1>, vector<18x64xf32>
    %449 = math.absf %443 : vector<18x64xf32>
    %cst_135 = arith.constant 0.327591091 : f32
    %450 = vector.broadcast %cst_135 : f32 to vector<18x64xf32>
    %451 = arith.mulf %450, %449 : vector<18x64xf32>
    %cst_136 = arith.constant 1.000000e+00 : f32
    %452 = vector.broadcast %cst_136 : f32 to vector<18x64xf32>
    %453 = arith.addf %452, %451 : vector<18x64xf32>
    %454 = tpu.reciprocal %453 {approx = true} : vector<18x64xf32> -> vector<18x64xf32>
    %cst_137 = arith.constant 1.06140542 : f32
    %455 = vector.broadcast %cst_137 : f32 to vector<18x64xf32>
    %456 = arith.mulf %455, %454 : vector<18x64xf32>
    %cst_138 = arith.constant -1.45315206 : f32
    %457 = vector.broadcast %cst_138 : f32 to vector<18x64xf32>
    %458 = arith.addf %456, %457 : vector<18x64xf32>
    %459 = arith.mulf %458, %454 : vector<18x64xf32>
    %cst_139 = arith.constant 1.42141378 : f32
    %460 = vector.broadcast %cst_139 : f32 to vector<18x64xf32>
    %461 = arith.addf %459, %460 : vector<18x64xf32>
    %462 = arith.mulf %461, %454 : vector<18x64xf32>
    %cst_140 = arith.constant -0.284496725 : f32
    %463 = vector.broadcast %cst_140 : f32 to vector<18x64xf32>
    %464 = arith.addf %462, %463 : vector<18x64xf32>
    %465 = arith.mulf %464, %454 : vector<18x64xf32>
    %cst_141 = arith.constant 0.254829586 : f32
    %466 = vector.broadcast %cst_141 : f32 to vector<18x64xf32>
    %467 = arith.addf %465, %466 : vector<18x64xf32>
    %468 = arith.mulf %467, %454 : vector<18x64xf32>
    %cst_142 = arith.constant 0.000000e+00 : f32
    %469 = vector.broadcast %cst_142 : f32 to vector<18x64xf32>
    %470 = arith.subf %469, %449 : vector<18x64xf32>
    %471 = arith.mulf %470, %449 : vector<18x64xf32>
    %472 = math.exp %471 : vector<18x64xf32>
    %473 = arith.mulf %468, %472 : vector<18x64xf32>
    %cst_143 = arith.constant 1.000000e+00 : f32
    %474 = vector.broadcast %cst_143 : f32 to vector<18x64xf32>
    %475 = arith.subf %474, %473 : vector<18x64xf32>
    %476 = arith.mulf %448, %475 : vector<18x64xf32>
    %cst_144 = arith.constant 1.000000e+00 : f32
    %477 = vector.broadcast %cst_144 : f32 to vector<18x64xf32>
    %478 = arith.addf %477, %476 : vector<18x64xf32>
    %479 = arith.mulf %441, %478 : vector<18x64xf32>
    %c512 = arith.constant 512 : index
    %c0_145 = arith.constant 0 : index
    %480 = vector.load %arg2[%c512, %c0_145] : memref<608x32xbf16, #tpu.memory_space<vmem>>, vector<64x32xbf16>
    %481 = arith.truncf %479 : vector<18x64xf32> to vector<18x64xbf16>
    %cst_146 = arith.constant dense<0.000000e+00> : vector<18x32xf32>
    %482 = tpu.matmul %481, %480, %cst_146 {dimension_numbers = #tpu.dot_dimension_numbers<[1], [0], [0], [1], [0, 0, 1, 1], [], []>} : vector<18x64xbf16>, vector<64x32xbf16>, vector<18x32xf32> -> vector<18x32xf32>
    %483 = vector.broadcast %291 : vector<1x32xf32> to vector<18x32xf32>
    %484 = arith.addf %482, %483 : vector<18x32xf32>
    %485 = arith.addf %484, %412 : vector<18x32xf32>
    %486 = vector.extract_strided_slice %485 {offsets = [0, 0], sizes = [2, 32], strides = [1, 1]} : vector<18x32xf32> to vector<2x32xf32>
    %c39 = arith.constant 39 : index
    %c0_147 = arith.constant 0 : index
    %487 = vector.load %arg1[%c39, %c0_147] : memref<56x64xf32, #tpu.memory_space<vmem>>, vector<1x32xf32>
    %c40 = arith.constant 40 : index
    %c0_148 = arith.constant 0 : index
    %488 = vector.load %arg1[%c40, %c0_148] : memref<56x64xf32, #tpu.memory_space<vmem>>, vector<1x32xf32>
    %cst_149 = arith.constant dense<0.000000e+00> : vector<2xf32>
    %489 = vector.multi_reduction <add>, %486, %cst_149 [1] : vector<2x32xf32> to vector<2xf32>
    %490 = vector.shape_cast %489 : vector<2xf32> to vector<2x1xf32>
    %cst_150 = arith.constant 3.200000e+01 : f32
    %491 = vector.broadcast %cst_150 : f32 to vector<2x1xf32>
    %492 = arith.divf %490, %491 : vector<2x1xf32>
    %493 = vector.broadcast %492 : vector<2x1xf32> to vector<2x32xf32>
    %494 = arith.subf %486, %493 : vector<2x32xf32>
    %495 = arith.mulf %494, %494 : vector<2x32xf32>
    %cst_151 = arith.constant dense<0.000000e+00> : vector<2xf32>
    %496 = vector.multi_reduction <add>, %495, %cst_151 [1] : vector<2x32xf32> to vector<2xf32>
    %497 = vector.shape_cast %496 : vector<2xf32> to vector<2x1xf32>
    %cst_152 = arith.constant 3.200000e+01 : f32
    %498 = vector.broadcast %cst_152 : f32 to vector<2x1xf32>
    %499 = arith.divf %497, %498 : vector<2x1xf32>
    %500 = vector.broadcast %492 : vector<2x1xf32> to vector<2x32xf32>
    %501 = arith.subf %486, %500 : vector<2x32xf32>
    %cst_153 = arith.constant 9.99999974E-6 : f32
    %502 = vector.broadcast %cst_153 : f32 to vector<2x1xf32>
    %503 = arith.addf %499, %502 : vector<2x1xf32>
    %504 = math.rsqrt %503 : vector<2x1xf32>
    %505 = vector.broadcast %504 : vector<2x1xf32> to vector<2x32xf32>
    %506 = arith.mulf %501, %505 : vector<2x32xf32>
    %507 = vector.broadcast %487 : vector<1x32xf32> to vector<2x32xf32>
    %508 = arith.mulf %506, %507 : vector<2x32xf32>
    %509 = vector.broadcast %488 : vector<1x32xf32> to vector<2x32xf32>
    %510 = arith.addf %508, %509 : vector<2x32xf32>
    %c576 = arith.constant 576 : index
    %c0_154 = arith.constant 0 : index
    %511 = vector.load %arg2[%c576, %c0_154] : memref<608x32xbf16, #tpu.memory_space<vmem>>, vector<32x32xbf16>
    %512 = arith.truncf %510 : vector<2x32xf32> to vector<2x32xbf16>
    %cst_155 = arith.constant dense<0.000000e+00> : vector<2x32xf32>
    %513 = tpu.matmul %512, %511, %cst_155 {dimension_numbers = #tpu.dot_dimension_numbers<[1], [0], [0], [1], [0, 0, 1, 1], [], []>} : vector<2x32xbf16>, vector<32x32xbf16>, vector<2x32xf32> -> vector<2x32xf32>
    %c55 = arith.constant 55 : index
    %c0_156 = arith.constant 0 : index
    %514 = vector.load %arg1[%c55, %c0_156] : memref<56x64xf32, #tpu.memory_space<vmem>>, vector<1x32xf32>
    %515 = vector.broadcast %514 : vector<1x32xf32> to vector<2x32xf32>
    %516 = arith.addf %513, %515 : vector<2x32xf32>
    %c0_157 = arith.constant 0 : index
    %c0_158 = arith.constant 0 : index
    %517 = vector.load %arg4[%c0_157, %c0_158] : memref<2x32xf32, #tpu.memory_space<vmem>>, vector<2x32xf32>
    tpu.vector_store %arg4[%c0_157, %c0_158], %516 {strides = array<i32>} : memref<2x32xf32, #tpu.memory_space<vmem>>, vector<2x32xf32>,
    return
  }
}

</mosaic_0001>

<llo_original>
// kernel: vit3d_forward.1
$region0: #{vit3d_forward.1}
  #allocation0 [shape = 'u32[]', space=smem, size = 0x4, offset = 0x4, fixed_abs, tag = 'smem constant byte address 0x4 - core index']
  #allocation1 [shape = 'u32[144,128]{1,0:T(1,128)}', space=vmem, size = 0x12000, scoped, tag = 'internal scratch']
  %s0 = inlined_call_operand.vmem [shape: f32[20,384], index: 0, kind: input, shape index: {}]
  %s1 = inlined_call_operand.vmem [shape: f32[56,64], index: 1, kind: input, shape index: {}]
  %s2 = inlined_call_operand.vmem [shape: bf16[608,32], index: 2, kind: input, shape index: {}]
  %s3 = inlined_call_operand.vmem [shape: bf16[128,96], index: 3, kind: input, shape index: {}]
  %s4 = inlined_call_operand.hbm [shape: f32[2,32], index: 4, kind: output, shape index: {}]
  %s5 = sld [smem:[#allocation0]]
  $region26: #{vit3d_forward.1} parent=0
    _
  %s7 = ssub.s32 1, %s5
  %s8 = scalar_select 0, %s7, %s5
  $region1: #{vit3d_forward.1} parent=0
    #allocation2 [shape = 'u8[1024]{0}', space=vmem, size = 0x400, scoped, tag = 'output window, operand 0, single buffered']
    #allocation3 [shape = 's32[1]{0}', space=sflag, size = 0x4, scoped, tag = 'scoped memory for vit3d_forward.1']
    %9 = vsyncpa [#allocation3], 0
    // Predicated region
    $region2: #{vit3d_forward.1} parent=1 // pred_check
      _
    $region3: #{vit3d_forward.1} parent=1 // pred_check_branch
      %11 = sbr.rel (0) target = $region5
    $region4: #{vit3d_forward.1} parent=1 // pred_region
      _
    $region5: #{vit3d_forward.1} parent=1 // pred_fallthru
      _
    // Predicated region
    $region6: #{vit3d_forward.1} parent=1 // pred_check
      _
    $region7: #{vit3d_forward.1} parent=1 // pred_check_branch
      %13 = sbr.rel (0) target = $region9
    $region8: #{vit3d_forward.1} parent=1 // pred_region
      _
    $region9: #{vit3d_forward.1} parent=1 // pred_fallthru
      _
    // Predicated region
    $region10: #{vit3d_forward.1} parent=1 // pred_check
      _
    $region11: #{vit3d_forward.1} parent=1 // pred_check_branch
      %15 = sbr.rel (0) target = $region13
    $region12: #{vit3d_forward.1} parent=1 // pred_region
      _
    $region13: #{vit3d_forward.1} parent=1 // pred_fallthru
      _
    // Predicated region
    $region14: #{vit3d_forward.1} parent=1 // pred_check
      _
    $region15: #{vit3d_forward.1} parent=1 // pred_check_branch
      %17 = sbr.rel (0) target = $region17
    $region16: #{vit3d_forward.1} parent=1 // pred_region
      _
    $region17: #{vit3d_forward.1} parent=1 // pred_fallthru
      _
    %v19 = vld [vmem:[%s0] sm:$0xff]
    %v20 = vld [vmem:[%s0 + $0x8] sm:$0xff]
    %v21 = vld [vmem:[%s0 + $0x10] sm:$0xff]
    %v22 = vld [vmem:[%s0 + $0x18] sm:$0xff]
    %v23 = vld [vmem:[%s0 + $0x20] sm:$0xff]
    %v24 = vld [vmem:[%s0 + $0x28] sm:$0xff]
    %v25 = vld [vmem:[%s0 + $0x30] sm:$0x3]
    %v26 = vld [vmem:[%s0 + $0x38] sm:$0x3]
    %v27 = vld [vmem:[%s0 + $0x40] sm:$0x3]
    %s28 = scalar_lea.vmem %s0, 50
    %v29 = vld [vmem:[%s28] ss:$8 sm:$0x7]
    %s30 = scalar_lea.vmem %s0, 51
    %v31 = vld [vmem:[%s30] ss:$8 sm:$0x7]
    %v32 = vadd.f32 %v19, %v20
    %v33 = vadd.f32 %v32, %v21
    %34 = vadd.xlane.f32.xlu0 %v33
    %v35 = vpop.xlane.xlu0 %34
    %v36 = vadd.f32 %v22, %v23
    %v37 = vadd.f32 %v36, %v24
    %38 = vadd.xlane.f32.xlu0 %v37
    %v39 = vpop.xlane.xlu0 %38
    %vm40 = vcmask 1041408
    %v41 = vsel %vm40, %v25, 0.0
    %v42 = vsel %vm40, %v26, 0.0
    %v43 = vadd.f32 %v41, %v42
    %v44 = vsel %vm40, %v27, 0.0
    %v45 = vadd.f32 %v43, %v44
    %46 = vadd.xlane.f32.xlu0 %v45
    %v47 = vpop.xlane.xlu0 %46
    %v48 = vrcp.pop 384.0
    %v49 = vmul.f32 %v35, %v48
    %v50 = vmul.f32 %v39, %v48
    %v51 = vmul.f32 %v47, %v48
    %v52 = vsub.f32 %v19, %v49
    %v53 = vsub.f32 %v20, %v49
    %v54 = vsub.f32 %v21, %v49
    %v55 = vsub.f32 %v22, %v50
    %v56 = vsub.f32 %v23, %v50
    %v57 = vsub.f32 %v24, %v50
    %v58 = vsub.f32 %v25, %v51
    %v59 = vsub.f32 %v26, %v51
    %v60 = vsub.f32 %v27, %v51
    %v61 = vmul.f32 %v52, %v52
    %v62 = vmul.f32 %v53, %v53
    %v63 = vmul.f32 %v54, %v54
    %v64 = vmul.f32 %v55, %v55
    %v65 = vmul.f32 %v56, %v56
    %v66 = vmul.f32 %v57, %v57
    %v67 = vmul.f32 %v58, %v58
    %v68 = vmul.f32 %v59, %v59
    %v69 = vmul.f32 %v60, %v60
    %v70 = vadd.f32 %v61, %v62
    %v71 = vadd.f32 %v70, %v63
    %72 = vadd.xlane.f32.xlu0 %v71
    %v73 = vpop.xlane.xlu0 %72
    %v74 = vadd.f32 %v64, %v65
    %v75 = vadd.f32 %v74, %v66
    %76 = vadd.xlane.f32.xlu0 %v75
    %v77 = vpop.xlane.xlu0 %76
    %v78 = vsel %vm40, %v67, 0.0
    %v79 = vsel %vm40, %v68, 0.0
    %v80 = vadd.f32 %v78, %v79
    %v81 = vsel %vm40, %v69, 0.0
    %v82 = vadd.f32 %v80, %v81
    %83 = vadd.xlane.f32.xlu0 %v82
    %v84 = vpop.xlane.xlu0 %83
    %v85 = vmul.f32 %v73, %v48
    %v86 = vmul.f32 %v77, %v48
    %v87 = vmul.f32 %v84, %v48
    %v88 = vadd.f32 %v85, 1e-05
    %v89 = vadd.f32 %v86, 1e-05
    %v90 = vadd.f32 %v87, 1e-05
    %v91 = vrsqrt.pop %v88
    %v92 = vrsqrt.pop %v89
    %v93 = vrsqrt.pop %v90
    %v94 = vmul.f32 %v52, %v91
    %v95 = vmul.f32 %v53, %v91
    %v96 = vmul.f32 %v54, %v91
    %v97 = vmul.f32 %v55, %v92
    %v98 = vmul.f32 %v56, %v92
    %v99 = vmul.f32 %v57, %v92
    %v100 = vmul.f32 %v58, %v93
    %v101 = vmul.f32 %v59, %v93
    %v102 = vmul.f32 %v60, %v93
    %v104 = vlaneseq
    %v105 = vshrl.u32 %v104, 7
    %v106 = vsub.s32 0, %v105
    %v107 = vrot.slane %v29, %v106
    %v108 = vlaneseq
    %v109 = vshrl.u32 %v108, 7
    %v110 = vsub.s32 1, %v109
    %v111 = vrot.slane %v29, %v110
    %v112 = vlaneseq
    %v113 = vshrl.u32 %v112, 7
    %v114 = vsub.s32 2, %v113
    %v115 = vrot.slane %v29, %v114
    %v119 = vmul.f32 %v94, %v107
    %v120 = vmul.f32 %v95, %v111
    %v121 = vmul.f32 %v96, %v115
    %v122 = vmul.f32 %v97, %v107
    %v123 = vmul.f32 %v98, %v111
    %v124 = vmul.f32 %v99, %v115
    %v125 = vmul.f32 %v100, %v107
    %v126 = vmul.f32 %v101, %v111
    %v127 = vmul.f32 %v102, %v115
    %v129 = vlaneseq
    %v130 = vshrl.u32 %v129, 7
    %v131 = vsub.s32 0, %v130
    %v132 = vrot.slane %v31, %v131
    %v133 = vlaneseq
    %v134 = vshrl.u32 %v133, 7
    %v135 = vsub.s32 1, %v134
    %v136 = vrot.slane %v31, %v135
    %v137 = vlaneseq
    %v138 = vshrl.u32 %v137, 7
    %v139 = vsub.s32 2, %v138
    %v140 = vrot.slane %v31, %v139
    %v144 = vadd.f32 %v119, %v132
    %v145 = vadd.f32 %v120, %v136
    %v146 = vadd.f32 %v121, %v140
    %v147 = vadd.f32 %v122, %v132
    %v148 = vadd.f32 %v123, %v136
    %v149 = vadd.f32 %v124, %v140
    %v150 = vadd.f32 %v125, %v132
    %v151 = vadd.f32 %v126, %v136
    %v152 = vadd.f32 %v127, %v140
    %v153 = vld [vmem:[%s2] sm:$0xf]
    %v154 = vld [vmem:[%s2 + $0x4] sm:$0xf]
    %v155 = vld [vmem:[%s2 + $0x8] sm:$0xf]
    %v156 = vld [vmem:[%s2 + $0xc] sm:$0xf]
    %v157 = vld [vmem:[%s2 + $0x10] sm:$0xf]
    %v158 = vld [vmem:[%s2 + $0x14] sm:$0xf]
    %v159 = vld [vmem:[%s2 + $0x18] sm:$0xf]
    %v160 = vld [vmem:[%s2 + $0x1c] sm:$0xf]
    %v161 = vld [vmem:[%s2 + $0x20] sm:$0xf]
    %v162 = vld [vmem:[%s2 + $0x24] sm:$0xf]
    %v163 = vld [vmem:[%s2 + $0x28] sm:$0xf]
    %v164 = vld [vmem:[%s2 + $0x2c] sm:$0xf]
    %v165 = vld [vmem:[%s2 + $0x30] sm:$0xf]
    %v166 = vld [vmem:[%s2 + $0x34] sm:$0xf]
    %v167 = vld [vmem:[%s2 + $0x38] sm:$0xf]
    %v168 = vld [vmem:[%s2 + $0x3c] sm:$0xf]
    %v169 = vld [vmem:[%s2 + $0x40] sm:$0xf]
    %v170 = vld [vmem:[%s2 + $0x44] sm:$0xf]
    %v171 = vld [vmem:[%s2 + $0x48] sm:$0xf]
    %v172 = vld [vmem:[%s2 + $0x4c] sm:$0xf]
    %v173 = vld [vmem:[%s2 + $0x50] sm:$0xf]
    %v174 = vld [vmem:[%s2 + $0x54] sm:$0xf]
    %v175 = vld [vmem:[%s2 + $0x58] sm:$0xf]
    %v176 = vld [vmem:[%s2 + $0x5c] sm:$0xf]
    %v177 = vld [vmem:[%s2 + $0x60] sm:$0xf]
    %v178 = vld [vmem:[%s2 + $0x64] sm:$0xf]
    %v179 = vld [vmem:[%s2 + $0x68] sm:$0xf]
    %v180 = vld [vmem:[%s2 + $0x6c] sm:$0xf]
    %v181 = vld [vmem:[%s2 + $0x70] sm:$0xf]
    %v182 = vld [vmem:[%s2 + $0x74] sm:$0xf]
    %v183 = vld [vmem:[%s2 + $0x78] sm:$0xf]
    %v184 = vld [vmem:[%s2 + $0x7c] sm:$0xf]
    %v185 = vld [vmem:[%s2 + $0x80] sm:$0xf]
    %v186 = vld [vmem:[%s2 + $0x84] sm:$0xf]
    %v187 = vld [vmem:[%s2 + $0x88] sm:$0xf]
    %v188 = vld [vmem:[%s2 + $0x8c] sm:$0xf]
    %v189 = vld [vmem:[%s2 + $0x90] sm:$0xf]
    %v190 = vld [vmem:[%s2 + $0x94] sm:$0xf]
    %v191 = vld [vmem:[%s2 + $0x98] sm:$0xf]
    %v192 = vld [vmem:[%s2 + $0x9c] sm:$0xf]
    %v193 = vld [vmem:[%s2 + $0xa0] sm:$0xf]
    %v194 = vld [vmem:[%s2 + $0xa4] sm:$0xf]
    %v195 = vld [vmem:[%s2 + $0xa8] sm:$0xf]
    %v196 = vld [vmem:[%s2 + $0xac] sm:$0xf]
    %v197 = vld [vmem:[%s2 + $0xb0] sm:$0xf]
    %v198 = vld [vmem:[%s2 + $0xb4] sm:$0xf]
    %v199 = vld [vmem:[%s2 + $0xb8] sm:$0xf]
    %v200 = vld [vmem:[%s2 + $0xbc] sm:$0xf]
    %v201 = vpack.c.bf16 %v147, %v144
    %v202 = vpack.c.bf16 %v148, %v145
    %v203 = vpack.c.bf16 %v149, %v146
    %v204 = vpack.c.bf16 %v150, %v150
    %v205 = vpack.c.bf16 %v151, %v151
    %v206 = vpack.c.bf16 %v152, %v152
    %v207 = vld [vmem:[%s1 + $0x24] sm:$0x1]
    %v208 = vlaneseq
    %v209 = vshrl.u32 %v208, 7
    %v210 = vsub.s32 0, %v209
    %v211 = vrot.slane %v207, %v210
    %v260 = vunpack.c.l.b16 %v153
    %v261 = vunpack.c.l.b16 %v154
    %v262 = vunpack.c.l.b16 %v155
    %v263 = vunpack.c.l.b16 %v156
    %v264 = vunpack.c.l.b16 %v157
    %v265 = vunpack.c.l.b16 %v158
    %v266 = vunpack.c.l.b16 %v159
    %v267 = vunpack.c.l.b16 %v160
    %v268 = vunpack.c.l.b16 %v161
    %v269 = vunpack.c.l.b16 %v162
    %v270 = vunpack.c.l.b16 %v163
    %v271 = vunpack.c.l.b16 %v164
    %v272 = vunpack.c.l.b16 %v165
    %v273 = vunpack.c.l.b16 %v166
    %v274 = vunpack.c.l.b16 %v167
    %v275 = vunpack.c.l.b16 %v168
    %v276 = vunpack.c.l.b16 %v169
    %v277 = vunpack.c.l.b16 %v170
    %v278 = vunpack.c.l.b16 %v171
    %v279 = vunpack.c.l.b16 %v172
    %v280 = vunpack.c.l.b16 %v173
    %v281 = vunpack.c.l.b16 %v174
    %v282 = vunpack.c.l.b16 %v175
    %v283 = vunpack.c.l.b16 %v176
    %v284 = vunpack.c.l.b16 %v177
    %v285 = vunpack.c.l.b16 %v178
    %v286 = vunpack.c.l.b16 %v179
    %v287 = vunpack.c.l.b16 %v180
    %v288 = vunpack.c.l.b16 %v181
    %v289 = vunpack.c.l.b16 %v182
    %v290 = vunpack.c.l.b16 %v183
    %v291 = vunpack.c.l.b16 %v184
    %v292 = vunpack.c.l.b16 %v185
    %v293 = vunpack.c.l.b16 %v186
    %v294 = vunpack.c.l.b16 %v187
    %v295 = vunpack.c.l.b16 %v188
    %v296 = vunpack.c.l.b16 %v189
    %v297 = vunpack.c.l.b16 %v190
    %v298 = vunpack.c.l.b16 %v191
    %v299 = vunpack.c.l.b16 %v192
    %v300 = vunpack.c.l.b16 %v193
    %v301 = vunpack.c.l.b16 %v194
    %v302 = vunpack.c.l.b16 %v195
    %v303 = vunpack.c.l.b16 %v196
    %v304 = vunpack.c.l.b16 %v197
    %v305 = vunpack.c.l.b16 %v198
    %v306 = vunpack.c.l.b16 %v199
    %v307 = vunpack.c.l.b16 %v200
    %v308 = vpack.c.b16 %v261, %v260
    %v309 = vpack.c.b16 %v263, %v262
    %v310 = vpack.c.b16 %v265, %v264
    %v311 = vpack.c.b16 %v267, %v266
    %v312 = vpack.c.b16 %v269, %v268
    %v313 = vpack.c.b16 %v271, %v270
    %v314 = vpack.c.b16 %v273, %v272
    %v315 = vpack.c.b16 %v275, %v274
    %v316 = vpack.c.b16 %v277, %v276
    %v317 = vpack.c.b16 %v279, %v278
    %v318 = vpack.c.b16 %v281, %v280
    %v319 = vpack.c.b16 %v283, %v282
    %v320 = vpack.c.b16 %v285, %v284
    %v321 = vpack.c.b16 %v287, %v286
    %v322 = vpack.c.b16 %v289, %v288
    %v323 = vpack.c.b16 %v291, %v290
    %v324 = vpack.c.b16 %v293, %v292
    %v325 = vpack.c.b16 %v295, %v294
    %v326 = vpack.c.b16 %v297, %v296
    %v327 = vpack.c.b16 %v299, %v298
    %v328 = vpack.c.b16 %v301, %v300
    %v329 = vpack.c.b16 %v303, %v302
    %v330 = vpack.c.b16 %v305, %v304
    %v331 = vpack.c.b16 %v307, %v306
    %356 = vmatprep.subr.bf16.mxu0 0
    %357 = vmatpush1.bf16.msra.mxu0 %v308
    %358 = vmatprep.subr.bf16.mxu0 0
    %359 = vmatpush1.bf16.msra.mxu0 %v309
    %360 = vmatprep.subr.bf16.mxu0 0
    %361 = vmatpush1.bf16.msra.mxu0 %v310
    %362 = vmatprep.subr.bf16.mxu0 0
    %363 = vmatpush1.bf16.msra.mxu0 %v311
    %364 = vmatprep.subr.bf16.mxu0 0
    %365 = vmatpush1.bf16.msra.mxu0 %v312
    %366 = vmatprep.subr.bf16.mxu0 0
    %367 = vmatpush1.bf16.msra.mxu0 %v313
    %368 = vmatprep.subr.bf16.mxu0 0
    %369 = vmatpush1.bf16.msra.mxu0 %v314
    %370 = vmatprep.subr.bf16.mxu0 0
    %371 = vmatpush1.bf16.msra.mxu0 %v315
    %372 = vmatprep.subr.bf16.mxu0 0
    %373 = vmatpush1.bf16.msra.mxu0 %v316
    %374 = vmatprep.subr.bf16.mxu0 0
    %375 = vmatpush1.bf16.msra.mxu0 %v317
    %376 = vmatprep.subr.bf16.mxu0 0
    %377 = vmatpush1.bf16.msra.mxu0 %v318
    %378 = vmatprep.subr.bf16.mxu0 0
    %379 = vmatpush1.bf16.msra.mxu0 %v319
    %380 = vmatprep.subr.bf16.mxu0 0
    %381 = vmatpush1.bf16.msra.mxu0 %v320
    %382 = vmatprep.subr.bf16.mxu0 0
    %383 = vmatpush1.bf16.msra.mxu0 %v321
    %384 = vmatprep.subr.bf16.mxu0 0
    %385 = vmatpush1.bf16.msra.mxu0 %v322
    %386 = vmatprep.subr.bf16.mxu0 0
    %387 = vmatpush1.bf16.msra.mxu0 %v323
    %388 = vmatprep.mubr.bf16.mxu0 %v202
    %389 = vmatmul.mubr.bf16.gmra.mrb[0].mxu0 %v201
    %v390 = vpop.f32.mrb[0].mxu0
    %v391 = vadd.f32 %v211, %v390
    %v392 = vpop.f32.mrb[0].mxu0
    %v393 = vpop.f32.mrb[0].mxu0
    %v394 = vadd.f32 %v211, %v393
    %v395 = vpop.f32.mrb[0].mxu0
    %396 = vmatprep.mubr.bf16.mxu0 %v205
    %397 = vmatmul.mubr.bf16.gmra.mrb[0].mxu0 %v204
    %v398 = vpop.f32.mrb[0].mxu0
    %v399 = vadd.f32 %v211, %v398
    %v400 = vpop.f32.mrb[0].mxu0
    %v401 = vpop.f32.mrb[0].mxu0
    %v402 = vpop.f32.mrb[0].mxu0
    %403 = vdwg.mxu0
    %404 = vmatprep.subr.bf16.mxu0 0
    %405 = vmatpush1.bf16.msra.mxu0 %v324
    %406 = vmatprep.subr.bf16.mxu0 0
    %407 = vmatpush1.bf16.msra.mxu0 %v325
    %408 = vmatprep.subr.bf16.mxu0 0
    %409 = vmatpush1.bf16.msra.mxu0 %v326
    %410 = vmatprep.subr.bf16.mxu0 0
    %411 = vmatpush1.bf16.msra.mxu0 %v327
    %412 = vmatprep.subr.bf16.mxu0 0
    %413 = vmatpush1.bf16.msra.mxu0 %v328
    %414 = vmatprep.subr.bf16.mxu0 0
    %415 = vmatpush1.bf16.msra.mxu0 %v329
    %416 = vmatprep.subr.bf16.mxu0 0
    %417 = vmatpush1.bf16.msra.mxu0 %v330
    %418 = vmatprep.subr.bf16.mxu0 0
    %419 = vmatpush1.bf16.msra.mxu0 %v331
    %420 = vmatprep.subr.bf16.mxu0 0
    %421 = vmatpush1.bf16.msra.mxu0 0
    %422 = vmatprep.subr.bf16.mxu0 0
    %423 = vmatpush1.bf16.msra.mxu0 0
    %424 = vmatprep.subr.bf16.mxu0 0
    %425 = vmatpush1.bf16.msra.mxu0 0
    %426 = vmatprep.subr.bf16.mxu0 0
    %427 = vmatpush1.bf16.msra.mxu0 0
    %428 = vmatprep.subr.bf16.mxu0 0
    %429 = vmatpush1.bf16.msra.mxu0 0
    %430 = vmatprep.subr.bf16.mxu0 0
    %431 = vmatpush1.bf16.msra.mxu0 0
    %432 = vmatprep.subr.bf16.mxu0 0
    %433 = vmatpush1.bf16.msra.mxu0 0
    %434 = vmatprep.subr.bf16.mxu0 0
    %435 = vmatpush1.bf16.msra.mxu0 0
    %436 = vmatprep.mubr.bf16.mxu0 0
    %437 = vmatmul.mubr.bf16.gmra.mrb[0].mxu0 %v203
    %v438 = vpop.f32.mrb[0].mxu0
    %v439 = vadd.f32 %v391, %v438
    %v440 = vpop.f32.mrb[0].mxu0
    %v441 = vpop.f32.mrb[0].mxu0
    %v442 = vadd.f32 %v394, %v441
    %v443 = vpop.f32.mrb[0].mxu0
    %444 = vmatprep.mubr.bf16.mxu0 0
    %445 = vmatmul.mubr.bf16.gmra.mrb[0].mxu0 %v206
    %v446 = vpop.f32.mrb[0].mxu0
    %v447 = vadd.f32 %v399, %v446
    %v448 = vpop.f32.mrb[0].mxu0
    %v449 = vpop.f32.mrb[0].mxu0
    %v450 = vpop.f32.mrb[0].mxu0
    %451 = vdwg.mxu0
    %v452 = vld [vmem:[%s1 + $0x25] sm:$0x1]
    %v453 = vld [vmem:[%s1 + $0x26] sm:$0x1]
    %vm454 = vcmask 261120
    %v455 = vsel %vm454, %v439, 0.0
    %456 = vadd.xlane.f32.xlu0 %v455
    %v457 = vpop.xlane.xlu0 %456
    %v458 = vsel %vm454, %v442, 0.0
    %459 = vadd.xlane.f32.xlu0 %v458
    %v460 = vpop.xlane.xlu0 %459
    %vm461 = vcmask 254976
    %v462 = vsel %vm461, %v447, 0.0
    %463 = vadd.xlane.f32.xlu0 %v462
    %v464 = vpop.xlane.xlu0 %463
    %v465 = vrcp.pop 32.0
    %v466 = vmul.f32 %v457, %v465
    %v467 = vmul.f32 %v460, %v465
    %v468 = vmul.f32 %v464, %v465
    %v469 = vsub.f32 %v439, %v466
    %v470 = vsub.f32 %v442, %v467
    %v471 = vsub.f32 %v447, %v468
    %v472 = vmul.f32 %v469, %v469
    %v473 = vmul.f32 %v470, %v470
    %v474 = vmul.f32 %v471, %v471
    %v475 = vsel %vm454, %v472, 0.0
    %476 = vadd.xlane.f32.xlu0 %v475
    %v477 = vpop.xlane.xlu0 %476
    %v478 = vsel %vm454, %v473, 0.0
    %479 = vadd.xlane.f32.xlu0 %v478
    %v480 = vpop.xlane.xlu0 %479
    %v481 = vsel %vm461, %v474, 0.0
    %482 = vadd.xlane.f32.xlu0 %v481
    %v483 = vpop.xlane.xlu0 %482
    %v484 = vmul.f32 %v477, %v465
    %v485 = vmul.f32 %v480, %v465
    %v486 = vmul.f32 %v483, %v465
    %v487 = vadd.f32 %v484, 1e-05
    %v488 = vadd.f32 %v485, 1e-05
    %v489 = vadd.f32 %v486, 1e-05
    %v490 = vrsqrt.pop %v487
    %v491 = vrsqrt.pop %v488
    %v492 = vrsqrt.pop %v489
    %v493 = vmul.f32 %v469, %v490
    %v494 = vmul.f32 %v470, %v491
    %v495 = vmul.f32 %v471, %v492
    %v496 = vlaneseq
    %v497 = vshrl.u32 %v496, 7
    %v498 = vsub.s32 0, %v497
    %v499 = vrot.slane %v452, %v498
    %v500 = vmul.f32 %v493, %v499
    %v501 = vmul.f32 %v494, %v499
    %v502 = vmul.f32 %v495, %v499
    %v503 = vlaneseq
    %v504 = vshrl.u32 %v503, 7
    %v505 = vsub.s32 0, %v504
    %v506 = vrot.slane %v453, %v505
    %v507 = vadd.f32 %v500, %v506
    %v508 = vadd.f32 %v501, %v506
    %v509 = vadd.f32 %v502, %v506
    %v510 = vlaneseq
    %v511 = vshrl.u32 %v510, 7
    %v512 = vadd.s32 %v511, 8
    %v513 = vadd.s32 %v511, 16
    %v514 = vld [vmem:[%s1] sm:$0xff]
    %v515 = vld [vmem:[%s1 + $0x8] sm:$0xff]
    %v516 = vld [vmem:[%s1 + $0x10] sm:$0x3]
    %vm517 = vcmp.ge.s32.totalorder %v511, 2
    %vm518 = vcmp.ge.s32.totalorder %v512, 2
    %vm519 = vcmp.ge.s32.totalorder %v513, 2
    %v520 = vsel %vm517, 1, 0
    %v521 = vsel %vm518, 1, 0
    %v522 = vsel %vm519, 1, 0
    %vm523 = vcmp.eq.s32.totalorder %v520, 1
    %vm524 = vcmp.eq.s32.totalorder %v521, 1
    %vm525 = vcmp.eq.s32.totalorder %v522, 1
    %v526 = vsel %vm523, %v507, 0.0
    %v527 = vsel %vm524, %v508, 0.0
    %v528 = vsel %vm525, %v509, 0.0
    %v529 = vadd.f32 %v514, %v526
    %v530 = vadd.f32 %v515, %v527
    %v531 = vadd.f32 %v516, %v528
    %v532 = vld [vmem:[%s1 + $0x12] sm:$0xff]
    %v533 = vld [vmem:[%s1 + $0x1a] sm:$0xff]
    %v534 = vld [vmem:[%s1 + $0x22] sm:$0x3]
    %v535 = vlaneseq
    %v536 = vand.u32 %v535, 127
    %vm537 = vcmp.ge.s32.totalorder %v536, 0
    %vm538 = vcmp.lt.s32.totalorder %v536, 8
    %vm539 = vmand %vm537, %vm538
    %vm540 = vcmp.ge.s32.totalorder %v536, 8
    %vm541 = vcmp.lt.s32.totalorder %v536, 16
    %vm542 = vmand %vm540, %vm541
    %vm543 = vcmp.ge.s32.totalorder %v536, 16
    %vm544 = vcmp.lt.s32.totalorder %v536, 24
    %vm545 = vmand %vm543, %vm544
    %vm546 = vcmp.ge.s32.totalorder %v536, 24
    %vm547 = vcmp.lt.s32.totalorder %v536, 32
    %vm548 = vmand %vm546, %vm547
    %v549 = vld [vmem:[%s1 + $0x29] sm:$0x1]
    %v550 = vld [vmem:[%s1 + $0x2a] sm:$0x1]
    %v551 = vld [vmem:[%s1 + $0x2b] sm:$0x1]
    %v552 = vld [vmem:[%s1 + $0x2c] sm:$0x1]
    %v553 = vld [vmem:[%s1 + $0x2d] sm:$0x1]
    %v554 = vld [vmem:[%s1 + $0x2e] sm:$0x1]
    %v555 = vld [vmem:[%s1 + $0x35] sm:$0x1]
    %v556 = vsel %vm454, %v529, 0.0
    %557 = vadd.xlane.f32.xlu0 %v556
    %v558 = vpop.xlane.xlu0 %557
    %v559 = vsel %vm454, %v530, 0.0
    %560 = vadd.xlane.f32.xlu0 %v559
    %v561 = vpop.xlane.xlu0 %560
    %v562 = vsel %vm461, %v531, 0.0
    %563 = vadd.xlane.f32.xlu0 %v562
    %v564 = vpop.xlane.xlu0 %563
    %v565 = vmul.f32 %v558, %v465
    %v566 = vmul.f32 %v561, %v465
    %v567 = vmul.f32 %v564, %v465
    %v568 = vsub.f32 %v529, %v565
    %v569 = vsub.f32 %v530, %v566
    %v570 = vsub.f32 %v531, %v567
    %v571 = vmul.f32 %v568, %v568
    %v572 = vmul.f32 %v569, %v569
    %v573 = vmul.f32 %v570, %v570
    %v574 = vsel %vm454, %v571, 0.0
    %575 = vadd.xlane.f32.xlu0 %v574
    %v576 = vpop.xlane.xlu0 %575
    %v577 = vsel %vm454, %v572, 0.0
    %578 = vadd.xlane.f32.xlu0 %v577
    %v579 = vpop.xlane.xlu0 %578
    %v580 = vsel %vm461, %v573, 0.0
    %581 = vadd.xlane.f32.xlu0 %v580
    %v582 = vpop.xlane.xlu0 %581
    %v583 = vmul.f32 %v576, %v465
    %v584 = vmul.f32 %v579, %v465
    %v585 = vmul.f32 %v582, %v465
    %v586 = vadd.f32 %v583, 1e-05
    %v587 = vadd.f32 %v584, 1e-05
    %v588 = vadd.f32 %v585, 1e-05
    %v589 = vrsqrt.pop %v586
    %v590 = vrsqrt.pop %v587
    %v591 = vrsqrt.pop %v588
    %v592 = vmul.f32 %v568, %v589
    %v593 = vmul.f32 %v569, %v590
    %v594 = vmul.f32 %v570, %v591
    %v595 = vlaneseq
    %v596 = vshrl.u32 %v595, 7
    %v597 = vsub.s32 0, %v596
    %v598 = vrot.slane %v549, %v597
    %v599 = vmul.f32 %v592, %v598
    %v600 = vmul.f32 %v593, %v598
    %v601 = vmul.f32 %v594, %v598
    %v602 = vlaneseq
    %v603 = vshrl.u32 %v602, 7
    %v604 = vsub.s32 0, %v603
    %v605 = vrot.slane %v550, %v604
    %v606 = vadd.f32 %v599, %v605
    %v607 = vadd.f32 %v600, %v605
    %v608 = vadd.f32 %v601, %v605
    %v609 = vld [vmem:[%s3] sm:$0xf]
    %v610 = vld [vmem:[%s3 + $0x4] sm:$0xf]
    %v611 = vld [vmem:[%s3 + $0x8] sm:$0xf]
    %v612 = vld [vmem:[%s3 + $0xc] sm:$0xf]
    %v613 = vpack.c.bf16 %v607, %v606
    %v614 = vpack.c.bf16 %v608, %v608
    %v619 = vunpack.c.l.b16 %v609
    %v620 = vunpack.c.l.b16 %v610
    %v621 = vunpack.c.l.b16 %v611
    %v622 = vunpack.c.l.b16 %v612
    %v623 = vpack.c.b16 %v620, %v619
    %v624 = vpack.c.b16 %v622, %v621
    %v628 = vsel %vm454, %v613, 0
    %v631 = vsel %vm454, %v614, 0
    %633 = vmatprep.subr.bf16.mxu0 0
    %634 = vmatpush1.bf16.msra.mxu0 %v623
    %635 = vmatprep.subr.bf16.mxu0 0
    %636 = vmatpush1.bf16.msra.mxu0 %v624
    %637 = vmatprep.subr.bf16.mxu0 0
    %638 = vmatpush1.bf16.msra.mxu0 0
    %639 = vmatprep.subr.bf16.mxu0 0
    %640 = vmatpush1.bf16.msra.mxu0 0
    %641 = vmatprep.subr.bf16.mxu0 0
    %642 = vmatpush1.bf16.msra.mxu0 0
    %643 = vmatprep.subr.bf16.mxu0 0
    %644 = vmatpush1.bf16.msra.mxu0 0
    %645 = vmatprep.subr.bf16.mxu0 0
    %646 = vmatpush1.bf16.msra.mxu0 0
    %647 = vmatprep.subr.bf16.mxu0 0
    %648 = vmatpush1.bf16.msra.mxu0 0
    %649 = vmatprep.subr.bf16.mxu0 0
    %650 = vmatpush1.bf16.msra.mxu0 0
    %651 = vmatprep.subr.bf16.mxu0 0
    %652 = vmatpush1.bf16.msra.mxu0 0
    %653 = vmatprep.subr.bf16.mxu0 0
    %654 = vmatpush1.bf16.msra.mxu0 0
    %655 = vmatprep.subr.bf16.mxu0 0
    %656 = vmatpush1.bf16.msra.mxu0 0
    %657 = vmatprep.subr.bf16.mxu0 0
    %658 = vmatpush1.bf16.msra.mxu0 0
    %659 = vmatprep.subr.bf16.mxu0 0
    %660 = vmatpush1.bf16.msra.mxu0 0
    %661 = vmatprep.subr.bf16.mxu0 0
    %662 = vmatpush1.bf16.msra.mxu0 0
    %663 = vmatprep.subr.bf16.mxu0 0
    %664 = vmatpush1.bf16.msra.mxu0 0
    %665 = vmatprep.mubr.bf16.mxu0 0
    %666 = vmatmul.mubr.bf16.gmra.mrb[0].mxu0 %v628
    %v667 = vpop.f32.mrb[0].mxu0
    %v668 = vadd.f32 0.0, %v667
    %v669 = vpop.f32.mrb[0].mxu0
    %v670 = vpop.f32.mrb[0].mxu0
    %v671 = vadd.f32 0.0, %v670
    %v672 = vpop.f32.mrb[0].mxu0
    %673 = vmatprep.mubr.bf16.mxu0 0
    %674 = vmatmul.mubr.bf16.gmra.mrb[0].mxu0 %v631
    %v675 = vpop.f32.mrb[0].mxu0
    %v676 = vadd.f32 0.0, %v675
    %v677 = vpop.f32.mrb[0].mxu0
    %v678 = vpop.f32.mrb[0].mxu0
    %v679 = vpop.f32.mrb[0].mxu0
    %680 = vdwg.mxu0
    %v681 = vpack.c.bf16 %v671, %v668
    %v682 = vpack.c.bf16 %v676, %v676
    %685 = vrot.lane.b32.xlu0 %v681, 96
    %v686 = vpop.permute.xlu0 %685
    %687 = vrot.lane.b32.xlu0 %v682, 96
    %v688 = vpop.permute.xlu0 %687
    %vm689 = vcmask 64512
    %v691 = vsel %vm689, %v681, 0
    %v694 = vsel %vm689, %v682, 0
    %v697 = vsel %vm689, %v686, 0
    %v700 = vsel %vm689, %v688, 0
    %702 = vmatprep.subr.bf16.mxu0 0
    %703 = vmatpush1.bf16.xpose.msra.mxu0 %v697
    %704 = vmatprep.subr.bf16.mxu0 0
    %705 = vmatpush1.bf16.xpose.msra.mxu0 %v700
    %706 = vmatprep.subr.bf16.mxu0 0
    %707 = vmatpush1.bf16.xpose.msra.mxu0 0
    %708 = vmatprep.subr.bf16.mxu0 0
    %709 = vmatpush1.bf16.xpose.msra.mxu0 0
    %710 = vmatprep.subr.bf16.mxu0 0
    %711 = vmatpush1.bf16.xpose.msra.mxu0 0
    %712 = vmatprep.subr.bf16.mxu0 0
    %713 = vmatpush1.bf16.xpose.msra.mxu0 0
    %714 = vmatprep.subr.bf16.mxu0 0
    %715 = vmatpush1.bf16.xpose.msra.mxu0 0
    %716 = vmatprep.subr.bf16.mxu0 0
    %717 = vmatpush1.bf16.xpose.msra.mxu0 0
    %718 = vmatprep.subr.bf16.mxu0 0
    %719 = vmatpush1.bf16.xpose.msra.mxu0 0
    %720 = vmatprep.subr.bf16.mxu0 0
    %721 = vmatpush1.bf16.xpose.msra.mxu0 0
    %722 = vmatprep.subr.bf16.mxu0 0
    %723 = vmatpush1.bf16.xpose.msra.mxu0 0
    %724 = vmatprep.subr.bf16.mxu0 0
    %725 = vmatpush1.bf16.xpose.msra.mxu0 0
    %726 = vmatprep.subr.bf16.mxu0 0
    %727 = vmatpush1.bf16.xpose.msra.mxu0 0
    %728 = vmatprep.subr.bf16.mxu0 0
    %729 = vmatpush1.bf16.xpose.msra.mxu0 0
    %730 = vmatprep.subr.bf16.mxu0 0
    %731 = vmatpush1.bf16.xpose.msra.mxu0 0
    %732 = vmatprep.subr.bf16.mxu0 0
    %733 = vmatpush1.bf16.xpose.msra.mxu0 0
    %734 = vmatprep.mubr.bf16.mxu0 0
    %735 = vmatmul.mubr.bf16.gmra.mrb[0].mxu0 %v691
    %v736 = vpop.f32.mrb[0].mxu0
    %v737 = vadd.f32 %v532, %v736
    %v738 = vpop.f32.mrb[0].mxu0
    %v739 = vpop.f32.mrb[0].mxu0
    %v740 = vadd.f32 %v533, %v739
    %v741 = vpop.f32.mrb[0].mxu0
    %742 = vmatprep.mubr.bf16.mxu0 0
    %743 = vmatmul.mubr.bf16.gmra.mrb[0].mxu0 %v694
    %v744 = vpop.f32.mrb[0].mxu0
    %v745 = vadd.f32 %v534, %v744
    %v746 = vpop.f32.mrb[0].mxu0
    %v747 = vpop.f32.mrb[0].mxu0
    %v748 = vpop.f32.mrb[0].mxu0
    %749 = vdwg.mxu0
    %vm750 = vcmask 146432
    %v751 = vsel %vm750, %v737, -inf
    %752 = vmax.xlane.f32.xlu0 %v751
    %v753 = vpop.xlane.xlu0 %752
    %v754 = vsel %vm750, %v740, -inf
    %755 = vmax.xlane.f32.xlu0 %v754
    %v756 = vpop.xlane.xlu0 %755
    %vm757 = vcmask 140288
    %v758 = vsel %vm757, %v745, -inf
    %759 = vmax.xlane.f32.xlu0 %v758
    %v760 = vpop.xlane.xlu0 %759
    %v761 = vsub.f32 %v737, %v753
    %v762 = vsub.f32 %v740, %v756
    %v763 = vsub.f32 %v745, %v760
    %v764 = vmul.f32 %v761, 1.442695
    %v765 = vpow.pop %v764
    %v766 = vmul.f32 %v762, 1.442695
    %v767 = vpow.pop %v766
    %v768 = vmul.f32 %v763, 1.442695
    %v769 = vpow.pop %v768
    %v770 = vsel %vm750, %v765, 0.0
    %771 = vadd.xlane.f32.xlu0 %v770
    %v772 = vpop.xlane.xlu0 %771
    %v773 = vsel %vm750, %v767, 0.0
    %774 = vadd.xlane.f32.xlu0 %v773
    %v775 = vpop.xlane.xlu0 %774
    %v776 = vsel %vm757, %v769, 0.0
    %777 = vadd.xlane.f32.xlu0 %v776
    %v778 = vpop.xlane.xlu0 %777
    %v779 = vrcp.pop %v772
    %v780 = vrcp.pop %v775
    %v781 = vrcp.pop %v778
    %v782 = vmul.f32 %v765, %v779
    %v783 = vmul.f32 %v767, %v780
    %v784 = vmul.f32 %v769, %v781
    %788 = vrot.lane.b32.xlu0 %v668, 64
    %v789 = vpop.permute.xlu0 %788
    %790 = vrot.lane.b32.xlu0 %v671, 64
    %v791 = vpop.permute.xlu0 %790
    %792 = vrot.lane.b32.xlu0 %v676, 64
    %v793 = vpop.permute.xlu0 %792
    %v797 = vsel %vm539, %v789, 0.0
    %v798 = vsel %vm539, %v791, 0.0
    %v799 = vsel %vm539, %v793, 0.0
    %v800 = vpack.c.bf16 %v783, %v782
    %v801 = vpack.c.bf16 %v784, %v784
    %v802 = vpack.c.bf16 %v798, %v797
    %v803 = vpack.c.bf16 %v799, %v799
    %804 = vrot.lane.b32.xlu0 %v681, 120
    %v805 = vpop.permute.xlu0 %804
    %806 = vrot.lane.b32.xlu0 %v682, 120
    %v807 = vpop.permute.xlu0 %806
    %808 = vrot.lane.b32.xlu0 %v681, 88
    %v809 = vpop.permute.xlu0 %808
    %810 = vrot.lane.b32.xlu0 %v682, 88
    %v811 = vpop.permute.xlu0 %810
    %v813 = vsel %vm689, %v805, 0
    %v816 = vsel %vm689, %v807, 0
    %v819 = vsel %vm689, %v809, 0
    %v822 = vsel %vm689, %v811, 0
    %824 = vmatprep.subr.bf16.mxu0 0
    %825 = vmatpush1.bf16.xpose.msra.mxu0 %v819
    %826 = vmatprep.subr.bf16.mxu0 0
    %827 = vmatpush1.bf16.xpose.msra.mxu0 %v822
    %828 = vmatprep.subr.bf16.mxu0 0
    %829 = vmatpush1.bf16.xpose.msra.mxu0 0
    %830 = vmatprep.subr.bf16.mxu0 0
    %831 = vmatpush1.bf16.xpose.msra.mxu0 0
    %832 = vmatprep.subr.bf16.mxu0 0
    %833 = vmatpush1.bf16.xpose.msra.mxu0 0
    %834 = vmatprep.subr.bf16.mxu0 0
    %835 = vmatpush1.bf16.xpose.msra.mxu0 0
    %836 = vmatprep.subr.bf16.mxu0 0
    %837 = vmatpush1.bf16.xpose.msra.mxu0 0
    %838 = vmatprep.subr.bf16.mxu0 0
    %839 = vmatpush1.bf16.xpose.msra.mxu0 0
    %840 = vmatprep.subr.bf16.mxu0 0
    %841 = vmatpush1.bf16.xpose.msra.mxu0 0
    %842 = vmatprep.subr.bf16.mxu0 0
    %843 = vmatpush1.bf16.xpose.msra.mxu0 0
    %844 = vmatprep.subr.bf16.mxu0 0
    %845 = vmatpush1.bf16.xpose.msra.mxu0 0
    %846 = vmatprep.subr.bf16.mxu0 0
    %847 = vmatpush1.bf16.xpose.msra.mxu0 0
    %848 = vmatprep.subr.bf16.mxu0 0
    %849 = vmatpush1.bf16.xpose.msra.mxu0 0
    %850 = vmatprep.subr.bf16.mxu0 0
    %851 = vmatpush1.bf16.xpose.msra.mxu0 0
    %852 = vmatprep.subr.bf16.mxu0 0
    %853 = vmatpush1.bf16.xpose.msra.mxu0 0
    %854 = vmatprep.subr.bf16.mxu0 0
    %855 = vmatpush1.bf16.xpose.msra.mxu0 0
    %856 = vmatprep.mubr.bf16.mxu0 0
    %857 = vmatmul.mubr.bf16.gmra.mrb[0].mxu0 %v813
    %v858 = vpop.f32.mrb[0].mxu0
    %v859 = vadd.f32 %v532, %v858
    %v860 = vpop.f32.mrb[0].mxu0
    %v861 = vpop.f32.mrb[0].mxu0
    %v862 = vadd.f32 %v533, %v861
    %v863 = vpop.f32.mrb[0].mxu0
    %864 = vmatprep.mubr.bf16.mxu0 0
    %865 = vmatmul.mubr.bf16.gmra.mrb[0].mxu0 %v816
    %v866 = vpop.f32.mrb[0].mxu0
    %v867 = vadd.f32 %v534, %v866
    %v868 = vpop.f32.mrb[0].mxu0
    %v869 = vpop.f32.mrb[0].mxu0
    %v870 = vpop.f32.mrb[0].mxu0
    %871 = vdwg.mxu0
    %v872 = vsel %vm750, %v859, -inf
    %873 = vmax.xlane.f32.xlu0 %v872
    %v874 = vpop.xlane.xlu0 %873
    %v875 = vsel %vm750, %v862, -inf
    %876 = vmax.xlane.f32.xlu0 %v875
    %v877 = vpop.xlane.xlu0 %876
    %v878 = vsel %vm757, %v867, -inf
    %879 = vmax.xlane.f32.xlu0 %v878
    %v880 = vpop.xlane.xlu0 %879
    %v881 = vsub.f32 %v859, %v874
    %v882 = vsub.f32 %v862, %v877
    %v883 = vsub.f32 %v867, %v880
    %v884 = vmul.f32 %v881, 1.442695
    %v885 = vpow.pop %v884
    %v886 = vmul.f32 %v882, 1.442695
    %v887 = vpow.pop %v886
    %v888 = vmul.f32 %v883, 1.442695
    %v889 = vpow.pop %v888
    %v890 = vsel %vm750, %v885, 0.0
    %891 = vadd.xlane.f32.xlu0 %v890
    %v892 = vpop.xlane.xlu0 %891
    %v893 = vsel %vm750, %v887, 0.0
    %894 = vadd.xlane.f32.xlu0 %v893
    %v895 = vpop.xlane.xlu0 %894
    %v896 = vsel %vm757, %v889, 0.0
    %897 = vadd.xlane.f32.xlu0 %v896
    %v898 = vpop.xlane.xlu0 %897
    %v899 = vrcp.pop %v892
    %v900 = vrcp.pop %v895
    %v901 = vrcp.pop %v898
    %v902 = vmul.f32 %v885, %v899
    %v903 = vmul.f32 %v887, %v900
    %v904 = vmul.f32 %v889, %v901
    %v905 = vsel %vm542, %v789, 0.0
    %v906 = vsel %vm542, %v791, 0.0
    %v907 = vsel %vm542, %v793, 0.0
    %v908 = vpack.c.bf16 %v903, %v902
    %v909 = vpack.c.bf16 %v904, %v904
    %v910 = vpack.c.bf16 %v906, %v905
    %v911 = vpack.c.bf16 %v907, %v907
    %v913 = vsel %vm750, %v908, 0
    %v916 = vsel %vm750, %v909, 0
    %vm918 = vcmask 1040384
    %v920 = vsel %vm918, %v911, 0
    %922 = vmatprep.subr.bf16.mxu0 0
    %923 = vmatpush1.bf16.msra.mxu0 %v910
    %924 = vmatprep.subr.bf16.mxu0 0
    %925 = vmatpush1.bf16.msra.mxu0 %v920
    %926 = vmatprep.subr.bf16.mxu0 0
    %927 = vmatpush1.bf16.msra.mxu0 0
    %928 = vmatprep.subr.bf16.mxu0 0
    %929 = vmatpush1.bf16.msra.mxu0 0
    %930 = vmatprep.subr.bf16.mxu0 0
    %931 = vmatpush1.bf16.msra.mxu0 0
    %932 = vmatprep.subr.bf16.mxu0 0
    %933 = vmatpush1.bf16.msra.mxu0 0
    %934 = vmatprep.subr.bf16.mxu0 0
    %935 = vmatpush1.bf16.msra.mxu0 0
    %936 = vmatprep.subr.bf16.mxu0 0
    %937 = vmatpush1.bf16.msra.mxu0 0
    %938 = vmatprep.subr.bf16.mxu0 0
    %939 = vmatpush1.bf16.msra.mxu0 0
    %940 = vmatprep.subr.bf16.mxu0 0
    %941 = vmatpush1.bf16.msra.mxu0 0
    %942 = vmatprep.subr.bf16.mxu0 0
    %943 = vmatpush1.bf16.msra.mxu0 0
    %944 = vmatprep.subr.bf16.mxu0 0
    %945 = vmatpush1.bf16.msra.mxu0 0
    %946 = vmatprep.subr.bf16.mxu0 0
    %947 = vmatpush1.bf16.msra.mxu0 0
    %948 = vmatprep.subr.bf16.mxu0 0
    %949 = vmatpush1.bf16.msra.mxu0 0
    %950 = vmatprep.subr.bf16.mxu0 0
    %951 = vmatpush1.bf16.msra.mxu0 0
    %952 = vmatprep.subr.bf16.mxu0 0
    %953 = vmatpush1.bf16.msra.mxu0 0
    %954 = vmatprep.mubr.bf16.mxu0 0
    %955 = vmatmul.mubr.bf16.gmra.mrb[0].mxu0 %v913
    %v956 = vpop.f32.mrb[0].mxu0
    %v957 = vadd.f32 0.0, %v956
    %v958 = vpop.f32.mrb[0].mxu0
    %v959 = vpop.f32.mrb[0].mxu0
    %v960 = vadd.f32 0.0, %v959
    %v961 = vpop.f32.mrb[0].mxu0
    %962 = vmatprep.mubr.bf16.mxu0 0
    %963 = vmatmul.mubr.bf16.gmra.mrb[0].mxu0 %v916
    %v964 = vpop.f32.mrb[0].mxu0
    %v965 = vadd.f32 0.0, %v964
    %v966 = vpop.f32.mrb[0].mxu0
    %v967 = vpop.f32.mrb[0].mxu0
    %v968 = vpop.f32.mrb[0].mxu0
    %969 = vdwg.mxu0
    %v971 = vsel %vm750, %v800, 0
    %v974 = vsel %vm750, %v801, 0
    %v977 = vsel %vm918, %v803, 0
    %979 = vmatprep.subr.bf16.mxu0 0
    %980 = vmatpush1.bf16.msra.mxu0 %v802
    %981 = vmatprep.subr.bf16.mxu0 0
    %982 = vmatpush1.bf16.msra.mxu0 %v977
    %983 = vmatprep.subr.bf16.mxu0 0
    %984 = vmatpush1.bf16.msra.mxu0 0
    %985 = vmatprep.subr.bf16.mxu0 0
    %986 = vmatpush1.bf16.msra.mxu0 0
    %987 = vmatprep.subr.bf16.mxu0 0
    %988 = vmatpush1.bf16.msra.mxu0 0
    %989 = vmatprep.subr.bf16.mxu0 0
    %990 = vmatpush1.bf16.msra.mxu0 0
    %991 = vmatprep.subr.bf16.mxu0 0
    %992 = vmatpush1.bf16.msra.mxu0 0
    %993 = vmatprep.subr.bf16.mxu0 0
    %994 = vmatpush1.bf16.msra.mxu0 0
    %995 = vmatprep.subr.bf16.mxu0 0
    %996 = vmatpush1.bf16.msra.mxu0 0
    %997 = vmatprep.subr.bf16.mxu0 0
    %998 = vmatpush1.bf16.msra.mxu0 0
    %999 = vmatprep.subr.bf16.mxu0 0
    %1000 = vmatpush1.bf16.msra.mxu0 0
    %1001 = vmatprep.subr.bf16.mxu0 0
    %1002 = vmatpush1.bf16.msra.mxu0 0
    %1003 = vmatprep.subr.bf16.mxu0 0
    %1004 = vmatpush1.bf16.msra.mxu0 0
    %1005 = vmatprep.subr.bf16.mxu0 0
    %1006 = vmatpush1.bf16.msra.mxu0 0
    %1007 = vmatprep.subr.bf16.mxu0 0
    %1008 = vmatpush1.bf16.msra.mxu0 0
    %1009 = vmatprep.subr.bf16.mxu0 0
    %1010 = vmatpush1.bf16.msra.mxu0 0
    %1011 = vmatprep.mubr.bf16.mxu0 0
    %1012 = vmatmul.mubr.bf16.gmra.mrb[0].mxu0 %v971
    %v1013 = vpop.f32.mrb[0].mxu0
    %v1014 = vadd.f32 %v957, %v1013
    %v1015 = vpop.f32.mrb[0].mxu0
    %v1016 = vpop.f32.mrb[0].mxu0
    %v1017 = vadd.f32 %v960, %v1016
    %v1018 = vpop.f32.mrb[0].mxu0
    %1019 = vmatprep.mubr.bf16.mxu0 0
    %1020 = vmatmul.mubr.bf16.gmra.mrb[0].mxu0 %v974
    %v1021 = vpop.f32.mrb[0].mxu0
    %v1022 = vadd.f32 %v965, %v1021
    %v1023 = vpop.f32.mrb[0].mxu0
    %v1024 = vpop.f32.mrb[0].mxu0
    %v1025 = vpop.f32.mrb[0].mxu0
    %1026 = vdwg.mxu0
    %1027 = vrot.lane.b32.xlu0 %v681, 112
    %v1028 = vpop.permute.xlu0 %1027
    %1029 = vrot.lane.b32.xlu0 %v682, 112
    %v1030 = vpop.permute.xlu0 %1029
    %1031 = vrot.lane.b32.xlu0 %v681, 80
    %v1032 = vpop.permute.xlu0 %1031
    %1033 = vrot.lane.b32.xlu0 %v682, 80
    %v1034 = vpop.permute.xlu0 %1033
    %v1036 = vsel %vm689, %v1028, 0
    %v1039 = vsel %vm689, %v1030, 0
    %v1042 = vsel %vm689, %v1032, 0
    %v1045 = vsel %vm689, %v1034, 0
    %1047 = vmatprep.subr.bf16.mxu0 0
    %1048 = vmatpush1.bf16.xpose.msra.mxu0 %v1042
    %1049 = vmatprep.subr.bf16.mxu0 0
    %1050 = vmatpush1.bf16.xpose.msra.mxu0 %v1045
    %1051 = vmatprep.subr.bf16.mxu0 0
    %1052 = vmatpush1.bf16.xpose.msra.mxu0 0
    %1053 = vmatprep.subr.bf16.mxu0 0
    %1054 = vmatpush1.bf16.xpose.msra.mxu0 0
    %1055 = vmatprep.subr.bf16.mxu0 0
    %1056 = vmatpush1.bf16.xpose.msra.mxu0 0
    %1057 = vmatprep.subr.bf16.mxu0 0
    %1058 = vmatpush1.bf16.xpose.msra.mxu0 0
    %1059 = vmatprep.subr.bf16.mxu0 0
    %1060 = vmatpush1.bf16.xpose.msra.mxu0 0
    %1061 = vmatprep.subr.bf16.mxu0 0
    %1062 = vmatpush1.bf16.xpose.msra.mxu0 0
    %1063 = vmatprep.subr.bf16.mxu0 0
    %1064 = vmatpush1.bf16.xpose.msra.mxu0 0
    %1065 = vmatprep.subr.bf16.mxu0 0
    %1066 = vmatpush1.bf16.xpose.msra.mxu0 0
    %1067 = vmatprep.subr.bf16.mxu0 0
    %1068 = vmatpush1.bf16.xpose.msra.mxu0 0
    %1069 = vmatprep.subr.bf16.mxu0 0
    %1070 = vmatpush1.bf16.xpose.msra.mxu0 0
    %1071 = vmatprep.subr.bf16.mxu0 0
    %1072 = vmatpush1.bf16.xpose.msra.mxu0 0
    %1073 = vmatprep.subr.bf16.mxu0 0
    %1074 = vmatpush1.bf16.xpose.msra.mxu0 0
    %1075 = vmatprep.subr.bf16.mxu0 0
    %1076 = vmatpush1.bf16.xpose.msra.mxu0 0
    %1077 = vmatprep.subr.bf16.mxu0 0
    %1078 = vmatpush1.bf16.xpose.msra.mxu0 0
    %1079 = vmatprep.mubr.bf16.mxu0 0
    %1080 = vmatmul.mubr.bf16.gmra.mrb[0].mxu0 %v1036
    %v1081 = vpop.f32.mrb[0].mxu0
    %v1082 = vadd.f32 %v532, %v1081
    %v1083 = vpop.f32.mrb[0].mxu0
    %v1084 = vpop.f32.mrb[0].mxu0
    %v1085 = vadd.f32 %v533, %v1084
    %v1086 = vpop.f32.mrb[0].mxu0
    %1087 = vmatprep.mubr.bf16.mxu0 0
    %1088 = vmatmul.mubr.bf16.gmra.mrb[0].mxu0 %v1039
    %v1089 = vpop.f32.mrb[0].mxu0
    %v1090 = vadd.f32 %v534, %v1089
    %v1091 = vpop.f32.mrb[0].mxu0
    %v1092 = vpop.f32.mrb[0].mxu0
    %v1093 = vpop.f32.mrb[0].mxu0
    %1094 = vdwg.mxu0
    %v1095 = vsel %vm750, %v1082, -inf
    %1096 = vmax.xlane.f32.xlu0 %v1095
    %v1097 = vpop.xlane.xlu0 %1096
    %v1098 = vsel %vm750, %v1085, -inf
    %1099 = vmax.xlane.f32.xlu0 %v1098
    %v1100 = vpop.xlane.xlu0 %1099
    %v1101 = vsel %vm757, %v1090, -inf
    %1102 = vmax.xlane.f32.xlu0 %v1101
    %v1103 = vpop.xlane.xlu0 %1102
    %v1104 = vsub.f32 %v1082, %v1097
    %v1105 = vsub.f32 %v1085, %v1100
    %v1106 = vsub.f32 %v1090, %v1103
    %v1107 = vmul.f32 %v1104, 1.442695
    %v1108 = vpow.pop %v1107
    %v1109 = vmul.f32 %v1105, 1.442695
    %v1110 = vpow.pop %v1109
    %v1111 = vmul.f32 %v1106, 1.442695
    %v1112 = vpow.pop %v1111
    %v1113 = vsel %vm750, %v1108, 0.0
    %1114 = vadd.xlane.f32.xlu0 %v1113
    %v1115 = vpop.xlane.xlu0 %1114
    %v1116 = vsel %vm750, %v1110, 0.0
    %1117 = vadd.xlane.f32.xlu0 %v1116
    %v1118 = vpop.xlane.xlu0 %1117
    %v1119 = vsel %vm757, %v1112, 0.0
    %1120 = vadd.xlane.f32.xlu0 %v1119
    %v1121 = vpop.xlane.xlu0 %1120
    %v1122 = vrcp.pop %v1115
    %v1123 = vrcp.pop %v1118
    %v1124 = vrcp.pop %v1121
    %v1125 = vmul.f32 %v1108, %v1122
    %v1126 = vmul.f32 %v1110, %v1123
    %v1127 = vmul.f32 %v1112, %v1124
    %v1128 = vsel %vm545, %v789, 0.0
    %v1129 = vsel %vm545, %v791, 0.0
    %v1130 = vsel %vm545, %v793, 0.0
    %v1131 = vpack.c.bf16 %v1126, %v1125
    %v1132 = vpack.c.bf16 %v1127, %v1127
    %v1133 = vpack.c.bf16 %v1129, %v1128
    %v1134 = vpack.c.bf16 %v1130, %v1130
    %v1136 = vsel %vm750, %v1131, 0
    %v1139 = vsel %vm750, %v1132, 0
    %v1142 = vsel %vm918, %v1134, 0
    %1144 = vmatprep.subr.bf16.mxu0 0
    %1145 = vmatpush1.bf16.msra.mxu0 %v1133
    %1146 = vmatprep.subr.bf16.mxu0 0
    %1147 = vmatpush1.bf16.msra.mxu0 %v1142
    %1148 = vmatprep.subr.bf16.mxu0 0
    %1149 = vmatpush1.bf16.msra.mxu0 0
    %1150 = vmatprep.subr.bf16.mxu0 0
    %1151 = vmatpush1.bf16.msra.mxu0 0
    %1152 = vmatprep.subr.bf16.mxu0 0
    %1153 = vmatpush1.bf16.msra.mxu0 0
    %1154 = vmatprep.subr.bf16.mxu0 0
    %1155 = vmatpush1.bf16.msra.mxu0 0
    %1156 = vmatprep.subr.bf16.mxu0 0
    %1157 = vmatpush1.bf16.msra.mxu0 0
    %1158 = vmatprep.subr.bf16.mxu0 0
    %1159 = vmatpush1.bf16.msra.mxu0 0
    %1160 = vmatprep.subr.bf16.mxu0 0
    %1161 = vmatpush1.bf16.msra.mxu0 0
    %1162 = vmatprep.subr.bf16.mxu0 0
    %1163 = vmatpush1.bf16.msra.mxu0 0
    %1164 = vmatprep.subr.bf16.mxu0 0
    %1165 = vmatpush1.bf16.msra.mxu0 0
    %1166 = vmatprep.subr.bf16.mxu0 0
    %1167 = vmatpush1.bf16.msra.mxu0 0
    %1168 = vmatprep.subr.bf16.mxu0 0
    %1169 = vmatpush1.bf16.msra.mxu0 0
    %1170 = vmatprep.subr.bf16.mxu0 0
    %1171 = vmatpush1.bf16.msra.mxu0 0
    %1172 = vmatprep.subr.bf16.mxu0 0
    %1173 = vmatpush1.bf16.msra.mxu0 0
    %1174 = vmatprep.subr.bf16.mxu0 0
    %1175 = vmatpush1.bf16.msra.mxu0 0
    %1176 = vmatprep.mubr.bf16.mxu0 0
    %1177 = vmatmul.mubr.bf16.gmra.mrb[0].mxu0 %v1136
    %v1178 = vpop.f32.mrb[0].mxu0
    %v1179 = vadd.f32 0.0, %v1178
    %v1180 = vpop.f32.mrb[0].mxu0
    %v1181 = vpop.f32.mrb[0].mxu0
    %v1182 = vadd.f32 0.0, %v1181
    %v1183 = vpop.f32.mrb[0].mxu0
    %1184 = vmatprep.mubr.bf16.mxu0 0
    %1185 = vmatmul.mubr.bf16.gmra.mrb[0].mxu0 %v1139
    %v1186 = vpop.f32.mrb[0].mxu0
    %v1187 = vadd.f32 0.0, %v1186
    %v1188 = vpop.f32.mrb[0].mxu0
    %v1189 = vpop.f32.mrb[0].mxu0
    %v1190 = vpop.f32.mrb[0].mxu0
    %1191 = vdwg.mxu0
    %v1192 = vadd.f32 %v1014, %v1179
    %v1193 = vadd.f32 %v1017, %v1182
    %v1194 = vadd.f32 %v1022, %v1187
    %1195 = vrot.lane.b32.xlu0 %v681, 104
    %v1196 = vpop.permute.xlu0 %1195
    %1197 = vrot.lane.b32.xlu0 %v682, 104
    %v1198 = vpop.permute.xlu0 %1197
    %1199 = vrot.lane.b32.xlu0 %v681, 72
    %v1200 = vpop.permute.xlu0 %1199
    %1201 = vrot.lane.b32.xlu0 %v682, 72
    %v1202 = vpop.permute.xlu0 %1201
    %v1204 = vsel %vm689, %v1196, 0
    %v1207 = vsel %vm689, %v1198, 0
    %v1210 = vsel %vm689, %v1200, 0
    %v1213 = vsel %vm689, %v1202, 0
    %1215 = vmatprep.subr.bf16.mxu0 0
    %1216 = vmatpush1.bf16.xpose.msra.mxu0 %v1210
    %1217 = vmatprep.subr.bf16.mxu0 0
    %1218 = vmatpush1.bf16.xpose.msra.mxu0 %v1213
    %1219 = vmatprep.subr.bf16.mxu0 0
    %1220 = vmatpush1.bf16.xpose.msra.mxu0 0
    %1221 = vmatprep.subr.bf16.mxu0 0
    %1222 = vmatpush1.bf16.xpose.msra.mxu0 0
    %1223 = vmatprep.subr.bf16.mxu0 0
    %1224 = vmatpush1.bf16.xpose.msra.mxu0 0
    %1225 = vmatprep.subr.bf16.mxu0 0
    %1226 = vmatpush1.bf16.xpose.msra.mxu0 0
    %1227 = vmatprep.subr.bf16.mxu0 0
    %1228 = vmatpush1.bf16.xpose.msra.mxu0 0
    %1229 = vmatprep.subr.bf16.mxu0 0
    %1230 = vmatpush1.bf16.xpose.msra.mxu0 0
    %1231 = vmatprep.subr.bf16.mxu0 0
    %1232 = vmatpush1.bf16.xpose.msra.mxu0 0
    %1233 = vmatprep.subr.bf16.mxu0 0
    %1234 = vmatpush1.bf16.xpose.msra.mxu0 0
    %1235 = vmatprep.subr.bf16.mxu0 0
    %1236 = vmatpush1.bf16.xpose.msra.mxu0 0
    %1237 = vmatprep.subr.bf16.mxu0 0
    %1238 = vmatpush1.bf16.xpose.msra.mxu0 0
    %1239 = vmatprep.subr.bf16.mxu0 0
    %1240 = vmatpush1.bf16.xpose.msra.mxu0 0
    %1241 = vmatprep.subr.bf16.mxu0 0
    %1242 = vmatpush1.bf16.xpose.msra.mxu0 0
    %1243 = vmatprep.subr.bf16.mxu0 0
    %1244 = vmatpush1.bf16.xpose.msra.mxu0 0
    %1245 = vmatprep.subr.bf16.mxu0 0
    %1246 = vmatpush1.bf16.xpose.msra.mxu0 0
    %1247 = vmatprep.mubr.bf16.mxu0 0
    %1248 = vmatmul.mubr.bf16.gmra.mrb[0].mxu0 %v1204
    %v1249 = vpop.f32.mrb[0].mxu0
    %v1250 = vadd.f32 %v532, %v1249
    %v1251 = vpop.f32.mrb[0].mxu0
    %v1252 = vpop.f32.mrb[0].mxu0
    %v1253 = vadd.f32 %v533, %v1252
    %v1254 = vpop.f32.mrb[0].mxu0
    %1255 = vmatprep.mubr.bf16.mxu0 0
    %1256 = vmatmul.mubr.bf16.gmra.mrb[0].mxu0 %v1207
    %v1257 = vpop.f32.mrb[0].mxu0
    %v1258 = vadd.f32 %v534, %v1257
    %v1259 = vpop.f32.mrb[0].mxu0
    %v1260 = vpop.f32.mrb[0].mxu0
    %v1261 = vpop.f32.mrb[0].mxu0
    %1262 = vdwg.mxu0
    %v1263 = vsel %vm750, %v1250, -inf
    %1264 = vmax.xlane.f32.xlu0 %v1263
    %v1265 = vpop.xlane.xlu0 %1264
    %v1266 = vsel %vm750, %v1253, -inf
    %1267 = vmax.xlane.f32.xlu0 %v1266
    %v1268 = vpop.xlane.xlu0 %1267
    %v1269 = vsel %vm757, %v1258, -inf
    %1270 = vmax.xlane.f32.xlu0 %v1269
    %v1271 = vpop.xlane.xlu0 %1270
    %v1272 = vsub.f32 %v1250, %v1265
    %v1273 = vsub.f32 %v1253, %v1268
    %v1274 = vsub.f32 %v1258, %v1271
    %v1275 = vmul.f32 %v1272, 1.442695
    %v1276 = vpow.pop %v1275
    %v1277 = vmul.f32 %v1273, 1.442695
    %v1278 = vpow.pop %v1277
    %v1279 = vmul.f32 %v1274, 1.442695
    %v1280 = vpow.pop %v1279
    %v1281 = vsel %vm750, %v1276, 0.0
    %1282 = vadd.xlane.f32.xlu0 %v1281
    %v1283 = vpop.xlane.xlu0 %1282
    %v1284 = vsel %vm750, %v1278, 0.0
    %1285 = vadd.xlane.f32.xlu0 %v1284
    %v1286 = vpop.xlane.xlu0 %1285
    %v1287 = vsel %vm757, %v1280, 0.0
    %1288 = vadd.xlane.f32.xlu0 %v1287
    %v1289 = vpop.xlane.xlu0 %1288
    %v1290 = vrcp.pop %v1283
    %v1291 = vrcp.pop %v1286
    %v1292 = vrcp.pop %v1289
    %v1293 = vmul.f32 %v1276, %v1290
    %v1294 = vmul.f32 %v1278, %v1291
    %v1295 = vmul.f32 %v1280, %v1292
    %v1296 = vsel %vm548, %v789, 0.0
    %v1297 = vsel %vm548, %v791, 0.0
    %v1298 = vsel %vm548, %v793, 0.0
    %v1299 = vpack.c.bf16 %v1294, %v1293
    %v1300 = vpack.c.bf16 %v1295, %v1295
    %v1301 = vpack.c.bf16 %v1297, %v1296
    %v1302 = vpack.c.bf16 %v1298, %v1298
    %v1304 = vsel %vm750, %v1299, 0
    %v1307 = vsel %vm750, %v1300, 0
    %v1310 = vsel %vm918, %v1302, 0
    %1312 = vmatprep.subr.bf16.mxu0 0
    %1313 = vmatpush1.bf16.msra.mxu0 %v1301
    %1314 = vmatprep.subr.bf16.mxu0 0
    %1315 = vmatpush1.bf16.msra.mxu0 %v1310
    %1316 = vmatprep.subr.bf16.mxu0 0
    %1317 = vmatpush1.bf16.msra.mxu0 0
    %1318 = vmatprep.subr.bf16.mxu0 0
    %1319 = vmatpush1.bf16.msra.mxu0 0
    %1320 = vmatprep.subr.bf16.mxu0 0
    %1321 = vmatpush1.bf16.msra.mxu0 0
    %1322 = vmatprep.subr.bf16.mxu0 0
    %1323 = vmatpush1.bf16.msra.mxu0 0
    %1324 = vmatprep.subr.bf16.mxu0 0
    %1325 = vmatpush1.bf16.msra.mxu0 0
    %1326 = vmatprep.subr.bf16.mxu0 0
    %1327 = vmatpush1.bf16.msra.mxu0 0
    %1328 = vmatprep.subr.bf16.mxu0 0
    %1329 = vmatpush1.bf16.msra.mxu0 0
    %1330 = vmatprep.subr.bf16.mxu0 0
    %1331 = vmatpush1.bf16.msra.mxu0 0
    %1332 = vmatprep.subr.bf16.mxu0 0
    %1333 = vmatpush1.bf16.msra.mxu0 0
    %1334 = vmatprep.subr.bf16.mxu0 0
    %1335 = vmatpush1.bf16.msra.mxu0 0
    %1336 = vmatprep.subr.bf16.mxu0 0
    %1337 = vmatpush1.bf16.msra.mxu0 0
    %1338 = vmatprep.subr.bf16.mxu0 0
    %1339 = vmatpush1.bf16.msra.mxu0 0
    %1340 = vmatprep.subr.bf16.mxu0 0
    %1341 = vmatpush1.bf16.msra.mxu0 0
    %1342 = vmatprep.subr.bf16.mxu0 0
    %1343 = vmatpush1.bf16.msra.mxu0 0
    %1344 = vmatprep.mubr.bf16.mxu0 0
    %1345 = vmatmul.mubr.bf16.gmra.mrb[0].mxu0 %v1304
    %v1346 = vpop.f32.mrb[0].mxu0
    %v1347 = vadd.f32 0.0, %v1346
    %v1348 = vpop.f32.mrb[0].mxu0
    %v1349 = vpop.f32.mrb[0].mxu0
    %v1350 = vadd.f32 0.0, %v1349
    %v1351 = vpop.f32.mrb[0].mxu0
    %1352 = vmatprep.mubr.bf16.mxu0 0
    %1353 = vmatmul.mubr.bf16.gmra.mrb[0].mxu0 %v1307
    %v1354 = vpop.f32.mrb[0].mxu0
    %v1355 = vadd.f32 0.0, %v1354
    %v1356 = vpop.f32.mrb[0].mxu0
    %v1357 = vpop.f32.mrb[0].mxu0
    %v1358 = vpop.f32.mrb[0].mxu0
    %1359 = vdwg.mxu0
    %v1360 = vadd.f32 %v1192, %v1347
    %v1361 = vadd.f32 %v1193, %v1350
    %v1362 = vadd.f32 %v1194, %v1355
    %v1363 = vld [vmem:[%s2 + $0xc0] sm:$0xf]
    %v1364 = vld [vmem:[%s2 + $0xc4] sm:$0xf]
    %v1365 = vld [vmem:[%s2 + $0xc8] sm:$0xf]
    %v1366 = vld [vmem:[%s2 + $0xcc] sm:$0xf]
    %v1367 = vpack.c.bf16 %v1361, %v1360
    %v1368 = vpack.c.bf16 %v1362, %v1362
    %v1369 = vlaneseq
    %v1370 = vshrl.u32 %v1369, 7
    %v1371 = vsub.s32 0, %v1370
    %v1372 = vrot.slane %v551, %v1371
    %v1377 = vunpack.c.l.b16 %v1363
    %v1378 = vunpack.c.l.b16 %v1364
    %v1379 = vunpack.c.l.b16 %v1365
    %v1380 = vunpack.c.l.b16 %v1366
    %v1381 = vpack.c.b16 %v1378, %v1377
    %v1382 = vpack.c.b16 %v1380, %v1379
    %v1386 = vsel %vm454, %v1367, 0
    %v1389 = vsel %vm454, %v1368, 0
    %1391 = vmatprep.subr.bf16.mxu0 0
    %1392 = vmatpush1.bf16.msra.mxu0 %v1381
    %1393 = vmatprep.subr.bf16.mxu0 0
    %1394 = vmatpush1.bf16.msra.mxu0 %v1382
    %1395 = vmatprep.subr.bf16.mxu0 0
    %1396 = vmatpush1.bf16.msra.mxu0 0
    %1397 = vmatprep.subr.bf16.mxu0 0
    %1398 = vmatpush1.bf16.msra.mxu0 0
    %1399 = vmatprep.subr.bf16.mxu0 0
    %1400 = vmatpush1.bf16.msra.mxu0 0
    %1401 = vmatprep.subr.bf16.mxu0 0
    %1402 = vmatpush1.bf16.msra.mxu0 0
    %1403 = vmatprep.subr.bf16.mxu0 0
    %1404 = vmatpush1.bf16.msra.mxu0 0
    %1405 = vmatprep.subr.bf16.mxu0 0
    %1406 = vmatpush1.bf16.msra.mxu0 0
    %1407 = vmatprep.subr.bf16.mxu0 0
    %1408 = vmatpush1.bf16.msra.mxu0 0
    %1409 = vmatprep.subr.bf16.mxu0 0
    %1410 = vmatpush1.bf16.msra.mxu0 0
    %1411 = vmatprep.subr.bf16.mxu0 0
    %1412 = vmatpush1.bf16.msra.mxu0 0
    %1413 = vmatprep.subr.bf16.mxu0 0
    %1414 = vmatpush1.bf16.msra.mxu0 0
    %1415 = vmatprep.subr.bf16.mxu0 0
    %1416 = vmatpush1.bf16.msra.mxu0 0
    %1417 = vmatprep.subr.bf16.mxu0 0
    %1418 = vmatpush1.bf16.msra.mxu0 0
    %1419 = vmatprep.subr.bf16.mxu0 0
    %1420 = vmatpush1.bf16.msra.mxu0 0
    %1421 = vmatprep.subr.bf16.mxu0 0
    %1422 = vmatpush1.bf16.msra.mxu0 0
    %1423 = vmatprep.mubr.bf16.mxu0 0
    %1424 = vmatmul.mubr.bf16.gmra.mrb[0].mxu0 %v1386
    %v1425 = vpop.f32.mrb[0].mxu0
    %v1426 = vadd.f32 %v1372, %v1425
    %v1427 = vpop.f32.mrb[0].mxu0
    %v1428 = vpop.f32.mrb[0].mxu0
    %v1429 = vadd.f32 %v1372, %v1428
    %v1430 = vpop.f32.mrb[0].mxu0
    %1431 = vmatprep.mubr.bf16.mxu0 0
    %1432 = vmatmul.mubr.bf16.gmra.mrb[0].mxu0 %v1389
    %v1433 = vpop.f32.mrb[0].mxu0
    %v1434 = vadd.f32 %v1372, %v1433
    %v1435 = vpop.f32.mrb[0].mxu0
    %v1436 = vpop.f32.mrb[0].mxu0
    %v1437 = vpop.f32.mrb[0].mxu0
    %1438 = vdwg.mxu0
    %v1439 = vadd.f32 %v1426, %v606
    %v1440 = vadd.f32 %v1429, %v607
    %v1441 = vadd.f32 %v1434, %v608
    %v1442 = vadd.f32 %v1439, %v529
    %v1443 = vadd.f32 %v1440, %v530
    %v1444 = vadd.f32 %v1441, %v531
    %v1445 = vsel %vm454, %v1442, 0.0
    %1446 = vadd.xlane.f32.xlu0 %v1445
    %v1447 = vpop.xlane.xlu0 %1446
    %v1448 = vsel %vm454, %v1443, 0.0
    %1449 = vadd.xlane.f32.xlu0 %v1448
    %v1450 = vpop.xlane.xlu0 %1449
    %v1451 = vsel %vm461, %v1444, 0.0
    %1452 = vadd.xlane.f32.xlu0 %v1451
    %v1453 = vpop.xlane.xlu0 %1452
    %v1454 = vmul.f32 %v1447, %v465
    %v1455 = vmul.f32 %v1450, %v465
    %v1456 = vmul.f32 %v1453, %v465
    %v1457 = vsub.f32 %v1442, %v1454
    %v1458 = vsub.f32 %v1443, %v1455
    %v1459 = vsub.f32 %v1444, %v1456
    %v1460 = vmul.f32 %v1457, %v1457
    %v1461 = vmul.f32 %v1458, %v1458
    %v1462 = vmul.f32 %v1459, %v1459
    %v1463 = vsel %vm454, %v1460, 0.0
    %1464 = vadd.xlane.f32.xlu0 %v1463
    %v1465 = vpop.xlane.xlu0 %1464
    %v1466 = vsel %vm454, %v1461, 0.0
    %1467 = vadd.xlane.f32.xlu0 %v1466
    %v1468 = vpop.xlane.xlu0 %1467
    %v1469 = vsel %vm461, %v1462, 0.0
    %1470 = vadd.xlane.f32.xlu0 %v1469
    %v1471 = vpop.xlane.xlu0 %1470
    %v1472 = vmul.f32 %v1465, %v465
    %v1473 = vmul.f32 %v1468, %v465
    %v1474 = vmul.f32 %v1471, %v465
    %v1475 = vadd.f32 %v1472, 1e-05
    %v1476 = vadd.f32 %v1473, 1e-05
    %v1477 = vadd.f32 %v1474, 1e-05
    %v1478 = vrsqrt.pop %v1475
    %v1479 = vrsqrt.pop %v1476
    %v1480 = vrsqrt.pop %v1477
    %v1481 = vmul.f32 %v1457, %v1478
    %v1482 = vmul.f32 %v1458, %v1479
    %v1483 = vmul.f32 %v1459, %v1480
    %v1484 = vlaneseq
    %v1485 = vshrl.u32 %v1484, 7
    %v1486 = vsub.s32 0, %v1485
    %v1487 = vrot.slane %v552, %v1486
    %v1488 = vmul.f32 %v1481, %v1487
    %v1489 = vmul.f32 %v1482, %v1487
    %v1490 = vmul.f32 %v1483, %v1487
    %v1491 = vlaneseq
    %v1492 = vshrl.u32 %v1491, 7
    %v1493 = vsub.s32 0, %v1492
    %v1494 = vrot.slane %v553, %v1493
    %v1495 = vadd.f32 %v1488, %v1494
    %v1496 = vadd.f32 %v1489, %v1494
    %v1497 = vadd.f32 %v1490, %v1494
    %v1498 = vld [vmem:[%s3 + $0x20] sm:$0xf]
    %v1499 = vld [vmem:[%s3 + $0x24] sm:$0xf]
    %v1500 = vld [vmem:[%s3 + $0x28] sm:$0xf]
    %v1501 = vld [vmem:[%s3 + $0x2c] sm:$0xf]
    %v1502 = vpack.c.bf16 %v1496, %v1495
    %v1503 = vpack.c.bf16 %v1497, %v1497
    %v1504 = vlaneseq
    %v1505 = vshrl.u32 %v1504, 7
    %v1506 = vsub.s32 0, %v1505
    %v1507 = vrot.slane %v555, %v1506
    %v1512 = vunpack.c.l.b16 %v1498
    %v1513 = vunpack.c.l.b16 %v1499
    %v1514 = vunpack.c.l.b16 %v1500
    %v1515 = vunpack.c.l.b16 %v1501
    %v1516 = vpack.c.b16 %v1513, %v1512
    %v1517 = vpack.c.b16 %v1515, %v1514
    %v1521 = vsel %vm454, %v1502, 0
    %v1524 = vsel %vm454, %v1503, 0
    %1526 = vmatprep.subr.bf16.mxu0 0
    %1527 = vmatpush1.bf16.msra.mxu0 %v1516
    %1528 = vmatprep.subr.bf16.mxu0 0
    %1529 = vmatpush1.bf16.msra.mxu0 %v1517
    %1530 = vmatprep.subr.bf16.mxu0 0
    %1531 = vmatpush1.bf16.msra.mxu0 0
    %1532 = vmatprep.subr.bf16.mxu0 0
    %1533 = vmatpush1.bf16.msra.mxu0 0
    %1534 = vmatprep.subr.bf16.mxu0 0
    %1535 = vmatpush1.bf16.msra.mxu0 0
    %1536 = vmatprep.subr.bf16.mxu0 0
    %1537 = vmatpush1.bf16.msra.mxu0 0
    %1538 = vmatprep.subr.bf16.mxu0 0
    %1539 = vmatpush1.bf16.msra.mxu0 0
    %1540 = vmatprep.subr.bf16.mxu0 0
    %1541 = vmatpush1.bf16.msra.mxu0 0
    %1542 = vmatprep.subr.bf16.mxu0 0
    %1543 = vmatpush1.bf16.msra.mxu0 0
    %1544 = vmatprep.subr.bf16.mxu0 0
    %1545 = vmatpush1.bf16.msra.mxu0 0
    %1546 = vmatprep.subr.bf16.mxu0 0
    %1547 = vmatpush1.bf16.msra.mxu0 0
    %1548 = vmatprep.subr.bf16.mxu0 0
    %1549 = vmatpush1.bf16.msra.mxu0 0
    %1550 = vmatprep.subr.bf16.mxu0 0
    %1551 = vmatpush1.bf16.msra.mxu0 0
    %1552 = vmatprep.subr.bf16.mxu0 0
    %1553 = vmatpush1.bf16.msra.mxu0 0
    %1554 = vmatprep.subr.bf16.mxu0 0
    %1555 = vmatpush1.bf16.msra.mxu0 0
    %1556 = vmatprep.subr.bf16.mxu0 0
    %1557 = vmatpush1.bf16.msra.mxu0 0
    %1558 = vmatprep.mubr.bf16.mxu0 0
    %1559 = vmatmul.mubr.bf16.gmra.mrb[0].mxu0 %v1521
    %v1560 = vpop.f32.mrb[0].mxu0
    %v1561 = vadd.f32 %v1507, %v1560
    %v1562 = vpop.f32.mrb[0].mxu0
    %v1563 = vpop.f32.mrb[0].mxu0
    %v1564 = vadd.f32 %v1507, %v1563
    %v1565 = vpop.f32.mrb[0].mxu0
    %1566 = vmatprep.mubr.bf16.mxu0 0
    %1567 = vmatmul.mubr.bf16.gmra.mrb[0].mxu0 %v1524
    %v1568 = vpop.f32.mrb[0].mxu0
    %v1569 = vadd.f32 %v1507, %v1568
    %v1570 = vpop.f32.mrb[0].mxu0
    %v1571 = vpop.f32.mrb[0].mxu0
    %v1572 = vpop.f32.mrb[0].mxu0
    %1573 = vdwg.mxu0
    %v1574 = vmul.f32 %v1561, 0.5
    %v1575 = vmul.f32 %v1564, 0.5
    %v1576 = vmul.f32 %v1569, 0.5
    %v1577 = vmul.f32 %v1561, 0.70710677
    %v1578 = vmul.f32 %v1564, 0.70710677
    %v1579 = vmul.f32 %v1569, 0.70710677
    %vm1580 = vcmp.ge.f32.partialorder %v1577, 0.0
    %vm1581 = vcmp.ge.f32.partialorder %v1578, 0.0
    %vm1582 = vcmp.ge.f32.partialorder %v1579, 0.0
    %v1583 = vsel %vm1580, 1.0, -1.0
    %v1584 = vsel %vm1581, 1.0, -1.0
    %v1585 = vsel %vm1582, 1.0, -1.0
    %v1586 = vand.u32 2147483647, %v1577
    %v1587 = vand.u32 2147483647, %v1578
    %v1588 = vand.u32 2147483647, %v1579
    %v1589 = vmul.f32 %v1586, 0.3275911
    %v1590 = vmul.f32 %v1587, 0.3275911
    %v1591 = vmul.f32 %v1588, 0.3275911
    %v1592 = vadd.f32 %v1589, 1.0
    %v1593 = vadd.f32 %v1590, 1.0
    %v1594 = vadd.f32 %v1591, 1.0
    %v1595 = vrcp.pop %v1592
    %v1596 = vrcp.pop %v1593
    %v1597 = vrcp.pop %v1594
    %v1598 = vmul.f32 %v1595, 1.0614054
    %v1599 = vmul.f32 %v1596, 1.0614054
    %v1600 = vmul.f32 %v1597, 1.0614054
    %v1601 = vadd.f32 %v1598, -1.4531521
    %v1602 = vadd.f32 %v1599, -1.4531521
    %v1603 = vadd.f32 %v1600, -1.4531521
    %v1604 = vmul.f32 %v1601, %v1595
    %v1605 = vmul.f32 %v1602, %v1596
    %v1606 = vmul.f32 %v1603, %v1597
    %v1607 = vadd.f32 %v1604, 1.4214138
    %v1608 = vadd.f32 %v1605, 1.4214138
    %v1609 = vadd.f32 %v1606, 1.4214138
    %v1610 = vmul.f32 %v1607, %v1595
    %v1611 = vmul.f32 %v1608, %v1596
    %v1612 = vmul.f32 %v1609, %v1597
    %v1613 = vadd.f32 %v1610, -0.28449672
    %v1614 = vadd.f32 %v1611, -0.28449672
    %v1615 = vadd.f32 %v1612, -0.28449672
    %v1616 = vmul.f32 %v1613, %v1595
    %v1617 = vmul.f32 %v1614, %v1596
    %v1618 = vmul.f32 %v1615, %v1597
    %v1619 = vadd.f32 %v1616, 0.2548296
    %v1620 = vadd.f32 %v1617, 0.2548296
    %v1621 = vadd.f32 %v1618, 0.2548296
    %v1622 = vmul.f32 %v1619, %v1595
    %v1623 = vmul.f32 %v1620, %v1596
    %v1624 = vmul.f32 %v1621, %v1597
    %v1625 = vsub.f32 0.0, %v1586
    %v1626 = vsub.f32 0.0, %v1587
    %v1627 = vsub.f32 0.0, %v1588
    %v1628 = vmul.f32 %v1625, %v1586
    %v1629 = vmul.f32 %v1626, %v1587
    %v1630 = vmul.f32 %v1627, %v1588
    %v1631 = vmul.f32 %v1628, 1.442695
    %v1632 = vpow.pop %v1631
    %v1633 = vmul.f32 %v1629, 1.442695
    %v1634 = vpow.pop %v1633
    %v1635 = vmul.f32 %v1630, 1.442695
    %v1636 = vpow.pop %v1635
    %v1637 = vmul.f32 %v1622, %v1632
    %v1638 = vmul.f32 %v1623, %v1634
    %v1639 = vmul.f32 %v1624, %v1636
    %v1640 = vsub.f32 1.0, %v1637
    %v1641 = vsub.f32 1.0, %v1638
    %v1642 = vsub.f32 1.0, %v1639
    %v1643 = vmul.f32 %v1583, %v1640
    %v1644 = vmul.f32 %v1584, %v1641
    %v1645 = vmul.f32 %v1585, %v1642
    %v1646 = vadd.f32 %v1643, 1.0
    %v1647 = vadd.f32 %v1644, 1.0
    %v1648 = vadd.f32 %v1645, 1.0
    %v1649 = vmul.f32 %v1574, %v1646
    %v1650 = vmul.f32 %v1575, %v1647
    %v1651 = vmul.f32 %v1576, %v1648
    %v1652 = vld [vmem:[%s2 + $0xe0] sm:$0xf]
    %v1653 = vld [vmem:[%s2 + $0xe4] sm:$0xf]
    %v1654 = vld [vmem:[%s2 + $0xe8] sm:$0xf]
    %v1655 = vld [vmem:[%s2 + $0xec] sm:$0xf]
    %v1656 = vld [vmem:[%s2 + $0xf0] sm:$0xf]
    %v1657 = vld [vmem:[%s2 + $0xf4] sm:$0xf]
    %v1658 = vld [vmem:[%s2 + $0xf8] sm:$0xf]
    %v1659 = vld [vmem:[%s2 + $0xfc] sm:$0xf]
    %v1660 = vpack.c.bf16 %v1650, %v1649
    %v1661 = vpack.c.bf16 %v1651, %v1651
    %v1662 = vlaneseq
    %v1663 = vshrl.u32 %v1662, 7
    %v1664 = vsub.s32 0, %v1663
    %v1665 = vrot.slane %v554, %v1664
    %v1674 = vunpack.c.l.b16 %v1652
    %v1675 = vunpack.c.l.b16 %v1653
    %v1676 = vunpack.c.l.b16 %v1654
    %v1677 = vunpack.c.l.b16 %v1655
    %v1678 = vunpack.c.l.b16 %v1656
    %v1679 = vunpack.c.l.b16 %v1657
    %v1680 = vunpack.c.l.b16 %v1658
    %v1681 = vunpack.c.l.b16 %v1659
    %v1682 = vpack.c.b16 %v1675, %v1674
    %v1683 = vpack.c.b16 %v1677, %v1676
    %v1684 = vpack.c.b16 %v1679, %v1678
    %v1685 = vpack.c.b16 %v1681, %v1680
    %vm1690 = vcmask 523264
    %v1692 = vsel %vm1690, %v1660, 0
    %v1695 = vsel %vm1690, %v1661, 0
    %1697 = vmatprep.subr.bf16.mxu0 0
    %1698 = vmatpush1.bf16.msra.mxu0 %v1682
    %1699 = vmatprep.subr.bf16.mxu0 0
    %1700 = vmatpush1.bf16.msra.mxu0 %v1683
    %1701 = vmatprep.subr.bf16.mxu0 0
    %1702 = vmatpush1.bf16.msra.mxu0 %v1684
    %1703 = vmatprep.subr.bf16.mxu0 0
    %1704 = vmatpush1.bf16.msra.mxu0 %v1685
    %1705 = vmatprep.subr.bf16.mxu0 0
    %1706 = vmatpush1.bf16.msra.mxu0 0
    %1707 = vmatprep.subr.bf16.mxu0 0
    %1708 = vmatpush1.bf16.msra.mxu0 0
    %1709 = vmatprep.subr.bf16.mxu0 0
    %1710 = vmatpush1.bf16.msra.mxu0 0
    %1711 = vmatprep.subr.bf16.mxu0 0
    %1712 = vmatpush1.bf16.msra.mxu0 0
    %1713 = vmatprep.subr.bf16.mxu0 0
    %1714 = vmatpush1.bf16.msra.mxu0 0
    %1715 = vmatprep.subr.bf16.mxu0 0
    %1716 = vmatpush1.bf16.msra.mxu0 0
    %1717 = vmatprep.subr.bf16.mxu0 0
    %1718 = vmatpush1.bf16.msra.mxu0 0
    %1719 = vmatprep.subr.bf16.mxu0 0
    %1720 = vmatpush1.bf16.msra.mxu0 0
    %1721 = vmatprep.subr.bf16.mxu0 0
    %1722 = vmatpush1.bf16.msra.mxu0 0
    %1723 = vmatprep.subr.bf16.mxu0 0
    %1724 = vmatpush1.bf16.msra.mxu0 0
    %1725 = vmatprep.subr.bf16.mxu0 0
    %1726 = vmatpush1.bf16.msra.mxu0 0
    %1727 = vmatprep.subr.bf16.mxu0 0
    %1728 = vmatpush1.bf16.msra.mxu0 0
    %1729 = vmatprep.mubr.bf16.mxu0 0
    %1730 = vmatmul.mubr.bf16.gmra.mrb[0].mxu0 %v1692
    %v1731 = vpop.f32.mrb[0].mxu0
    %v1732 = vadd.f32 %v1665, %v1731
    %v1733 = vpop.f32.mrb[0].mxu0
    %v1734 = vpop.f32.mrb[0].mxu0
    %v1735 = vadd.f32 %v1665, %v1734
    %v1736 = vpop.f32.mrb[0].mxu0
    %1737 = vmatprep.mubr.bf16.mxu0 0
    %1738 = vmatmul.mubr.bf16.gmra.mrb[0].mxu0 %v1695
    %v1739 = vpop.f32.mrb[0].mxu0
    %v1740 = vadd.f32 %v1665, %v1739
    %v1741 = vpop.f32.mrb[0].mxu0
    %v1742 = vpop.f32.mrb[0].mxu0
    %v1743 = vpop.f32.mrb[0].mxu0
    %1744 = vdwg.mxu0
    %v1745 = vadd.f32 %v1732, %v1442
    %v1746 = vadd.f32 %v1735, %v1443
    %v1747 = vadd.f32 %v1740, %v1444
    %v1748 = vld [vmem:[%s1 + $0x2f] sm:$0x1]
    %v1749 = vld [vmem:[%s1 + $0x30] sm:$0x1]
    %v1750 = vld [vmem:[%s1 + $0x31] sm:$0x1]
    %v1751 = vld [vmem:[%s1 + $0x32] sm:$0x1]
    %v1752 = vld [vmem:[%s1 + $0x33] sm:$0x1]
    %v1753 = vld [vmem:[%s1 + $0x34] sm:$0x1]
    %v1754 = vld [vmem:[%s1 + $0x36] sm:$0x1]
    %v1755 = vsel %vm454, %v1745, 0.0
    %1756 = vadd.xlane.f32.xlu0 %v1755
    %v1757 = vpop.xlane.xlu0 %1756
    %v1758 = vsel %vm454, %v1746, 0.0
    %1759 = vadd.xlane.f32.xlu0 %v1758
    %v1760 = vpop.xlane.xlu0 %1759
    %v1761 = vsel %vm461, %v1747, 0.0
    %1762 = vadd.xlane.f32.xlu0 %v1761
    %v1763 = vpop.xlane.xlu0 %1762
    %v1764 = vmul.f32 %v1757, %v465
    %v1765 = vmul.f32 %v1760, %v465
    %v1766 = vmul.f32 %v1763, %v465
    %v1767 = vsub.f32 %v1745, %v1764
    %v1768 = vsub.f32 %v1746, %v1765
    %v1769 = vsub.f32 %v1747, %v1766
    %v1770 = vmul.f32 %v1767, %v1767
    %v1771 = vmul.f32 %v1768, %v1768
    %v1772 = vmul.f32 %v1769, %v1769
    %v1773 = vsel %vm454, %v1770, 0.0
    %1774 = vadd.xlane.f32.xlu0 %v1773
    %v1775 = vpop.xlane.xlu0 %1774
    %v1776 = vsel %vm454, %v1771, 0.0
    %1777 = vadd.xlane.f32.xlu0 %v1776
    %v1778 = vpop.xlane.xlu0 %1777
    %v1779 = vsel %vm461, %v1772, 0.0
    %1780 = vadd.xlane.f32.xlu0 %v1779
    %v1781 = vpop.xlane.xlu0 %1780
    %v1782 = vmul.f32 %v1775, %v465
    %v1783 = vmul.f32 %v1778, %v465
    %v1784 = vmul.f32 %v1781, %v465
    %v1785 = vadd.f32 %v1782, 1e-05
    %v1786 = vadd.f32 %v1783, 1e-05
    %v1787 = vadd.f32 %v1784, 1e-05
    %v1788 = vrsqrt.pop %v1785
    %v1789 = vrsqrt.pop %v1786
    %v1790 = vrsqrt.pop %v1787
    %v1791 = vmul.f32 %v1767, %v1788
    %v1792 = vmul.f32 %v1768, %v1789
    %v1793 = vmul.f32 %v1769, %v1790
    %v1794 = vlaneseq
    %v1795 = vshrl.u32 %v1794, 7
    %v1796 = vsub.s32 0, %v1795
    %v1797 = vrot.slane %v1748, %v1796
    %v1798 = vmul.f32 %v1791, %v1797
    %v1799 = vmul.f32 %v1792, %v1797
    %v1800 = vmul.f32 %v1793, %v1797
    %v1801 = vlaneseq
    %v1802 = vshrl.u32 %v1801, 7
    %v1803 = vsub.s32 0, %v1802
    %v1804 = vrot.slane %v1749, %v1803
    %v1805 = vadd.f32 %v1798, %v1804
    %v1806 = vadd.f32 %v1799, %v1804
    %v1807 = vadd.f32 %v1800, %v1804
    %v1808 = vld [vmem:[%s3 + $0x10] sm:$0xf]
    %v1809 = vld [vmem:[%s3 + $0x14] sm:$0xf]
    %v1810 = vld [vmem:[%s3 + $0x18] sm:$0xf]
    %v1811 = vld [vmem:[%s3 + $0x1c] sm:$0xf]
    %v1812 = vpack.c.bf16 %v1806, %v1805
    %v1813 = vpack.c.bf16 %v1807, %v1807
    %v1818 = vunpack.c.l.b16 %v1808
    %v1819 = vunpack.c.l.b16 %v1809
    %v1820 = vunpack.c.l.b16 %v1810
    %v1821 = vunpack.c.l.b16 %v1811
    %v1822 = vpack.c.b16 %v1819, %v1818
    %v1823 = vpack.c.b16 %v1821, %v1820
    %v1827 = vsel %vm454, %v1812, 0
    %v1830 = vsel %vm454, %v1813, 0
    %1832 = vmatprep.subr.bf16.mxu0 0
    %1833 = vmatpush1.bf16.msra.mxu0 %v1822
    %1834 = vmatprep.subr.bf16.mxu0 0
    %1835 = vmatpush1.bf16.msra.mxu0 %v1823
    %1836 = vmatprep.subr.bf16.mxu0 0
    %1837 = vmatpush1.bf16.msra.mxu0 0
    %1838 = vmatprep.subr.bf16.mxu0 0
    %1839 = vmatpush1.bf16.msra.mxu0 0
    %1840 = vmatprep.subr.bf16.mxu0 0
    %1841 = vmatpush1.bf16.msra.mxu0 0
    %1842 = vmatprep.subr.bf16.mxu0 0
    %1843 = vmatpush1.bf16.msra.mxu0 0
    %1844 = vmatprep.subr.bf16.mxu0 0
    %1845 = vmatpush1.bf16.msra.mxu0 0
    %1846 = vmatprep.subr.bf16.mxu0 0
    %1847 = vmatpush1.bf16.msra.mxu0 0
    %1848 = vmatprep.subr.bf16.mxu0 0
    %1849 = vmatpush1.bf16.msra.mxu0 0
    %1850 = vmatprep.subr.bf16.mxu0 0
    %1851 = vmatpush1.bf16.msra.mxu0 0
    %1852 = vmatprep.subr.bf16.mxu0 0
    %1853 = vmatpush1.bf16.msra.mxu0 0
    %1854 = vmatprep.subr.bf16.mxu0 0
    %1855 = vmatpush1.bf16.msra.mxu0 0
    %1856 = vmatprep.subr.bf16.mxu0 0
    %1857 = vmatpush1.bf16.msra.mxu0 0
    %1858 = vmatprep.subr.bf16.mxu0 0
    %1859 = vmatpush1.bf16.msra.mxu0 0
    %1860 = vmatprep.subr.bf16.mxu0 0
    %1861 = vmatpush1.bf16.msra.mxu0 0
    %1862 = vmatprep.subr.bf16.mxu0 0
    %1863 = vmatpush1.bf16.msra.mxu0 0
    %1864 = vmatprep.mubr.bf16.mxu0 0
    %1865 = vmatmul.mubr.bf16.gmra.mrb[0].mxu0 %v1827
    %v1866 = vpop.f32.mrb[0].mxu0
    %v1867 = vadd.f32 0.0, %v1866
    %v1868 = vpop.f32.mrb[0].mxu0
    %v1869 = vpop.f32.mrb[0].mxu0
    %v1870 = vadd.f32 0.0, %v1869
    %v1871 = vpop.f32.mrb[0].mxu0
    %1872 = vmatprep.mubr.bf16.mxu0 0
    %1873 = vmatmul.mubr.bf16.gmra.mrb[0].mxu0 %v1830
    %v1874 = vpop.f32.mrb[0].mxu0
    %v1875 = vadd.f32 0.0, %v1874
    %v1876 = vpop.f32.mrb[0].mxu0
    %v1877 = vpop.f32.mrb[0].mxu0
    %v1878 = vpop.f32.mrb[0].mxu0
    %1879 = vdwg.mxu0
    %v1880 = vpack.c.bf16 %v1870, %v1867
    %v1881 = vpack.c.bf16 %v1875, %v1875
    %1884 = vrot.lane.b32.xlu0 %v1880, 96
    %v1885 = vpop.permute.xlu0 %1884
    %1886 = vrot.lane.b32.xlu0 %v1881, 96
    %v1887 = vpop.permute.xlu0 %1886
    %v1889 = vsel %vm689, %v1880, 0
    %v1892 = vsel %vm689, %v1881, 0
    %v1895 = vsel %vm689, %v1885, 0
    %v1898 = vsel %vm689, %v1887, 0
    %1900 = vmatprep.subr.bf16.mxu0 0
    %1901 = vmatpush1.bf16.xpose.msra.mxu0 %v1895
    %1902 = vmatprep.subr.bf16.mxu0 0
    %1903 = vmatpush1.bf16.xpose.msra.mxu0 %v1898
    %1904 = vmatprep.subr.bf16.mxu0 0
    %1905 = vmatpush1.bf16.xpose.msra.mxu0 0
    %1906 = vmatprep.subr.bf16.mxu0 0
    %1907 = vmatpush1.bf16.xpose.msra.mxu0 0
    %1908 = vmatprep.subr.bf16.mxu0 0
    %1909 = vmatpush1.bf16.xpose.msra.mxu0 0
    %1910 = vmatprep.subr.bf16.mxu0 0
    %1911 = vmatpush1.bf16.xpose.msra.mxu0 0
    %1912 = vmatprep.subr.bf16.mxu0 0
    %1913 = vmatpush1.bf16.xpose.msra.mxu0 0
    %1914 = vmatprep.subr.bf16.mxu0 0
    %1915 = vmatpush1.bf16.xpose.msra.mxu0 0
    %1916 = vmatprep.subr.bf16.mxu0 0
    %1917 = vmatpush1.bf16.xpose.msra.mxu0 0
    %1918 = vmatprep.subr.bf16.mxu0 0
    %1919 = vmatpush1.bf16.xpose.msra.mxu0 0
    %1920 = vmatprep.subr.bf16.mxu0 0
    %1921 = vmatpush1.bf16.xpose.msra.mxu0 0
    %1922 = vmatprep.subr.bf16.mxu0 0
    %1923 = vmatpush1.bf16.xpose.msra.mxu0 0
    %1924 = vmatprep.subr.bf16.mxu0 0
    %1925 = vmatpush1.bf16.xpose.msra.mxu0 0
    %1926 = vmatprep.subr.bf16.mxu0 0
    %1927 = vmatpush1.bf16.xpose.msra.mxu0 0
    %1928 = vmatprep.subr.bf16.mxu0 0
    %1929 = vmatpush1.bf16.xpose.msra.mxu0 0
    %1930 = vmatprep.subr.bf16.mxu0 0
    %1931 = vmatpush1.bf16.xpose.msra.mxu0 0
    %1932 = vmatprep.mubr.bf16.mxu0 0
    %1933 = vmatmul.mubr.bf16.gmra.mrb[0].mxu0 %v1889
    %v1934 = vpop.f32.mrb[0].mxu0
    %v1935 = vadd.f32 %v532, %v1934
    %v1936 = vpop.f32.mrb[0].mxu0
    %v1937 = vpop.f32.mrb[0].mxu0
    %v1938 = vadd.f32 %v533, %v1937
    %v1939 = vpop.f32.mrb[0].mxu0
    %1940 = vmatprep.mubr.bf16.mxu0 0
    %1941 = vmatmul.mubr.bf16.gmra.mrb[0].mxu0 %v1892
    %v1942 = vpop.f32.mrb[0].mxu0
    %v1943 = vadd.f32 %v534, %v1942
    %v1944 = vpop.f32.mrb[0].mxu0
    %v1945 = vpop.f32.mrb[0].mxu0
    %v1946 = vpop.f32.mrb[0].mxu0
    %1947 = vdwg.mxu0
    %v1948 = vsel %vm750, %v1935, -inf
    %1949 = vmax.xlane.f32.xlu0 %v1948
    %v1950 = vpop.xlane.xlu0 %1949
    %v1951 = vsel %vm750, %v1938, -inf
    %1952 = vmax.xlane.f32.xlu0 %v1951
    %v1953 = vpop.xlane.xlu0 %1952
    %v1954 = vsel %vm757, %v1943, -inf
    %1955 = vmax.xlane.f32.xlu0 %v1954
    %v1956 = vpop.xlane.xlu0 %1955
    %v1957 = vsub.f32 %v1935, %v1950
    %v1958 = vsub.f32 %v1938, %v1953
    %v1959 = vsub.f32 %v1943, %v1956
    %v1960 = vmul.f32 %v1957, 1.442695
    %v1961 = vpow.pop %v1960
    %v1962 = vmul.f32 %v1958, 1.442695
    %v1963 = vpow.pop %v1962
    %v1964 = vmul.f32 %v1959, 1.442695
    %v1965 = vpow.pop %v1964
    %v1966 = vsel %vm750, %v1961, 0.0
    %1967 = vadd.xlane.f32.xlu0 %v1966
    %v1968 = vpop.xlane.xlu0 %1967
    %v1969 = vsel %vm750, %v1963, 0.0
    %1970 = vadd.xlane.f32.xlu0 %v1969
    %v1971 = vpop.xlane.xlu0 %1970
    %v1972 = vsel %vm757, %v1965, 0.0
    %1973 = vadd.xlane.f32.xlu0 %v1972
    %v1974 = vpop.xlane.xlu0 %1973
    %v1975 = vrcp.pop %v1968
    %v1976 = vrcp.pop %v1971
    %v1977 = vrcp.pop %v1974
    %v1978 = vmul.f32 %v1961, %v1975
    %v1979 = vmul.f32 %v1963, %v1976
    %v1980 = vmul.f32 %v1965, %v1977
    %1984 = vrot.lane.b32.xlu0 %v1867, 64
    %v1985 = vpop.permute.xlu0 %1984
    %1986 = vrot.lane.b32.xlu0 %v1870, 64
    %v1987 = vpop.permute.xlu0 %1986
    %1988 = vrot.lane.b32.xlu0 %v1875, 64
    %v1989 = vpop.permute.xlu0 %1988
    %v1993 = vsel %vm539, %v1985, 0.0
    %v1994 = vsel %vm539, %v1987, 0.0
    %v1995 = vsel %vm539, %v1989, 0.0
    %v1996 = vpack.c.bf16 %v1979, %v1978
    %v1997 = vpack.c.bf16 %v1980, %v1980
    %v1998 = vpack.c.bf16 %v1994, %v1993
    %v1999 = vpack.c.bf16 %v1995, %v1995
    %2000 = vrot.lane.b32.xlu0 %v1880, 120
    %v2001 = vpop.permute.xlu0 %2000
    %2002 = vrot.lane.b32.xlu0 %v1881, 120
    %v2003 = vpop.permute.xlu0 %2002
    %2004 = vrot.lane.b32.xlu0 %v1880, 88
    %v2005 = vpop.permute.xlu0 %2004
    %2006 = vrot.lane.b32.xlu0 %v1881, 88
    %v2007 = vpop.permute.xlu0 %2006
    %v2009 = vsel %vm689, %v2001, 0
    %v2012 = vsel %vm689, %v2003, 0
    %v2015 = vsel %vm689, %v2005, 0
    %v2018 = vsel %vm689, %v2007, 0
    %2020 = vmatprep.subr.bf16.mxu0 0
    %2021 = vmatpush1.bf16.xpose.msra.mxu0 %v2015
    %2022 = vmatprep.subr.bf16.mxu0 0
    %2023 = vmatpush1.bf16.xpose.msra.mxu0 %v2018
    %2024 = vmatprep.subr.bf16.mxu0 0
    %2025 = vmatpush1.bf16.xpose.msra.mxu0 0
    %2026 = vmatprep.subr.bf16.mxu0 0
    %2027 = vmatpush1.bf16.xpose.msra.mxu0 0
    %2028 = vmatprep.subr.bf16.mxu0 0
    %2029 = vmatpush1.bf16.xpose.msra.mxu0 0
    %2030 = vmatprep.subr.bf16.mxu0 0
    %2031 = vmatpush1.bf16.xpose.msra.mxu0 0
    %2032 = vmatprep.subr.bf16.mxu0 0
    %2033 = vmatpush1.bf16.xpose.msra.mxu0 0
    %2034 = vmatprep.subr.bf16.mxu0 0
    %2035 = vmatpush1.bf16.xpose.msra.mxu0 0
    %2036 = vmatprep.subr.bf16.mxu0 0
    %2037 = vmatpush1.bf16.xpose.msra.mxu0 0
    %2038 = vmatprep.subr.bf16.mxu0 0
    %2039 = vmatpush1.bf16.xpose.msra.mxu0 0
    %2040 = vmatprep.subr.bf16.mxu0 0
    %2041 = vmatpush1.bf16.xpose.msra.mxu0 0
    %2042 = vmatprep.subr.bf16.mxu0 0
    %2043 = vmatpush1.bf16.xpose.msra.mxu0 0
    %2044 = vmatprep.subr.bf16.mxu0 0
    %2045 = vmatpush1.bf16.xpose.msra.mxu0 0
    %2046 = vmatprep.subr.bf16.mxu0 0
    %2047 = vmatpush1.bf16.xpose.msra.mxu0 0
    %2048 = vmatprep.subr.bf16.mxu0 0
    %2049 = vmatpush1.bf16.xpose.msra.mxu0 0
    %2050 = vmatprep.subr.bf16.mxu0 0
    %2051 = vmatpush1.bf16.xpose.msra.mxu0 0
    %2052 = vmatprep.mubr.bf16.mxu0 0
    %2053 = vmatmul.mubr.bf16.gmra.mrb[0].mxu0 %v2009
    %v2054 = vpop.f32.mrb[0].mxu0
    %v2055 = vadd.f32 %v532, %v2054
    %v2056 = vpop.f32.mrb[0].mxu0
    %v2057 = vpop.f32.mrb[0].mxu0
    %v2058 = vadd.f32 %v533, %v2057
    %v2059 = vpop.f32.mrb[0].mxu0
    %2060 = vmatprep.mubr.bf16.mxu0 0
    %2061 = vmatmul.mubr.bf16.gmra.mrb[0].mxu0 %v2012
    %v2062 = vpop.f32.mrb[0].mxu0
    %v2063 = vadd.f32 %v534, %v2062
    %v2064 = vpop.f32.mrb[0].mxu0
    %v2065 = vpop.f32.mrb[0].mxu0
    %v2066 = vpop.f32.mrb[0].mxu0
    %2067 = vdwg.mxu0
    %v2068 = vsel %vm750, %v2055, -inf
    %2069 = vmax.xlane.f32.xlu0 %v2068
    %v2070 = vpop.xlane.xlu0 %2069
    %v2071 = vsel %vm750, %v2058, -inf
    %2072 = vmax.xlane.f32.xlu0 %v2071
    %v2073 = vpop.xlane.xlu0 %2072
    %v2074 = vsel %vm757, %v2063, -inf
    %2075 = vmax.xlane.f32.xlu0 %v2074
    %v2076 = vpop.xlane.xlu0 %2075
    %v2077 = vsub.f32 %v2055, %v2070
    %v2078 = vsub.f32 %v2058, %v2073
    %v2079 = vsub.f32 %v2063, %v2076
    %v2080 = vmul.f32 %v2077, 1.442695
    %v2081 = vpow.pop %v2080
    %v2082 = vmul.f32 %v2078, 1.442695
    %v2083 = vpow.pop %v2082
    %v2084 = vmul.f32 %v2079, 1.442695
    %v2085 = vpow.pop %v2084
    %v2086 = vsel %vm750, %v2081, 0.0
    %2087 = vadd.xlane.f32.xlu0 %v2086
    %v2088 = vpop.xlane.xlu0 %2087
    %v2089 = vsel %vm750, %v2083, 0.0
    %2090 = vadd.xlane.f32.xlu0 %v2089
    %v2091 = vpop.xlane.xlu0 %2090
    %v2092 = vsel %vm757, %v2085, 0.0
    %2093 = vadd.xlane.f32.xlu0 %v2092
    %v2094 = vpop.xlane.xlu0 %2093
    %v2095 = vrcp.pop %v2088
    %v2096 = vrcp.pop %v2091
    %v2097 = vrcp.pop %v2094
    %v2098 = vmul.f32 %v2081, %v2095
    %v2099 = vmul.f32 %v2083, %v2096
    %v2100 = vmul.f32 %v2085, %v2097
    %v2101 = vsel %vm542, %v1985, 0.0
    %v2102 = vsel %vm542, %v1987, 0.0
    %v2103 = vsel %vm542, %v1989, 0.0
    %v2104 = vpack.c.bf16 %v2099, %v2098
    %v2105 = vpack.c.bf16 %v2100, %v2100
    %v2106 = vpack.c.bf16 %v2102, %v2101
    %v2107 = vpack.c.bf16 %v2103, %v2103
    %v2109 = vsel %vm750, %v2104, 0
    %v2112 = vsel %vm750, %v2105, 0
    %v2115 = vsel %vm918, %v2107, 0
    %2117 = vmatprep.subr.bf16.mxu0 0
    %2118 = vmatpush1.bf16.msra.mxu0 %v2106
    %2119 = vmatprep.subr.bf16.mxu0 0
    %2120 = vmatpush1.bf16.msra.mxu0 %v2115
    %2121 = vmatprep.subr.bf16.mxu0 0
    %2122 = vmatpush1.bf16.msra.mxu0 0
    %2123 = vmatprep.subr.bf16.mxu0 0
    %2124 = vmatpush1.bf16.msra.mxu0 0
    %2125 = vmatprep.subr.bf16.mxu0 0
    %2126 = vmatpush1.bf16.msra.mxu0 0
    %2127 = vmatprep.subr.bf16.mxu0 0
    %2128 = vmatpush1.bf16.msra.mxu0 0
    %2129 = vmatprep.subr.bf16.mxu0 0
    %2130 = vmatpush1.bf16.msra.mxu0 0
    %2131 = vmatprep.subr.bf16.mxu0 0
    %2132 = vmatpush1.bf16.msra.mxu0 0
    %2133 = vmatprep.subr.bf16.mxu0 0
    %2134 = vmatpush1.bf16.msra.mxu0 0
    %2135 = vmatprep.subr.bf16.mxu0 0
    %2136 = vmatpush1.bf16.msra.mxu0 0
    %2137 = vmatprep.subr.bf16.mxu0 0
    %2138 = vmatpush1.bf16.msra.mxu0 0
    %2139 = vmatprep.subr.bf16.mxu0 0
    %2140 = vmatpush1.bf16.msra.mxu0 0
    %2141 = vmatprep.subr.bf16.mxu0 0
    %2142 = vmatpush1.bf16.msra.mxu0 0
    %2143 = vmatprep.subr.bf16.mxu0 0
    %2144 = vmatpush1.bf16.msra.mxu0 0
    %2145 = vmatprep.subr.bf16.mxu0 0
    %2146 = vmatpush1.bf16.msra.mxu0 0
    %2147 = vmatprep.subr.bf16.mxu0 0
    %2148 = vmatpush1.bf16.msra.mxu0 0
    %2149 = vmatprep.mubr.bf16.mxu0 0
    %2150 = vmatmul.mubr.bf16.gmra.mrb[0].mxu0 %v2109
    %v2151 = vpop.f32.mrb[0].mxu0
    %v2152 = vadd.f32 0.0, %v2151
    %v2153 = vpop.f32.mrb[0].mxu0
    %v2154 = vpop.f32.mrb[0].mxu0
    %v2155 = vadd.f32 0.0, %v2154
    %v2156 = vpop.f32.mrb[0].mxu0
    %2157 = vmatprep.mubr.bf16.mxu0 0
    %2158 = vmatmul.mubr.bf16.gmra.mrb[0].mxu0 %v2112
    %v2159 = vpop.f32.mrb[0].mxu0
    %v2160 = vadd.f32 0.0, %v2159
    %v2161 = vpop.f32.mrb[0].mxu0
    %v2162 = vpop.f32.mrb[0].mxu0
    %v2163 = vpop.f32.mrb[0].mxu0
    %2164 = vdwg.mxu0
    %v2166 = vsel %vm750, %v1996, 0
    %v2169 = vsel %vm750, %v1997, 0
    %v2172 = vsel %vm918, %v1999, 0
    %2174 = vmatprep.subr.bf16.mxu0 0
    %2175 = vmatpush1.bf16.msra.mxu0 %v1998
    %2176 = vmatprep.subr.bf16.mxu0 0
    %2177 = vmatpush1.bf16.msra.mxu0 %v2172
    %2178 = vmatprep.subr.bf16.mxu0 0
    %2179 = vmatpush1.bf16.msra.mxu0 0
    %2180 = vmatprep.subr.bf16.mxu0 0
    %2181 = vmatpush1.bf16.msra.mxu0 0
    %2182 = vmatprep.subr.bf16.mxu0 0
    %2183 = vmatpush1.bf16.msra.mxu0 0
    %2184 = vmatprep.subr.bf16.mxu0 0
    %2185 = vmatpush1.bf16.msra.mxu0 0
    %2186 = vmatprep.subr.bf16.mxu0 0
    %2187 = vmatpush1.bf16.msra.mxu0 0
    %2188 = vmatprep.subr.bf16.mxu0 0
    %2189 = vmatpush1.bf16.msra.mxu0 0
    %2190 = vmatprep.subr.bf16.mxu0 0
    %2191 = vmatpush1.bf16.msra.mxu0 0
    %2192 = vmatprep.subr.bf16.mxu0 0
    %2193 = vmatpush1.bf16.msra.mxu0 0
    %2194 = vmatprep.subr.bf16.mxu0 0
    %2195 = vmatpush1.bf16.msra.mxu0 0
    %2196 = vmatprep.subr.bf16.mxu0 0
    %2197 = vmatpush1.bf16.msra.mxu0 0
    %2198 = vmatprep.subr.bf16.mxu0 0
    %2199 = vmatpush1.bf16.msra.mxu0 0
    %2200 = vmatprep.subr.bf16.mxu0 0
    %2201 = vmatpush1.bf16.msra.mxu0 0
    %2202 = vmatprep.subr.bf16.mxu0 0
    %2203 = vmatpush1.bf16.msra.mxu0 0
    %2204 = vmatprep.subr.bf16.mxu0 0
    %2205 = vmatpush1.bf16.msra.mxu0 0
    %2206 = vmatprep.mubr.bf16.mxu0 0
    %2207 = vmatmul.mubr.bf16.gmra.mrb[0].mxu0 %v2166
    %v2208 = vpop.f32.mrb[0].mxu0
    %v2209 = vadd.f32 %v2152, %v2208
    %v2210 = vpop.f32.mrb[0].mxu0
    %v2211 = vpop.f32.mrb[0].mxu0
    %v2212 = vadd.f32 %v2155, %v2211
    %v2213 = vpop.f32.mrb[0].mxu0
    %2214 = vmatprep.mubr.bf16.mxu0 0
    %2215 = vmatmul.mubr.bf16.gmra.mrb[0].mxu0 %v2169
    %v2216 = vpop.f32.mrb[0].mxu0
    %v2217 = vadd.f32 %v2160, %v2216
    %v2218 = vpop.f32.mrb[0].mxu0
    %v2219 = vpop.f32.mrb[0].mxu0
    %v2220 = vpop.f32.mrb[0].mxu0
    %2221 = vdwg.mxu0
    %2222 = vrot.lane.b32.xlu0 %v1880, 112
    %v2223 = vpop.permute.xlu0 %2222
    %2224 = vrot.lane.b32.xlu0 %v1881, 112
    %v2225 = vpop.permute.xlu0 %2224
    %2226 = vrot.lane.b32.xlu0 %v1880, 80
    %v2227 = vpop.permute.xlu0 %2226
    %2228 = vrot.lane.b32.xlu0 %v1881, 80
    %v2229 = vpop.permute.xlu0 %2228
    %v2231 = vsel %vm689, %v2223, 0
    %v2234 = vsel %vm689, %v2225, 0
    %v2237 = vsel %vm689, %v2227, 0
    %v2240 = vsel %vm689, %v2229, 0
    %2242 = vmatprep.subr.bf16.mxu0 0
    %2243 = vmatpush1.bf16.xpose.msra.mxu0 %v2237
    %2244 = vmatprep.subr.bf16.mxu0 0
    %2245 = vmatpush1.bf16.xpose.msra.mxu0 %v2240
    %2246 = vmatprep.subr.bf16.mxu0 0
    %2247 = vmatpush1.bf16.xpose.msra.mxu0 0
    %2248 = vmatprep.subr.bf16.mxu0 0
    %2249 = vmatpush1.bf16.xpose.msra.mxu0 0
    %2250 = vmatprep.subr.bf16.mxu0 0
    %2251 = vmatpush1.bf16.xpose.msra.mxu0 0
    %2252 = vmatprep.subr.bf16.mxu0 0
    %2253 = vmatpush1.bf16.xpose.msra.mxu0 0
    %2254 = vmatprep.subr.bf16.mxu0 0
    %2255 = vmatpush1.bf16.xpose.msra.mxu0 0
    %2256 = vmatprep.subr.bf16.mxu0 0
    %2257 = vmatpush1.bf16.xpose.msra.mxu0 0
    %2258 = vmatprep.subr.bf16.mxu0 0
    %2259 = vmatpush1.bf16.xpose.msra.mxu0 0
    %2260 = vmatprep.subr.bf16.mxu0 0
    %2261 = vmatpush1.bf16.xpose.msra.mxu0 0
    %2262 = vmatprep.subr.bf16.mxu0 0
    %2263 = vmatpush1.bf16.xpose.msra.mxu0 0
    %2264 = vmatprep.subr.bf16.mxu0 0
    %2265 = vmatpush1.bf16.xpose.msra.mxu0 0
    %2266 = vmatprep.subr.bf16.mxu0 0
    %2267 = vmatpush1.bf16.xpose.msra.mxu0 0
    %2268 = vmatprep.subr.bf16.mxu0 0
    %2269 = vmatpush1.bf16.xpose.msra.mxu0 0
    %2270 = vmatprep.subr.bf16.mxu0 0
    %2271 = vmatpush1.bf16.xpose.msra.mxu0 0
    %2272 = vmatprep.subr.bf16.mxu0 0
    %2273 = vmatpush1.bf16.xpose.msra.mxu0 0
    %2274 = vmatprep.mubr.bf16.mxu0 0
    %2275 = vmatmul.mubr.bf16.gmra.mrb[0].mxu0 %v2231
    %v2276 = vpop.f32.mrb[0].mxu0
    %v2277 = vadd.f32 %v532, %v2276
    %v2278 = vpop.f32.mrb[0].mxu0
    %v2279 = vpop.f32.mrb[0].mxu0
    %v2280 = vadd.f32 %v533, %v2279
    %v2281 = vpop.f32.mrb[0].mxu0
    %2282 = vmatprep.mubr.bf16.mxu0 0
    %2283 = vmatmul.mubr.bf16.gmra.mrb[0].mxu0 %v2234
    %v2284 = vpop.f32.mrb[0].mxu0
    %v2285 = vadd.f32 %v534, %v2284
    %v2286 = vpop.f32.mrb[0].mxu0
    %v2287 = vpop.f32.mrb[0].mxu0
    %v2288 = vpop.f32.mrb[0].mxu0
    %2289 = vdwg.mxu0
    %v2290 = vsel %vm750, %v2277, -inf
    %2291 = vmax.xlane.f32.xlu0 %v2290
    %v2292 = vpop.xlane.xlu0 %2291
    %v2293 = vsel %vm750, %v2280, -inf
    %2294 = vmax.xlane.f32.xlu0 %v2293
    %v2295 = vpop.xlane.xlu0 %2294
    %v2296 = vsel %vm757, %v2285, -inf
    %2297 = vmax.xlane.f32.xlu0 %v2296
    %v2298 = vpop.xlane.xlu0 %2297
    %v2299 = vsub.f32 %v2277, %v2292
    %v2300 = vsub.f32 %v2280, %v2295
    %v2301 = vsub.f32 %v2285, %v2298
    %v2302 = vmul.f32 %v2299, 1.442695
    %v2303 = vpow.pop %v2302
    %v2304 = vmul.f32 %v2300, 1.442695
    %v2305 = vpow.pop %v2304
    %v2306 = vmul.f32 %v2301, 1.442695
    %v2307 = vpow.pop %v2306
    %v2308 = vsel %vm750, %v2303, 0.0
    %2309 = vadd.xlane.f32.xlu0 %v2308
    %v2310 = vpop.xlane.xlu0 %2309
    %v2311 = vsel %vm750, %v2305, 0.0
    %2312 = vadd.xlane.f32.xlu0 %v2311
    %v2313 = vpop.xlane.xlu0 %2312
    %v2314 = vsel %vm757, %v2307, 0.0
    %2315 = vadd.xlane.f32.xlu0 %v2314
    %v2316 = vpop.xlane.xlu0 %2315
    %v2317 = vrcp.pop %v2310
    %v2318 = vrcp.pop %v2313
    %v2319 = vrcp.pop %v2316
    %v2320 = vmul.f32 %v2303, %v2317
    %v2321 = vmul.f32 %v2305, %v2318
    %v2322 = vmul.f32 %v2307, %v2319
    %v2323 = vsel %vm545, %v1985, 0.0
    %v2324 = vsel %vm545, %v1987, 0.0
    %v2325 = vsel %vm545, %v1989, 0.0
    %v2326 = vpack.c.bf16 %v2321, %v2320
    %v2327 = vpack.c.bf16 %v2322, %v2322
    %v2328 = vpack.c.bf16 %v2324, %v2323
    %v2329 = vpack.c.bf16 %v2325, %v2325
    %v2331 = vsel %vm750, %v2326, 0
    %v2334 = vsel %vm750, %v2327, 0
    %v2337 = vsel %vm918, %v2329, 0
    %2339 = vmatprep.subr.bf16.mxu0 0
    %2340 = vmatpush1.bf16.msra.mxu0 %v2328
    %2341 = vmatprep.subr.bf16.mxu0 0
    %2342 = vmatpush1.bf16.msra.mxu0 %v2337
    %2343 = vmatprep.subr.bf16.mxu0 0
    %2344 = vmatpush1.bf16.msra.mxu0 0
    %2345 = vmatprep.subr.bf16.mxu0 0
    %2346 = vmatpush1.bf16.msra.mxu0 0
    %2347 = vmatprep.subr.bf16.mxu0 0
    %2348 = vmatpush1.bf16.msra.mxu0 0
    %2349 = vmatprep.subr.bf16.mxu0 0
    %2350 = vmatpush1.bf16.msra.mxu0 0
    %2351 = vmatprep.subr.bf16.mxu0 0
    %2352 = vmatpush1.bf16.msra.mxu0 0
    %2353 = vmatprep.subr.bf16.mxu0 0
    %2354 = vmatpush1.bf16.msra.mxu0 0
    %2355 = vmatprep.subr.bf16.mxu0 0
    %2356 = vmatpush1.bf16.msra.mxu0 0
    %2357 = vmatprep.subr.bf16.mxu0 0
    %2358 = vmatpush1.bf16.msra.mxu0 0
    %2359 = vmatprep.subr.bf16.mxu0 0
    %2360 = vmatpush1.bf16.msra.mxu0 0
    %2361 = vmatprep.subr.bf16.mxu0 0
    %2362 = vmatpush1.bf16.msra.mxu0 0
    %2363 = vmatprep.subr.bf16.mxu0 0
    %2364 = vmatpush1.bf16.msra.mxu0 0
    %2365 = vmatprep.subr.bf16.mxu0 0
    %2366 = vmatpush1.bf16.msra.mxu0 0
    %2367 = vmatprep.subr.bf16.mxu0 0
    %2368 = vmatpush1.bf16.msra.mxu0 0
    %2369 = vmatprep.subr.bf16.mxu0 0
    %2370 = vmatpush1.bf16.msra.mxu0 0
    %2371 = vmatprep.mubr.bf16.mxu0 0
    %2372 = vmatmul.mubr.bf16.gmra.mrb[0].mxu0 %v2331
    %v2373 = vpop.f32.mrb[0].mxu0
    %v2374 = vadd.f32 0.0, %v2373
    %v2375 = vpop.f32.mrb[0].mxu0
    %v2376 = vpop.f32.mrb[0].mxu0
    %v2377 = vadd.f32 0.0, %v2376
    %v2378 = vpop.f32.mrb[0].mxu0
    %2379 = vmatprep.mubr.bf16.mxu0 0
    %2380 = vmatmul.mubr.bf16.gmra.mrb[0].mxu0 %v2334
    %v2381 = vpop.f32.mrb[0].mxu0
    %v2382 = vadd.f32 0.0, %v2381
    %v2383 = vpop.f32.mrb[0].mxu0
    %v2384 = vpop.f32.mrb[0].mxu0
    %v2385 = vpop.f32.mrb[0].mxu0
    %2386 = vdwg.mxu0
    %v2387 = vadd.f32 %v2209, %v2374
    %v2388 = vadd.f32 %v2212, %v2377
    %v2389 = vadd.f32 %v2217, %v2382
    %2390 = vrot.lane.b32.xlu0 %v1880, 104
    %v2391 = vpop.permute.xlu0 %2390
    %2392 = vrot.lane.b32.xlu0 %v1881, 104
    %v2393 = vpop.permute.xlu0 %2392
    %2394 = vrot.lane.b32.xlu0 %v1880, 72
    %v2395 = vpop.permute.xlu0 %2394
    %2396 = vrot.lane.b32.xlu0 %v1881, 72
    %v2397 = vpop.permute.xlu0 %2396
    %v2399 = vsel %vm689, %v2391, 0
    %v2402 = vsel %vm689, %v2393, 0
    %v2405 = vsel %vm689, %v2395, 0
    %v2408 = vsel %vm689, %v2397, 0
    %2410 = vmatprep.subr.bf16.mxu0 0
    %2411 = vmatpush1.bf16.xpose.msra.mxu0 %v2405
    %2412 = vmatprep.subr.bf16.mxu0 0
    %2413 = vmatpush1.bf16.xpose.msra.mxu0 %v2408
    %2414 = vmatprep.subr.bf16.mxu0 0
    %2415 = vmatpush1.bf16.xpose.msra.mxu0 0
    %2416 = vmatprep.subr.bf16.mxu0 0
    %2417 = vmatpush1.bf16.xpose.msra.mxu0 0
    %2418 = vmatprep.subr.bf16.mxu0 0
    %2419 = vmatpush1.bf16.xpose.msra.mxu0 0
    %2420 = vmatprep.subr.bf16.mxu0 0
    %2421 = vmatpush1.bf16.xpose.msra.mxu0 0
    %2422 = vmatprep.subr.bf16.mxu0 0
    %2423 = vmatpush1.bf16.xpose.msra.mxu0 0
    %2424 = vmatprep.subr.bf16.mxu0 0
    %2425 = vmatpush1.bf16.xpose.msra.mxu0 0
    %2426 = vmatprep.subr.bf16.mxu0 0
    %2427 = vmatpush1.bf16.xpose.msra.mxu0 0
    %2428 = vmatprep.subr.bf16.mxu0 0
    %2429 = vmatpush1.bf16.xpose.msra.mxu0 0
    %2430 = vmatprep.subr.bf16.mxu0 0
    %2431 = vmatpush1.bf16.xpose.msra.mxu0 0
    %2432 = vmatprep.subr.bf16.mxu0 0
    %2433 = vmatpush1.bf16.xpose.msra.mxu0 0
    %2434 = vmatprep.subr.bf16.mxu0 0
    %2435 = vmatpush1.bf16.xpose.msra.mxu0 0
    %2436 = vmatprep.subr.bf16.mxu0 0
    %2437 = vmatpush1.bf16.xpose.msra.mxu0 0
    %2438 = vmatprep.subr.bf16.mxu0 0
    %2439 = vmatpush1.bf16.xpose.msra.mxu0 0
    %2440 = vmatprep.subr.bf16.mxu0 0
    %2441 = vmatpush1.bf16.xpose.msra.mxu0 0
    %2442 = vmatprep.mubr.bf16.mxu0 0
    %2443 = vmatmul.mubr.bf16.gmra.mrb[0].mxu0 %v2399
    %v2444 = vpop.f32.mrb[0].mxu0
    %v2445 = vadd.f32 %v532, %v2444
    %v2446 = vpop.f32.mrb[0].mxu0
    %v2447 = vpop.f32.mrb[0].mxu0
    %v2448 = vadd.f32 %v533, %v2447
    %v2449 = vpop.f32.mrb[0].mxu0
    %2450 = vmatprep.mubr.bf16.mxu0 0
    %2451 = vmatmul.mubr.bf16.gmra.mrb[0].mxu0 %v2402
    %v2452 = vpop.f32.mrb[0].mxu0
    %v2453 = vadd.f32 %v534, %v2452
    %v2454 = vpop.f32.mrb[0].mxu0
    %v2455 = vpop.f32.mrb[0].mxu0
    %v2456 = vpop.f32.mrb[0].mxu0
    %2457 = vdwg.mxu0
    %v2458 = vsel %vm750, %v2445, -inf
    %2459 = vmax.xlane.f32.xlu0 %v2458
    %v2460 = vpop.xlane.xlu0 %2459
    %v2461 = vsel %vm750, %v2448, -inf
    %2462 = vmax.xlane.f32.xlu0 %v2461
    %v2463 = vpop.xlane.xlu0 %2462
    %v2464 = vsel %vm757, %v2453, -inf
    %2465 = vmax.xlane.f32.xlu0 %v2464
    %v2466 = vpop.xlane.xlu0 %2465
    %v2467 = vsub.f32 %v2445, %v2460
    %v2468 = vsub.f32 %v2448, %v2463
    %v2469 = vsub.f32 %v2453, %v2466
    %v2470 = vmul.f32 %v2467, 1.442695
    %v2471 = vpow.pop %v2470
    %v2472 = vmul.f32 %v2468, 1.442695
    %v2473 = vpow.pop %v2472
    %v2474 = vmul.f32 %v2469, 1.442695
    %v2475 = vpow.pop %v2474
    %v2476 = vsel %vm750, %v2471, 0.0
    %2477 = vadd.xlane.f32.xlu0 %v2476
    %v2478 = vpop.xlane.xlu0 %2477
    %v2479 = vsel %vm750, %v2473, 0.0
    %2480 = vadd.xlane.f32.xlu0 %v2479
    %v2481 = vpop.xlane.xlu0 %2480
    %v2482 = vsel %vm757, %v2475, 0.0
    %2483 = vadd.xlane.f32.xlu0 %v2482
    %v2484 = vpop.xlane.xlu0 %2483
    %v2485 = vrcp.pop %v2478
    %v2486 = vrcp.pop %v2481
    %v2487 = vrcp.pop %v2484
    %v2488 = vmul.f32 %v2471, %v2485
    %v2489 = vmul.f32 %v2473, %v2486
    %v2490 = vmul.f32 %v2475, %v2487
    %v2491 = vsel %vm548, %v1985, 0.0
    %v2492 = vsel %vm548, %v1987, 0.0
    %v2493 = vsel %vm548, %v1989, 0.0
    %v2494 = vpack.c.bf16 %v2489, %v2488
    %v2495 = vpack.c.bf16 %v2490, %v2490
    %v2496 = vpack.c.bf16 %v2492, %v2491
    %v2497 = vpack.c.bf16 %v2493, %v2493
    %v2499 = vsel %vm750, %v2494, 0
    %v2502 = vsel %vm750, %v2495, 0
    %v2505 = vsel %vm918, %v2497, 0
    %2507 = vmatprep.subr.bf16.mxu0 0
    %2508 = vmatpush1.bf16.msra.mxu0 %v2496
    %2509 = vmatprep.subr.bf16.mxu0 0
    %2510 = vmatpush1.bf16.msra.mxu0 %v2505
    %2511 = vmatprep.subr.bf16.mxu0 0
    %2512 = vmatpush1.bf16.msra.mxu0 0
    %2513 = vmatprep.subr.bf16.mxu0 0
    %2514 = vmatpush1.bf16.msra.mxu0 0
    %2515 = vmatprep.subr.bf16.mxu0 0
    %2516 = vmatpush1.bf16.msra.mxu0 0
    %2517 = vmatprep.subr.bf16.mxu0 0
    %2518 = vmatpush1.bf16.msra.mxu0 0
    %2519 = vmatprep.subr.bf16.mxu0 0
    %2520 = vmatpush1.bf16.msra.mxu0 0
    %2521 = vmatprep.subr.bf16.mxu0 0
    %2522 = vmatpush1.bf16.msra.mxu0 0
    %2523 = vmatprep.subr.bf16.mxu0 0
    %2524 = vmatpush1.bf16.msra.mxu0 0
    %2525 = vmatprep.subr.bf16.mxu0 0
    %2526 = vmatpush1.bf16.msra.mxu0 0
    %2527 = vmatprep.subr.bf16.mxu0 0
    %2528 = vmatpush1.bf16.msra.mxu0 0
    %2529 = vmatprep.subr.bf16.mxu0 0
    %2530 = vmatpush1.bf16.msra.mxu0 0
    %2531 = vmatprep.subr.bf16.mxu0 0
    %2532 = vmatpush1.bf16.msra.mxu0 0
    %2533 = vmatprep.subr.bf16.mxu0 0
    %2534 = vmatpush1.bf16.msra.mxu0 0
    %2535 = vmatprep.subr.bf16.mxu0 0
    %2536 = vmatpush1.bf16.msra.mxu0 0
    %2537 = vmatprep.subr.bf16.mxu0 0
    %2538 = vmatpush1.bf16.msra.mxu0 0
    %2539 = vmatprep.mubr.bf16.mxu0 0
    %2540 = vmatmul.mubr.bf16.gmra.mrb[0].mxu0 %v2499
    %v2541 = vpop.f32.mrb[0].mxu0
    %v2542 = vadd.f32 0.0, %v2541
    %v2543 = vpop.f32.mrb[0].mxu0
    %v2544 = vpop.f32.mrb[0].mxu0
    %v2545 = vadd.f32 0.0, %v2544
    %v2546 = vpop.f32.mrb[0].mxu0
    %2547 = vmatprep.mubr.bf16.mxu0 0
    %2548 = vmatmul.mubr.bf16.gmra.mrb[0].mxu0 %v2502
    %v2549 = vpop.f32.mrb[0].mxu0
    %v2550 = vadd.f32 0.0, %v2549
    %v2551 = vpop.f32.mrb[0].mxu0
    %v2552 = vpop.f32.mrb[0].mxu0
    %v2553 = vpop.f32.mrb[0].mxu0
    %2554 = vdwg.mxu0
    %v2555 = vadd.f32 %v2387, %v2542
    %v2556 = vadd.f32 %v2388, %v2545
    %v2557 = vadd.f32 %v2389, %v2550
    %v2558 = vld [vmem:[%s2 + $0xd0] sm:$0xf]
    %v2559 = vld [vmem:[%s2 + $0xd4] sm:$0xf]
    %v2560 = vld [vmem:[%s2 + $0xd8] sm:$0xf]
    %v2561 = vld [vmem:[%s2 + $0xdc] sm:$0xf]
    %v2562 = vpack.c.bf16 %v2556, %v2555
    %v2563 = vpack.c.bf16 %v2557, %v2557
    %v2564 = vlaneseq
    %v2565 = vshrl.u32 %v2564, 7
    %v2566 = vsub.s32 0, %v2565
    %v2567 = vrot.slane %v1750, %v2566
    %v2572 = vunpack.c.l.b16 %v2558
    %v2573 = vunpack.c.l.b16 %v2559
    %v2574 = vunpack.c.l.b16 %v2560
    %v2575 = vunpack.c.l.b16 %v2561
    %v2576 = vpack.c.b16 %v2573, %v2572
    %v2577 = vpack.c.b16 %v2575, %v2574
    %v2581 = vsel %vm454, %v2562, 0
    %v2584 = vsel %vm454, %v2563, 0
    %2586 = vmatprep.subr.bf16.mxu0 0
    %2587 = vmatpush1.bf16.msra.mxu0 %v2576
    %2588 = vmatprep.subr.bf16.mxu0 0
    %2589 = vmatpush1.bf16.msra.mxu0 %v2577
    %2590 = vmatprep.subr.bf16.mxu0 0
    %2591 = vmatpush1.bf16.msra.mxu0 0
    %2592 = vmatprep.subr.bf16.mxu0 0
    %2593 = vmatpush1.bf16.msra.mxu0 0
    %2594 = vmatprep.subr.bf16.mxu0 0
    %2595 = vmatpush1.bf16.msra.mxu0 0
    %2596 = vmatprep.subr.bf16.mxu0 0
    %2597 = vmatpush1.bf16.msra.mxu0 0
    %2598 = vmatprep.subr.bf16.mxu0 0
    %2599 = vmatpush1.bf16.msra.mxu0 0
    %2600 = vmatprep.subr.bf16.mxu0 0
    %2601 = vmatpush1.bf16.msra.mxu0 0
    %2602 = vmatprep.subr.bf16.mxu0 0
    %2603 = vmatpush1.bf16.msra.mxu0 0
    %2604 = vmatprep.subr.bf16.mxu0 0
    %2605 = vmatpush1.bf16.msra.mxu0 0
    %2606 = vmatprep.subr.bf16.mxu0 0
    %2607 = vmatpush1.bf16.msra.mxu0 0
    %2608 = vmatprep.subr.bf16.mxu0 0
    %2609 = vmatpush1.bf16.msra.mxu0 0
    %2610 = vmatprep.subr.bf16.mxu0 0
    %2611 = vmatpush1.bf16.msra.mxu0 0
    %2612 = vmatprep.subr.bf16.mxu0 0
    %2613 = vmatpush1.bf16.msra.mxu0 0
    %2614 = vmatprep.subr.bf16.mxu0 0
    %2615 = vmatpush1.bf16.msra.mxu0 0
    %2616 = vmatprep.subr.bf16.mxu0 0
    %2617 = vmatpush1.bf16.msra.mxu0 0
    %2618 = vmatprep.mubr.bf16.mxu0 0
    %2619 = vmatmul.mubr.bf16.gmra.mrb[0].mxu0 %v2581
    %v2620 = vpop.f32.mrb[0].mxu0
    %v2621 = vadd.f32 %v2567, %v2620
    %v2622 = vpop.f32.mrb[0].mxu0
    %v2623 = vpop.f32.mrb[0].mxu0
    %v2624 = vadd.f32 %v2567, %v2623
    %v2625 = vpop.f32.mrb[0].mxu0
    %2626 = vmatprep.mubr.bf16.mxu0 0
    %2627 = vmatmul.mubr.bf16.gmra.mrb[0].mxu0 %v2584
    %v2628 = vpop.f32.mrb[0].mxu0
    %v2629 = vadd.f32 %v2567, %v2628
    %v2630 = vpop.f32.mrb[0].mxu0
    %v2631 = vpop.f32.mrb[0].mxu0
    %v2632 = vpop.f32.mrb[0].mxu0
    %2633 = vdwg.mxu0
    %v2634 = vadd.f32 %v2621, %v1805
    %v2635 = vadd.f32 %v2624, %v1806
    %v2636 = vadd.f32 %v2629, %v1807
    %v2637 = vadd.f32 %v2634, %v1745
    %v2638 = vadd.f32 %v2635, %v1746
    %v2639 = vadd.f32 %v2636, %v1747
    %v2640 = vsel %vm454, %v2637, 0.0
    %2641 = vadd.xlane.f32.xlu0 %v2640
    %v2642 = vpop.xlane.xlu0 %2641
    %v2643 = vsel %vm454, %v2638, 0.0
    %2644 = vadd.xlane.f32.xlu0 %v2643
    %v2645 = vpop.xlane.xlu0 %2644
    %v2646 = vsel %vm461, %v2639, 0.0
    %2647 = vadd.xlane.f32.xlu0 %v2646
    %v2648 = vpop.xlane.xlu0 %2647
    %v2649 = vmul.f32 %v2642, %v465
    %v2650 = vmul.f32 %v2645, %v465
    %v2651 = vmul.f32 %v2648, %v465
    %v2652 = vsub.f32 %v2637, %v2649
    %v2653 = vsub.f32 %v2638, %v2650
    %v2654 = vsub.f32 %v2639, %v2651
    %v2655 = vmul.f32 %v2652, %v2652
    %v2656 = vmul.f32 %v2653, %v2653
    %v2657 = vmul.f32 %v2654, %v2654
    %v2658 = vsel %vm454, %v2655, 0.0
    %2659 = vadd.xlane.f32.xlu0 %v2658
    %v2660 = vpop.xlane.xlu0 %2659
    %v2661 = vsel %vm454, %v2656, 0.0
    %2662 = vadd.xlane.f32.xlu0 %v2661
    %v2663 = vpop.xlane.xlu0 %2662
    %v2664 = vsel %vm461, %v2657, 0.0
    %2665 = vadd.xlane.f32.xlu0 %v2664
    %v2666 = vpop.xlane.xlu0 %2665
    %v2667 = vmul.f32 %v2660, %v465
    %v2668 = vmul.f32 %v2663, %v465
    %v2669 = vmul.f32 %v2666, %v465
    %v2670 = vadd.f32 %v2667, 1e-05
    %v2671 = vadd.f32 %v2668, 1e-05
    %v2672 = vadd.f32 %v2669, 1e-05
    %v2673 = vrsqrt.pop %v2670
    %v2674 = vrsqrt.pop %v2671
    %v2675 = vrsqrt.pop %v2672
    %v2676 = vmul.f32 %v2652, %v2673
    %v2677 = vmul.f32 %v2653, %v2674
    %v2678 = vmul.f32 %v2654, %v2675
    %v2679 = vlaneseq
    %v2680 = vshrl.u32 %v2679, 7
    %v2681 = vsub.s32 0, %v2680
    %v2682 = vrot.slane %v1751, %v2681
    %v2683 = vmul.f32 %v2676, %v2682
    %v2684 = vmul.f32 %v2677, %v2682
    %v2685 = vmul.f32 %v2678, %v2682
    %v2686 = vlaneseq
    %v2687 = vshrl.u32 %v2686, 7
    %v2688 = vsub.s32 0, %v2687
    %v2689 = vrot.slane %v1752, %v2688
    %v2690 = vadd.f32 %v2683, %v2689
    %v2691 = vadd.f32 %v2684, %v2689
    %v2692 = vadd.f32 %v2685, %v2689
    %v2693 = vld [vmem:[%s3 + $0x30] sm:$0xf]
    %v2694 = vld [vmem:[%s3 + $0x34] sm:$0xf]
    %v2695 = vld [vmem:[%s3 + $0x38] sm:$0xf]
    %v2696 = vld [vmem:[%s3 + $0x3c] sm:$0xf]
    %v2697 = vpack.c.bf16 %v2691, %v2690
    %v2698 = vpack.c.bf16 %v2692, %v2692
    %v2699 = vlaneseq
    %v2700 = vshrl.u32 %v2699, 7
    %v2701 = vsub.s32 0, %v2700
    %v2702 = vrot.slane %v1754, %v2701
    %v2707 = vunpack.c.l.b16 %v2693
    %v2708 = vunpack.c.l.b16 %v2694
    %v2709 = vunpack.c.l.b16 %v2695
    %v2710 = vunpack.c.l.b16 %v2696
    %v2711 = vpack.c.b16 %v2708, %v2707
    %v2712 = vpack.c.b16 %v2710, %v2709
    %v2716 = vsel %vm454, %v2697, 0
    %v2719 = vsel %vm454, %v2698, 0
    %2721 = vmatprep.subr.bf16.mxu0 0
    %2722 = vmatpush1.bf16.msra.mxu0 %v2711
    %2723 = vmatprep.subr.bf16.mxu0 0
    %2724 = vmatpush1.bf16.msra.mxu0 %v2712
    %2725 = vmatprep.subr.bf16.mxu0 0
    %2726 = vmatpush1.bf16.msra.mxu0 0
    %2727 = vmatprep.subr.bf16.mxu0 0
    %2728 = vmatpush1.bf16.msra.mxu0 0
    %2729 = vmatprep.subr.bf16.mxu0 0
    %2730 = vmatpush1.bf16.msra.mxu0 0
    %2731 = vmatprep.subr.bf16.mxu0 0
    %2732 = vmatpush1.bf16.msra.mxu0 0
    %2733 = vmatprep.subr.bf16.mxu0 0
    %2734 = vmatpush1.bf16.msra.mxu0 0
    %2735 = vmatprep.subr.bf16.mxu0 0
    %2736 = vmatpush1.bf16.msra.mxu0 0
    %2737 = vmatprep.subr.bf16.mxu0 0
    %2738 = vmatpush1.bf16.msra.mxu0 0
    %2739 = vmatprep.subr.bf16.mxu0 0
    %2740 = vmatpush1.bf16.msra.mxu0 0
    %2741 = vmatprep.subr.bf16.mxu0 0
    %2742 = vmatpush1.bf16.msra.mxu0 0
    %2743 = vmatprep.subr.bf16.mxu0 0
    %2744 = vmatpush1.bf16.msra.mxu0 0
    %2745 = vmatprep.subr.bf16.mxu0 0
    %2746 = vmatpush1.bf16.msra.mxu0 0
    %2747 = vmatprep.subr.bf16.mxu0 0
    %2748 = vmatpush1.bf16.msra.mxu0 0
    %2749 = vmatprep.subr.bf16.mxu0 0
    %2750 = vmatpush1.bf16.msra.mxu0 0
    %2751 = vmatprep.subr.bf16.mxu0 0
    %2752 = vmatpush1.bf16.msra.mxu0 0
    %2753 = vmatprep.mubr.bf16.mxu0 0
    %2754 = vmatmul.mubr.bf16.gmra.mrb[0].mxu0 %v2716
    %v2755 = vpop.f32.mrb[0].mxu0
    %v2756 = vadd.f32 %v2702, %v2755
    %v2757 = vpop.f32.mrb[0].mxu0
    %v2758 = vpop.f32.mrb[0].mxu0
    %v2759 = vadd.f32 %v2702, %v2758
    %v2760 = vpop.f32.mrb[0].mxu0
    %2761 = vmatprep.mubr.bf16.mxu0 0
    %2762 = vmatmul.mubr.bf16.gmra.mrb[0].mxu0 %v2719
    %v2763 = vpop.f32.mrb[0].mxu0
    %v2764 = vadd.f32 %v2702, %v2763
    %v2765 = vpop.f32.mrb[0].mxu0
    %v2766 = vpop.f32.mrb[0].mxu0
    %v2767 = vpop.f32.mrb[0].mxu0
    %2768 = vdwg.mxu0
    %v2769 = vmul.f32 %v2756, 0.5
    %v2770 = vmul.f32 %v2759, 0.5
    %v2771 = vmul.f32 %v2764, 0.5
    %v2772 = vmul.f32 %v2756, 0.70710677
    %v2773 = vmul.f32 %v2759, 0.70710677
    %v2774 = vmul.f32 %v2764, 0.70710677
    %vm2775 = vcmp.ge.f32.partialorder %v2772, 0.0
    %vm2776 = vcmp.ge.f32.partialorder %v2773, 0.0
    %vm2777 = vcmp.ge.f32.partialorder %v2774, 0.0
    %v2778 = vsel %vm2775, 1.0, -1.0
    %v2779 = vsel %vm2776, 1.0, -1.0
    %v2780 = vsel %vm2777, 1.0, -1.0
    %v2781 = vand.u32 2147483647, %v2772
    %v2782 = vand.u32 2147483647, %v2773
    %v2783 = vand.u32 2147483647, %v2774
    %v2784 = vmul.f32 %v2781, 0.3275911
    %v2785 = vmul.f32 %v2782, 0.3275911
    %v2786 = vmul.f32 %v2783, 0.3275911
    %v2787 = vadd.f32 %v2784, 1.0
    %v2788 = vadd.f32 %v2785, 1.0
    %v2789 = vadd.f32 %v2786, 1.0
    %v2790 = vrcp.pop %v2787
    %v2791 = vrcp.pop %v2788
    %v2792 = vrcp.pop %v2789
    %v2793 = vmul.f32 %v2790, 1.0614054
    %v2794 = vmul.f32 %v2791, 1.0614054
    %v2795 = vmul.f32 %v2792, 1.0614054
    %v2796 = vadd.f32 %v2793, -1.4531521
    %v2797 = vadd.f32 %v2794, -1.4531521
    %v2798 = vadd.f32 %v2795, -1.4531521
    %v2799 = vmul.f32 %v2796, %v2790
    %v2800 = vmul.f32 %v2797, %v2791
    %v2801 = vmul.f32 %v2798, %v2792
    %v2802 = vadd.f32 %v2799, 1.4214138
    %v2803 = vadd.f32 %v2800, 1.4214138
    %v2804 = vadd.f32 %v2801, 1.4214138
    %v2805 = vmul.f32 %v2802, %v2790
    %v2806 = vmul.f32 %v2803, %v2791
    %v2807 = vmul.f32 %v2804, %v2792
    %v2808 = vadd.f32 %v2805, -0.28449672
    %v2809 = vadd.f32 %v2806, -0.28449672
    %v2810 = vadd.f32 %v2807, -0.28449672
    %v2811 = vmul.f32 %v2808, %v2790
    %v2812 = vmul.f32 %v2809, %v2791
    %v2813 = vmul.f32 %v2810, %v2792
    %v2814 = vadd.f32 %v2811, 0.2548296
    %v2815 = vadd.f32 %v2812, 0.2548296
    %v2816 = vadd.f32 %v2813, 0.2548296
    %v2817 = vmul.f32 %v2814, %v2790
    %v2818 = vmul.f32 %v2815, %v2791
    %v2819 = vmul.f32 %v2816, %v2792
    %v2820 = vsub.f32 0.0, %v2781
    %v2821 = vsub.f32 0.0, %v2782
    %v2822 = vsub.f32 0.0, %v2783
    %v2823 = vmul.f32 %v2820, %v2781
    %v2824 = vmul.f32 %v2821, %v2782
    %v2825 = vmul.f32 %v2822, %v2783
    %v2826 = vmul.f32 %v2823, 1.442695
    %v2827 = vpow.pop %v2826
    %v2828 = vmul.f32 %v2824, 1.442695
    %v2829 = vpow.pop %v2828
    %v2830 = vmul.f32 %v2825, 1.442695
    %v2831 = vpow.pop %v2830
    %v2832 = vmul.f32 %v2817, %v2827
    %v2833 = vmul.f32 %v2818, %v2829
    %v2834 = vmul.f32 %v2819, %v2831
    %v2835 = vsub.f32 1.0, %v2832
    %v2836 = vsub.f32 1.0, %v2833
    %v2837 = vsub.f32 1.0, %v2834
    %v2838 = vmul.f32 %v2778, %v2835
    %v2839 = vmul.f32 %v2779, %v2836
    %v2840 = vmul.f32 %v2780, %v2837
    %v2841 = vadd.f32 %v2838, 1.0
    %v2842 = vadd.f32 %v2839, 1.0
    %v2843 = vadd.f32 %v2840, 1.0
    %v2844 = vmul.f32 %v2769, %v2841
    %v2845 = vmul.f32 %v2770, %v2842
    %v2846 = vmul.f32 %v2771, %v2843
    %v2847 = vld [vmem:[%s2 + $0x100] sm:$0xf]
    %v2848 = vld [vmem:[%s2 + $0x104] sm:$0xf]
    %v2849 = vld [vmem:[%s2 + $0x108] sm:$0xf]
    %v2850 = vld [vmem:[%s2 + $0x10c] sm:$0xf]
    %v2851 = vld [vmem:[%s2 + $0x110] sm:$0xf]
    %v2852 = vld [vmem:[%s2 + $0x114] sm:$0xf]
    %v2853 = vld [vmem:[%s2 + $0x118] sm:$0xf]
    %v2854 = vld [vmem:[%s2 + $0x11c] sm:$0xf]
    %v2855 = vpack.c.bf16 %v2845, %v2844
    %v2856 = vpack.c.bf16 %v2846, %v2846
    %v2857 = vlaneseq
    %v2858 = vshrl.u32 %v2857, 7
    %v2859 = vsub.s32 0, %v2858
    %v2860 = vrot.slane %v1753, %v2859
    %v2869 = vunpack.c.l.b16 %v2847
    %v2870 = vunpack.c.l.b16 %v2848
    %v2871 = vunpack.c.l.b16 %v2849
    %v2872 = vunpack.c.l.b16 %v2850
    %v2873 = vunpack.c.l.b16 %v2851
    %v2874 = vunpack.c.l.b16 %v2852
    %v2875 = vunpack.c.l.b16 %v2853
    %v2876 = vunpack.c.l.b16 %v2854
    %v2877 = vpack.c.b16 %v2870, %v2869
    %v2878 = vpack.c.b16 %v2872, %v2871
    %v2879 = vpack.c.b16 %v2874, %v2873
    %v2880 = vpack.c.b16 %v2876, %v2875
    %v2886 = vsel %vm1690, %v2855, 0
    %v2889 = vsel %vm1690, %v2856, 0
    %2891 = vmatprep.subr.bf16.mxu0 0
    %2892 = vmatpush1.bf16.msra.mxu0 %v2877
    %2893 = vmatprep.subr.bf16.mxu0 0
    %2894 = vmatpush1.bf16.msra.mxu0 %v2878
    %2895 = vmatprep.subr.bf16.mxu0 0
    %2896 = vmatpush1.bf16.msra.mxu0 %v2879
    %2897 = vmatprep.subr.bf16.mxu0 0
    %2898 = vmatpush1.bf16.msra.mxu0 %v2880
    %2899 = vmatprep.subr.bf16.mxu0 0
    %2900 = vmatpush1.bf16.msra.mxu0 0
    %2901 = vmatprep.subr.bf16.mxu0 0
    %2902 = vmatpush1.bf16.msra.mxu0 0
    %2903 = vmatprep.subr.bf16.mxu0 0
    %2904 = vmatpush1.bf16.msra.mxu0 0
    %2905 = vmatprep.subr.bf16.mxu0 0
    %2906 = vmatpush1.bf16.msra.mxu0 0
    %2907 = vmatprep.subr.bf16.mxu0 0
    %2908 = vmatpush1.bf16.msra.mxu0 0
    %2909 = vmatprep.subr.bf16.mxu0 0
    %2910 = vmatpush1.bf16.msra.mxu0 0
    %2911 = vmatprep.subr.bf16.mxu0 0
    %2912 = vmatpush1.bf16.msra.mxu0 0
    %2913 = vmatprep.subr.bf16.mxu0 0
    %2914 = vmatpush1.bf16.msra.mxu0 0
    %2915 = vmatprep.subr.bf16.mxu0 0
    %2916 = vmatpush1.bf16.msra.mxu0 0
    %2917 = vmatprep.subr.bf16.mxu0 0
    %2918 = vmatpush1.bf16.msra.mxu0 0
    %2919 = vmatprep.subr.bf16.mxu0 0
    %2920 = vmatpush1.bf16.msra.mxu0 0
    %2921 = vmatprep.subr.bf16.mxu0 0
    %2922 = vmatpush1.bf16.msra.mxu0 0
    %2923 = vmatprep.mubr.bf16.mxu0 0
    %2924 = vmatmul.mubr.bf16.gmra.mrb[0].mxu0 %v2886
    %v2925 = vpop.f32.mrb[0].mxu0
    %v2926 = vadd.f32 %v2860, %v2925
    %v2927 = vpop.f32.mrb[0].mxu0
    %v2928 = vpop.f32.mrb[0].mxu0
    %v2929 = vpop.f32.mrb[0].mxu0
    %2930 = vmatprep.mubr.bf16.mxu0 0
    %2931 = vmatmul.mubr.bf16.gmra.mrb[0].mxu0 %v2889
    %v2932 = vpop.f32.mrb[0].mxu0
    %v2933 = vpop.f32.mrb[0].mxu0
    %v2934 = vpop.f32.mrb[0].mxu0
    %v2935 = vpop.f32.mrb[0].mxu0
    %2936 = vdwg.mxu0
    %v2937 = vadd.f32 %v2926, %v2637
    %v2938 = vld [vmem:[%s1 + $0x27] sm:$0x1]
    %v2939 = vld [vmem:[%s1 + $0x28] sm:$0x1]
    %v2940 = vsel %vm461, %v2937, 0.0
    %2941 = vadd.xlane.f32.xlu0 %v2940
    %v2942 = vpop.xlane.xlu0 %2941
    %v2943 = vmul.f32 %v2942, %v465
    %v2944 = vsub.f32 %v2937, %v2943
    %v2945 = vmul.f32 %v2944, %v2944
    %v2946 = vsel %vm461, %v2945, 0.0
    %2947 = vadd.xlane.f32.xlu0 %v2946
    %v2948 = vpop.xlane.xlu0 %2947
    %v2949 = vmul.f32 %v2948, %v465
    %v2950 = vadd.f32 %v2949, 1e-05
    %v2951 = vrsqrt.pop %v2950
    %v2952 = vmul.f32 %v2944, %v2951
    %v2953 = vlaneseq
    %v2954 = vshrl.u32 %v2953, 7
    %v2955 = vsub.s32 0, %v2954
    %v2956 = vrot.slane %v2938, %v2955
    %v2957 = vmul.f32 %v2952, %v2956
    %v2958 = vlaneseq
    %v2959 = vshrl.u32 %v2958, 7
    %v2960 = vsub.s32 0, %v2959
    %v2961 = vrot.slane %v2939, %v2960
    %v2962 = vadd.f32 %v2957, %v2961
    %v2963 = vld [vmem:[%s2 + $0x120] sm:$0xf]
    %v2964 = vld [vmem:[%s2 + $0x124] sm:$0xf]
    %v2965 = vld [vmem:[%s2 + $0x128] sm:$0xf]
    %v2966 = vld [vmem:[%s2 + $0x12c] sm:$0xf]
    %v2967 = vpack.c.bf16 %v2962, %v2962
    %v2968 = vld [vmem:[%s1 + $0x37] sm:$0x1]
    %v2969 = vlaneseq
    %v2970 = vshrl.u32 %v2969, 7
    %v2971 = vsub.s32 0, %v2970
    %v2972 = vrot.slane %v2968, %v2971
    %v2977 = vunpack.c.l.b16 %v2963
    %v2978 = vunpack.c.l.b16 %v2964
    %v2979 = vunpack.c.l.b16 %v2965
    %v2980 = vunpack.c.l.b16 %v2966
    %v2981 = vpack.c.b16 %v2978, %v2977
    %v2982 = vpack.c.b16 %v2980, %v2979
    %v2986 = vsel %vm454, %v2967, 0
    %2988 = vmatprep.subr.bf16.mxu0 0
    %2989 = vmatpush1.bf16.msra.mxu0 %v2981
    %2990 = vmatprep.subr.bf16.mxu0 0
    %2991 = vmatpush1.bf16.msra.mxu0 %v2982
    %2992 = vmatprep.subr.bf16.mxu0 0
    %2993 = vmatpush1.bf16.msra.mxu0 0
    %2994 = vmatprep.subr.bf16.mxu0 0
    %2995 = vmatpush1.bf16.msra.mxu0 0
    %2996 = vmatprep.subr.bf16.mxu0 0
    %2997 = vmatpush1.bf16.msra.mxu0 0
    %2998 = vmatprep.subr.bf16.mxu0 0
    %2999 = vmatpush1.bf16.msra.mxu0 0
    %3000 = vmatprep.subr.bf16.mxu0 0
    %3001 = vmatpush1.bf16.msra.mxu0 0
    %3002 = vmatprep.subr.bf16.mxu0 0
    %3003 = vmatpush1.bf16.msra.mxu0 0
    %3004 = vmatprep.subr.bf16.mxu0 0
    %3005 = vmatpush1.bf16.msra.mxu0 0
    %3006 = vmatprep.subr.bf16.mxu0 0
    %3007 = vmatpush1.bf16.msra.mxu0 0
    %3008 = vmatprep.subr.bf16.mxu0 0
    %3009 = vmatpush1.bf16.msra.mxu0 0
    %3010 = vmatprep.subr.bf16.mxu0 0
    %3011 = vmatpush1.bf16.msra.mxu0 0
    %3012 = vmatprep.subr.bf16.mxu0 0
    %3013 = vmatpush1.bf16.msra.mxu0 0
    %3014 = vmatprep.subr.bf16.mxu0 0
    %3015 = vmatpush1.bf16.msra.mxu0 0
    %3016 = vmatprep.subr.bf16.mxu0 0
    %3017 = vmatpush1.bf16.msra.mxu0 0
    %3018 = vmatprep.subr.bf16.mxu0 0
    %3019 = vmatpush1.bf16.msra.mxu0 0
    %3020 = vmatprep.mubr.bf16.mxu0 0
    %3021 = vmatmul.mubr.bf16.gmra.mrb[0].mxu0 %v2986
    %v3022 = vpop.f32.mrb[0].mxu0
    %v3023 = vadd.f32 %v2972, %v3022
    %v3024 = vpop.f32.mrb[0].mxu0
    %v3025 = vpop.f32.mrb[0].mxu0
    %v3026 = vpop.f32.mrb[0].mxu0
    %3027 = vdwg.mxu0
    %3028 = vst.msk [vmem:[#allocation2] sm:$0x3] %vm461, %v3023
    // Predicated region
    $region18: #{vit3d_forward.1} parent=1 // pred_check
      _
    $region19: #{vit3d_forward.1} parent=1 // pred_check_branch
      %3030 = sbr.rel (0) target = $region21
    $region20: #{vit3d_forward.1} parent=1 // pred_region
      %s3032 = ssub.s32 32, 32
      %3033 = vsyncadd [#allocation3], %s3032
      %s3035 = sshll.u32 [#allocation2], 4
      %s3036 = int_to_ptr.vmem [resolvable:$true] %s3035
      %3038 = dma.vmem_to_hbm [thread:$0]  %s3036, 32, %s4, [#allocation3]
    $region21: #{vit3d_forward.1} parent=1 // pred_fallthru
      _
    // Predicated region
    $region22: #{vit3d_forward.1} parent=1 // pred_check
      _
    $region23: #{vit3d_forward.1} parent=1 // pred_check_branch
      %3040 = sbr.rel (0) target = $region25
    $region24: #{vit3d_forward.1} parent=1 // pred_region
      %3041 = dma.done [#allocation3], 32
    $region25: #{vit3d_forward.1} parent=1 // pred_fallthru
      _
    %3042 = vsyncpa [#allocation3], 1

</llo_original>
